<compile_context>
chip_gen: v6e
topology: v6e:2x2x1
jax: 0.10.0
libtpu: 0.0.40
codegen_flags: <defaults>
</compile_context>

<pallas_src>
import functools

import jax
import jax.numpy as jnp
import numpy as np
from jax import lax
from jax.experimental import pallas as pl
from jax.experimental.pallas import tpu as pltpu


# ---------------------------------------------------------------------------
# Fused kernel (one image per grid step)
# ---------------------------------------------------------------------------
def _bottleneck_kernel(x_ref, mask_ref, w1_ref, s1_ref, b1_ref,
                       w2_ref, s2_ref, b2_ref,
                       w3_ref, s3_ref, b3_ref,
                       o_ref, p_ref, *, H, W, Cmid):
    """Fused Bottleneck forward for one image (width-padded pixel grid).

    x_ref  : (1, H*(W+2), Cin)  bf16   width pre-padded with zero columns
    mask   : (H*(W+2), 1)       f32    0 at the two padding columns, else 1
    w1     : (Cin, Cmid)        bf16
    w2     : (9, Cmid, Cmid)    bf16   [ky*3+kx, cin, cout]
    w3     : (Cmid, Cout)       bf16
    s*/b*  : (1, C)             f32    folded BatchNorm scale / bias
    o_ref  : (1, H*(W+2), Cout) bf16   (garbage at padding columns; wrapper
                                        slices the valid W columns out)
    p_ref  : ((H+2)*(W+2)+2, Cmid) bf16 flat zero-padded conv2 input
    """
    Wp = W + 2
    HWp = H * Wp

    # ---- conv1 (1x1) + bn1 + relu, over the width-padded pixel grid -------
    a1 = jnp.dot(x_ref[0], w1_ref[...], preferred_element_type=jnp.float32)
    a1 = jnp.maximum(a1 * s1_ref[...] + b1_ref[...], 0.0)
    # x is zero at the padding columns but bn1's bias is not: zero them so
    # they act as conv2's horizontal zero padding.
    a1 = a1 * mask_ref[...]

    # ---- build the zero-padded conv2 input in the flat scratch ------------
    # Scratch row r (1 <= r < 1+(H+2)*Wp) holds padded pixel (py, px) with
    # r = 1 + py*Wp + px; rows 0 / last are slack so every tap slice below
    # stays in bounds.  Only the top/bottom padding rows are zero-stored; the
    # interior is one contiguous store of a1 (its padding columns are zero).
    p_ref[pl.ds(0, Wp + 1), :] = jnp.zeros((Wp + 1, Cmid), p_ref.dtype)
    p_ref[pl.ds(1 + (H + 1) * Wp, Wp + 1), :] = jnp.zeros((Wp + 1, Cmid),
                                                          p_ref.dtype)
    p_ref[pl.ds(1 + Wp, HWp), :] = a1.astype(p_ref.dtype)

    # ---- conv2 (3x3, stride=1, pad=1) + bn2 + relu -------------------------
    # Output position i = y*Wp + px needs padded pixel at scratch row
    # i + ky*Wp + kx, so every tap is a contiguous row-offset slice.
    # 9 accumulating MXU matmuls; the first one initializes the accumulator.
    acc2 = None
    for ky in range(3):
        for kx in range(3):
            tap = p_ref[pl.ds(ky * Wp + kx, HWp), :]
            part = jnp.dot(tap, w2_ref[ky * 3 + kx],
                           preferred_element_type=jnp.float32)
            acc2 = part if acc2 is None else acc2 + part
    a2 = jnp.maximum(acc2 * s2_ref[...] + b2_ref[...], 0.0)

    # ---- conv3 (1x1) + bn3 + residual add + relu ---------------------------
    a3 = jnp.dot(a2.astype(jnp.bfloat16), w3_ref[...],
                 preferred_element_type=jnp.float32)
    # Residual: re-read x (bf16) here and upcast; no f32 copy of x was held
    # live across conv1/conv2.
    a3 = a3 * s3_ref[...] + b3_ref[...] + x_ref[0].astype(jnp.float32)
    o_ref[0] = jnp.maximum(a3, 0.0).astype(o_ref.dtype)


# ---------------------------------------------------------------------------
# Wrappers
# ---------------------------------------------------------------------------
def _default_vmem_limit_bytes():
    cap = None
    try:
        cap = getattr(pltpu.get_tpu_info(), "vmem_capacity_bytes", None)
    except Exception:
        cap = None
    if not cap:
        cap = 64 * 1024 * 1024          # conservative fallback (v7x per-core)
    return int(max(32 * 1024 * 1024, min(96 * 1024 * 1024, cap // 2)))


def bottleneck_forward_nhwc(x_nhwc, params):
    """x_nhwc: (N, H, W, Cin) float32, channels on the lane axis.

    Returns (N, H, W, Cout) bfloat16 (activations cross HBM in bf16).
    """
    N, H, W, Cin = x_nhwc.shape
    Cmid = params["w1"].shape[1]
    Cout = params["w3"].shape[1]
    assert Cout == Cin, "downsample=None requires inplanes == planes * 4"
    Wp = W + 2
    HWp = H * Wp

    # bf16 activation I/O; width pre-padded with conv2's zero columns so the
    # kernel's padded-buffer store is a single contiguous slice.
    x_p = jnp.pad(x_nhwc, ((0, 0), (0, 0), (1, 1), (0, 0)))
    x_flat = x_p.reshape(N, HWp, Cin).astype(jnp.bfloat16)

    # Column-validity mask: 0 at the two horizontal padding columns.
    col = np.arange(HWp, dtype=np.int32) % Wp
    mask = jnp.asarray(((col >= 1) & (col <= W)).astype(np.float32)[:, None])

    kernel = functools.partial(_bottleneck_kernel, H=H, W=W, Cmid=Cmid)
    rep2 = lambda n: (0, 0)
    n_scratch_rows = (H + 2) * Wp + 2

    out = pl.pallas_call(
        kernel,
        out_shape=jax.ShapeDtypeStruct((N, HWp, Cout), jnp.bfloat16),
        grid=(N,),
        in_specs=[
            pl.BlockSpec((1, HWp, Cin), lambda n: (n, 0, 0)),      # x (W-padded)
            pl.BlockSpec((HWp, 1), rep2),                          # column mask
            pl.BlockSpec((Cin, Cmid), rep2),                       # w1
            pl.BlockSpec((1, Cmid), rep2),                         # s1
            pl.BlockSpec((1, Cmid), rep2),                         # b1
            pl.BlockSpec((9, Cmid, Cmid), lambda n: (0, 0, 0)),    # w2
            pl.BlockSpec((1, Cmid), rep2),                         # s2
            pl.BlockSpec((1, Cmid), rep2),                         # b2
            pl.BlockSpec((Cmid, Cout), rep2),                      # w3
            pl.BlockSpec((1, Cout), rep2),                         # s3
            pl.BlockSpec((1, Cout), rep2),                         # b3
        ],
        out_specs=pl.BlockSpec((1, HWp, Cout), lambda n: (n, 0, 0)),
        scratch_shapes=[pltpu.VMEM((n_scratch_rows, Cmid), jnp.bfloat16)],
        compiler_params=pltpu.CompilerParams(
            dimension_semantics=("parallel",),
            vmem_limit_bytes=_default_vmem_limit_bytes()),
    )(x_flat, mask, params["w1"], params["s1"], params["b1"],
      params["w2"], params["s2"], params["b2"],
      params["w3"], params["s3"], params["b3"])

    # Drop the two padding columns (the only non-valid output positions).
    out = out.reshape(N, H, Wp, Cout)[:, :, 1:W + 1, :]
    return out


def bottleneck_forward(x_nchw, params):
    """PyTorch-layout entry point: (N, inplanes, H, W) float32 -> same layout.

    The transposes exist only to match the NCHW PyTorch interface; in a full
    NHWC model they disappear (keep activations NHWC + bf16 end-to-end).
    """
    x = jnp.transpose(x_nchw, (0, 2, 3, 1))                 # NHWC
    out = bottleneck_forward_nhwc(x, params)
    return jnp.transpose(out, (0, 3, 1, 2)).astype(x_nchw.dtype)


# ---------------------------------------------------------------------------
# Deterministic parameter init + pure-JAX f32 reference
# ---------------------------------------------------------------------------
def make_params(key, inplanes, planes):
    expansion = 4
    ks = jax.random.split(key, 12)
    eps = 1e-5

    def bn_fold(kg, kb, km, kv, c):
        gamma = jax.random.normal(kg, (c,), jnp.float32) * 0.1 + 1.0
        beta = jax.random.normal(kb, (c,), jnp.float32) * 0.1
        rmean = jax.random.normal(km, (c,), jnp.float32) * 0.1
        rvar = jax.random.uniform(kv, (c,), jnp.float32, 0.5, 1.5)
        scale = gamma / jnp.sqrt(rvar + eps)
        bias = beta - rmean * scale
        return scale.reshape(1, c), bias.reshape(1, c), (gamma, beta, rmean, rvar)

    # PyTorch conv weights: (Cout, Cin, kH, kW)
    w1_pt = jax.random.normal(ks[0], (planes, inplanes, 1, 1), jnp.float32) * 0.1
    w2_pt = jax.random.normal(ks[1], (planes, planes, 3, 3), jnp.float32) * 0.1
    w3_pt = jax.random.normal(ks[2], (planes * expansion, planes, 1, 1),
                              jnp.float32) * 0.1

    s1, b1, bn1 = bn_fold(ks[3], ks[4], ks[5], ks[6], planes)
    s2, b2, bn2 = bn_fold(ks[7], ks[8], ks[9], ks[10], planes)
    s3, b3, bn3 = bn_fold(ks[11], ks[3], ks[7], ks[0], planes * expansion)

    # MXU operands in bf16 (f32 accumulation happens inside the kernel).
    w1 = jnp.transpose(w1_pt[:, :, 0, 0], (1, 0)).astype(jnp.bfloat16)   # (Cin, Cmid)
    # (9, Cmid_in, Cmid_out) with index ky*3 + kx; w2[k][ci, co] = w2_pt[co, ci, ky, kx]
    w2 = jnp.transpose(w2_pt, (2, 3, 1, 0)).reshape(
        9, planes, planes).astype(jnp.bfloat16)
    w3 = jnp.transpose(w3_pt[:, :, 0, 0], (1, 0)).astype(jnp.bfloat16)   # (Cmid, Cout)

    params = dict(w1=w1, w2=w2, w3=w3,
                  s1=s1, b1=b1, s2=s2, b2=b2, s3=s3, b3=b3)
    pt_weights = dict(w1=w1_pt, w2=w2_pt, w3=w3_pt, bn1=bn1, bn2=bn2, bn3=bn3)
    return params, pt_weights


def reference_forward(x_nchw, pt, eps=1e-5):
    def conv(x, w, stride=1, padding=0):
        return lax.conv_general_dilated(
            x, w, (stride, stride), [(padding, padding)] * 2,
            dimension_numbers=("NCHW", "OIHW", "NCHW"))

    def bn(x, p):
        gamma, beta, rmean, rvar = p
        sc = gamma / jnp.sqrt(rvar + eps)
        return x * sc[None, :, None, None] + (beta - rmean * sc)[None, :, None, None]

    out = jax.nn.relu(bn(conv(x_nchw, pt["w1"]), pt["bn1"]))
    out = jax.nn.relu(bn(conv(out, pt["w2"], stride=1, padding=1), pt["bn2"]))
    out = bn(conv(out, pt["w3"]), pt["bn3"])
    out = out + x_nchw
    return jax.nn.relu(out)


if __name__ == "__main__":
    key = jax.random.PRNGKey(0)
    planes = 8
    inplanes = planes * 4          # downsample=None requires inplanes == planes*4
    N, H, W = 2, 16, 16

    kx_, kp = jax.random.split(key)
    x = jax.random.normal(kx_, (N, inplanes, H, W), jnp.float32)
    params, pt_weights = make_params(kp, inplanes, planes)

    out = jax.block_until_ready(bottleneck_forward(x, params))
    ref = jax.block_until_ready(reference_forward(x, pt_weights))

    # bf16 activation I/O + bf16 MXU operands (f32 accumulation) vs. a pure
    # f32 reference -> bf16-appropriate tolerance.
    np.testing.assert_allclose(np.asarray(out), np.asarray(ref),
                               rtol=5e-2, atol=5e-2)
    print("KERNEL_OK")
</pallas_src>

<mosaic_0001>
module attributes {stable_mosaic.version = 11 : i64} {
  func.func @_bottleneck_kernel(%arg0: i32, %arg1: memref<1x288x32xbf16, #tpu.memory_space<vmem>>, %arg2: memref<288x1xf32, #tpu.memory_space<vmem>>, %arg3: memref<32x8xbf16, #tpu.memory_space<vmem>>, %arg4: memref<1x8xf32, #tpu.memory_space<vmem>>, %arg5: memref<1x8xf32, #tpu.memory_space<vmem>>, %arg6: memref<9x8x8xbf16, #tpu.memory_space<vmem>>, %arg7: memref<1x8xf32, #tpu.memory_space<vmem>>, %arg8: memref<1x8xf32, #tpu.memory_space<vmem>>, %arg9: memref<8x32xbf16, #tpu.memory_space<vmem>>, %arg10: memref<1x32xf32, #tpu.memory_space<vmem>>, %arg11: memref<1x32xf32, #tpu.memory_space<vmem>>, %arg12: memref<1x288x32xbf16, #tpu.memory_space<vmem>>, %arg13: memref<326x8xbf16, #tpu.memory_space<vmem>>) attributes {dimension_semantics = [#tpu.dimension_semantics<parallel>], iteration_bounds = array<i64: 2>, scalar_prefetch = 0 : i64, scratch_operands = 1 : i64, tpu.core_type = #tpu.core_type<tc>, window_params = [{transform_indices = @transform_0, window_bounds = array<i64: 1, 288, 32>}, {pipeline_mode = #tpu.pipeline_mode<synchronous>, transform_indices = @transform_1, window_bounds = array<i64: 288, 1>}, {pipeline_mode = #tpu.pipeline_mode<synchronous>, transform_indices = @transform_2, window_bounds = array<i64: 32, 8>}, {pipeline_mode = #tpu.pipeline_mode<synchronous>, transform_indices = @transform_3, window_bounds = array<i64: 1, 8>}, {pipeline_mode = #tpu.pipeline_mode<synchronous>, transform_indices = @transform_4, window_bounds = array<i64: 1, 8>}, {pipeline_mode = #tpu.pipeline_mode<synchronous>, transform_indices = @transform_5, window_bounds = array<i64: 9, 8, 8>}, {pipeline_mode = #tpu.pipeline_mode<synchronous>, transform_indices = @transform_6, window_bounds = array<i64: 1, 8>}, {pipeline_mode = #tpu.pipeline_mode<synchronous>, transform_indices = @transform_7, window_bounds = array<i64: 1, 8>}, {pipeline_mode = #tpu.pipeline_mode<synchronous>, transform_indices = @transform_8, window_bounds = array<i64: 8, 32>}, {pipeline_mode = #tpu.pipeline_mode<synchronous>, transform_indices = @transform_9, window_bounds = array<i64: 1, 32>}, {pipeline_mode = #tpu.pipeline_mode<synchronous>, transform_indices = @transform_10, window_bounds = array<i64: 1, 32>}, {transform_indices = @transform_11, window_bounds = array<i64: 1, 288, 32>}]} {
    %c0 = arith.constant 0 : index
    %c0_0 = arith.constant 0 : index
    %c0_1 = arith.constant 0 : index
    %0 = vector.load %arg1[%c0, %c0_0, %c0_1] : memref<1x288x32xbf16, #tpu.memory_space<vmem>>, vector<1x288x32xbf16>
    %1 = vector.shape_cast %0 : vector<1x288x32xbf16> to vector<288x32xbf16>
    %c0_2 = arith.constant 0 : index
    %c0_3 = arith.constant 0 : index
    %2 = vector.load %arg3[%c0_2, %c0_3] : memref<32x8xbf16, #tpu.memory_space<vmem>>, vector<32x8xbf16>
    %cst = arith.constant dense<0.000000e+00> : vector<288x8xf32>
    %3 = tpu.matmul %1, %2, %cst {dimension_numbers = #tpu.dot_dimension_numbers<[1], [0], [0], [1], [0, 0, 1, 1], [], []>} : vector<288x32xbf16>, vector<32x8xbf16>, vector<288x8xf32> -> vector<288x8xf32>
    %c0_4 = arith.constant 0 : index
    %c0_5 = arith.constant 0 : index
    %4 = vector.load %arg4[%c0_4, %c0_5] : memref<1x8xf32, #tpu.memory_space<vmem>>, vector<1x8xf32>
    %5 = vector.broadcast %4 : vector<1x8xf32> to vector<288x8xf32>
    %6 = arith.mulf %3, %5 : vector<288x8xf32>
    %c0_6 = arith.constant 0 : index
    %c0_7 = arith.constant 0 : index
    %7 = vector.load %arg5[%c0_6, %c0_7] : memref<1x8xf32, #tpu.memory_space<vmem>>, vector<1x8xf32>
    %8 = vector.broadcast %7 : vector<1x8xf32> to vector<288x8xf32>
    %9 = arith.addf %6, %8 : vector<288x8xf32>
    %cst_8 = arith.constant 0.000000e+00 : f32
    %10 = vector.broadcast %cst_8 : f32 to vector<288x8xf32>
    %11 = arith.maximumf %9, %10 : vector<288x8xf32>
    %c0_9 = arith.constant 0 : index
    %c0_10 = arith.constant 0 : index
    %12 = vector.load %arg2[%c0_9, %c0_10] : memref<288x1xf32, #tpu.memory_space<vmem>>, vector<288x1xf32>
    %13 = vector.broadcast %12 : vector<288x1xf32> to vector<288x8xf32>
    %14 = arith.mulf %11, %13 : vector<288x8xf32>
    %cst_11 = arith.constant 0.000000e+00 : bf16
    %15 = vector.broadcast %cst_11 : bf16 to vector<19x8xbf16>
    %c0_12 = arith.constant 0 : index
    %c0_13 = arith.constant 0 : index
    %16 = vector.load %arg13[%c0_12, %c0_13] : memref<326x8xbf16, #tpu.memory_space<vmem>>, vector<19x8xbf16>
    tpu.vector_store %arg13[%c0_12, %c0_13], %15 {strides = array<i32>} : memref<326x8xbf16, #tpu.memory_space<vmem>>, vector<19x8xbf16>,
    %cst_14 = arith.constant 0.000000e+00 : bf16
    %17 = vector.broadcast %cst_14 : bf16 to vector<19x8xbf16>
    %c307 = arith.constant 307 : index
    %c0_15 = arith.constant 0 : index
    %18 = vector.load %arg13[%c307, %c0_15] : memref<326x8xbf16, #tpu.memory_space<vmem>>, vector<19x8xbf16>
    tpu.vector_store %arg13[%c307, %c0_15], %17 {strides = array<i32>} : memref<326x8xbf16, #tpu.memory_space<vmem>>, vector<19x8xbf16>,
    %19 = arith.truncf %14 : vector<288x8xf32> to vector<288x8xbf16>
    %c19 = arith.constant 19 : index
    %c0_16 = arith.constant 0 : index
    %20 = vector.load %arg13[%c19, %c0_16] : memref<326x8xbf16, #tpu.memory_space<vmem>>, vector<288x8xbf16>
    tpu.vector_store %arg13[%c19, %c0_16], %19 {strides = array<i32>} : memref<326x8xbf16, #tpu.memory_space<vmem>>, vector<288x8xbf16>,
    %c0_17 = arith.constant 0 : index
    %c0_18 = arith.constant 0 : index
    %21 = vector.load %arg13[%c0_17, %c0_18] : memref<326x8xbf16, #tpu.memory_space<vmem>>, vector<288x8xbf16>
    %c0_19 = arith.constant 0 : index
    %c0_20 = arith.constant 0 : index
    %c0_21 = arith.constant 0 : index
    %22 = vector.load %arg6[%c0_19, %c0_20, %c0_21] : memref<9x8x8xbf16, #tpu.memory_space<vmem>>, vector<1x8x8xbf16>
    %23 = vector.shape_cast %22 : vector<1x8x8xbf16> to vector<8x8xbf16>
    %cst_22 = arith.constant dense<0.000000e+00> : vector<288x8xf32>
    %24 = tpu.matmul %21, %23, %cst_22 {dimension_numbers = #tpu.dot_dimension_numbers<[1], [0], [0], [1], [0, 0, 1, 1], [], []>} : vector<288x8xbf16>, vector<8x8xbf16>, vector<288x8xf32> -> vector<288x8xf32>
    %c1 = arith.constant 1 : index
    %c0_23 = arith.constant 0 : index
    %25 = vector.load %arg13[%c1, %c0_23] : memref<326x8xbf16, #tpu.memory_space<vmem>>, vector<288x8xbf16>
    %c1_24 = arith.constant 1 : index
    %c0_25 = arith.constant 0 : index
    %c0_26 = arith.constant 0 : index
    %26 = vector.load %arg6[%c1_24, %c0_25, %c0_26] : memref<9x8x8xbf16, #tpu.memory_space<vmem>>, vector<1x8x8xbf16>
    %27 = vector.shape_cast %26 : vector<1x8x8xbf16> to vector<8x8xbf16>
    %cst_27 = arith.constant dense<0.000000e+00> : vector<288x8xf32>
    %28 = tpu.matmul %25, %27, %cst_27 {dimension_numbers = #tpu.dot_dimension_numbers<[1], [0], [0], [1], [0, 0, 1, 1], [], []>} : vector<288x8xbf16>, vector<8x8xbf16>, vector<288x8xf32> -> vector<288x8xf32>
    %29 = arith.addf %24, %28 : vector<288x8xf32>
    %c2 = arith.constant 2 : index
    %c0_28 = arith.constant 0 : index
    %30 = vector.load %arg13[%c2, %c0_28] : memref<326x8xbf16, #tpu.memory_space<vmem>>, vector<288x8xbf16>
    %c2_29 = arith.constant 2 : index
    %c0_30 = arith.constant 0 : index
    %c0_31 = arith.constant 0 : index
    %31 = vector.load %arg6[%c2_29, %c0_30, %c0_31] : memref<9x8x8xbf16, #tpu.memory_space<vmem>>, vector<1x8x8xbf16>
    %32 = vector.shape_cast %31 : vector<1x8x8xbf16> to vector<8x8xbf16>
    %cst_32 = arith.constant dense<0.000000e+00> : vector<288x8xf32>
    %33 = tpu.matmul %30, %32, %cst_32 {dimension_numbers = #tpu.dot_dimension_numbers<[1], [0], [0], [1], [0, 0, 1, 1], [], []>} : vector<288x8xbf16>, vector<8x8xbf16>, vector<288x8xf32> -> vector<288x8xf32>
    %34 = arith.addf %29, %33 : vector<288x8xf32>
    %c18 = arith.constant 18 : index
    %c0_33 = arith.constant 0 : index
    %35 = vector.load %arg13[%c18, %c0_33] : memref<326x8xbf16, #tpu.memory_space<vmem>>, vector<288x8xbf16>
    %c3 = arith.constant 3 : index
    %c0_34 = arith.constant 0 : index
    %c0_35 = arith.constant 0 : index
    %36 = vector.load %arg6[%c3, %c0_34, %c0_35] : memref<9x8x8xbf16, #tpu.memory_space<vmem>>, vector<1x8x8xbf16>
    %37 = vector.shape_cast %36 : vector<1x8x8xbf16> to vector<8x8xbf16>
    %cst_36 = arith.constant dense<0.000000e+00> : vector<288x8xf32>
    %38 = tpu.matmul %35, %37, %cst_36 {dimension_numbers = #tpu.dot_dimension_numbers<[1], [0], [0], [1], [0, 0, 1, 1], [], []>} : vector<288x8xbf16>, vector<8x8xbf16>, vector<288x8xf32> -> vector<288x8xf32>
    %39 = arith.addf %34, %38 : vector<288x8xf32>
    %c19_37 = arith.constant 19 : index
    %c0_38 = arith.constant 0 : index
    %40 = vector.load %arg13[%c19_37, %c0_38] : memref<326x8xbf16, #tpu.memory_space<vmem>>, vector<288x8xbf16>
    %c4 = arith.constant 4 : index
    %c0_39 = arith.constant 0 : index
    %c0_40 = arith.constant 0 : index
    %41 = vector.load %arg6[%c4, %c0_39, %c0_40] : memref<9x8x8xbf16, #tpu.memory_space<vmem>>, vector<1x8x8xbf16>
    %42 = vector.shape_cast %41 : vector<1x8x8xbf16> to vector<8x8xbf16>
    %cst_41 = arith.constant dense<0.000000e+00> : vector<288x8xf32>
    %43 = tpu.matmul %40, %42, %cst_41 {dimension_numbers = #tpu.dot_dimension_numbers<[1], [0], [0], [1], [0, 0, 1, 1], [], []>} : vector<288x8xbf16>, vector<8x8xbf16>, vector<288x8xf32> -> vector<288x8xf32>
    %44 = arith.addf %39, %43 : vector<288x8xf32>
    %c20 = arith.constant 20 : index
    %c0_42 = arith.constant 0 : index
    %45 = vector.load %arg13[%c20, %c0_42] : memref<326x8xbf16, #tpu.memory_space<vmem>>, vector<288x8xbf16>
    %c5 = arith.constant 5 : index
    %c0_43 = arith.constant 0 : index
    %c0_44 = arith.constant 0 : index
    %46 = vector.load %arg6[%c5, %c0_43, %c0_44] : memref<9x8x8xbf16, #tpu.memory_space<vmem>>, vector<1x8x8xbf16>
    %47 = vector.shape_cast %46 : vector<1x8x8xbf16> to vector<8x8xbf16>
    %cst_45 = arith.constant dense<0.000000e+00> : vector<288x8xf32>
    %48 = tpu.matmul %45, %47, %cst_45 {dimension_numbers = #tpu.dot_dimension_numbers<[1], [0], [0], [1], [0, 0, 1, 1], [], []>} : vector<288x8xbf16>, vector<8x8xbf16>, vector<288x8xf32> -> vector<288x8xf32>
    %49 = arith.addf %44, %48 : vector<288x8xf32>
    %c36 = arith.constant 36 : index
    %c0_46 = arith.constant 0 : index
    %50 = vector.load %arg13[%c36, %c0_46] : memref<326x8xbf16, #tpu.memory_space<vmem>>, vector<288x8xbf16>
    %c6 = arith.constant 6 : index
    %c0_47 = arith.constant 0 : index
    %c0_48 = arith.constant 0 : index
    %51 = vector.load %arg6[%c6, %c0_47, %c0_48] : memref<9x8x8xbf16, #tpu.memory_space<vmem>>, vector<1x8x8xbf16>
    %52 = vector.shape_cast %51 : vector<1x8x8xbf16> to vector<8x8xbf16>
    %cst_49 = arith.constant dense<0.000000e+00> : vector<288x8xf32>
    %53 = tpu.matmul %50, %52, %cst_49 {dimension_numbers = #tpu.dot_dimension_numbers<[1], [0], [0], [1], [0, 0, 1, 1], [], []>} : vector<288x8xbf16>, vector<8x8xbf16>, vector<288x8xf32> -> vector<288x8xf32>
    %54 = arith.addf %49, %53 : vector<288x8xf32>
    %c37 = arith.constant 37 : index
    %c0_50 = arith.constant 0 : index
    %55 = vector.load %arg13[%c37, %c0_50] : memref<326x8xbf16, #tpu.memory_space<vmem>>, vector<288x8xbf16>
    %c7 = arith.constant 7 : index
    %c0_51 = arith.constant 0 : index
    %c0_52 = arith.constant 0 : index
    %56 = vector.load %arg6[%c7, %c0_51, %c0_52] : memref<9x8x8xbf16, #tpu.memory_space<vmem>>, vector<1x8x8xbf16>
    %57 = vector.shape_cast %56 : vector<1x8x8xbf16> to vector<8x8xbf16>
    %cst_53 = arith.constant dense<0.000000e+00> : vector<288x8xf32>
    %58 = tpu.matmul %55, %57, %cst_53 {dimension_numbers = #tpu.dot_dimension_numbers<[1], [0], [0], [1], [0, 0, 1, 1], [], []>} : vector<288x8xbf16>, vector<8x8xbf16>, vector<288x8xf32> -> vector<288x8xf32>
    %59 = arith.addf %54, %58 : vector<288x8xf32>
    %c38 = arith.constant 38 : index
    %c0_54 = arith.constant 0 : index
    %60 = vector.load %arg13[%c38, %c0_54] : memref<326x8xbf16, #tpu.memory_space<vmem>>, vector<288x8xbf16>
    %c8 = arith.constant 8 : index
    %c0_55 = arith.constant 0 : index
    %c0_56 = arith.constant 0 : index
    %61 = vector.load %arg6[%c8, %c0_55, %c0_56] : memref<9x8x8xbf16, #tpu.memory_space<vmem>>, vector<1x8x8xbf16>
    %62 = vector.shape_cast %61 : vector<1x8x8xbf16> to vector<8x8xbf16>
    %cst_57 = arith.constant dense<0.000000e+00> : vector<288x8xf32>
    %63 = tpu.matmul %60, %62, %cst_57 {dimension_numbers = #tpu.dot_dimension_numbers<[1], [0], [0], [1], [0, 0, 1, 1], [], []>} : vector<288x8xbf16>, vector<8x8xbf16>, vector<288x8xf32> -> vector<288x8xf32>
    %64 = arith.addf %59, %63 : vector<288x8xf32>
    %c0_58 = arith.constant 0 : index
    %c0_59 = arith.constant 0 : index
    %65 = vector.load %arg7[%c0_58, %c0_59] : memref<1x8xf32, #tpu.memory_space<vmem>>, vector<1x8xf32>
    %66 = vector.broadcast %65 : vector<1x8xf32> to vector<288x8xf32>
    %67 = arith.mulf %64, %66 : vector<288x8xf32>
    %c0_60 = arith.constant 0 : index
    %c0_61 = arith.constant 0 : index
    %68 = vector.load %arg8[%c0_60, %c0_61] : memref<1x8xf32, #tpu.memory_space<vmem>>, vector<1x8xf32>
    %69 = vector.broadcast %68 : vector<1x8xf32> to vector<288x8xf32>
    %70 = arith.addf %67, %69 : vector<288x8xf32>
    %cst_62 = arith.constant 0.000000e+00 : f32
    %71 = vector.broadcast %cst_62 : f32 to vector<288x8xf32>
    %72 = arith.maximumf %70, %71 : vector<288x8xf32>
    %73 = arith.truncf %72 : vector<288x8xf32> to vector<288x8xbf16>
    %c0_63 = arith.constant 0 : index
    %c0_64 = arith.constant 0 : index
    %74 = vector.load %arg9[%c0_63, %c0_64] : memref<8x32xbf16, #tpu.memory_space<vmem>>, vector<8x32xbf16>
    %cst_65 = arith.constant dense<0.000000e+00> : vector<288x32xf32>
    %75 = tpu.matmul %73, %74, %cst_65 {dimension_numbers = #tpu.dot_dimension_numbers<[1], [0], [0], [1], [0, 0, 1, 1], [], []>} : vector<288x8xbf16>, vector<8x32xbf16>, vector<288x32xf32> -> vector<288x32xf32>
    %c0_66 = arith.constant 0 : index
    %c0_67 = arith.constant 0 : index
    %76 = vector.load %arg10[%c0_66, %c0_67] : memref<1x32xf32, #tpu.memory_space<vmem>>, vector<1x32xf32>
    %77 = vector.broadcast %76 : vector<1x32xf32> to vector<288x32xf32>
    %78 = arith.mulf %75, %77 : vector<288x32xf32>
    %c0_68 = arith.constant 0 : index
    %c0_69 = arith.constant 0 : index
    %79 = vector.load %arg11[%c0_68, %c0_69] : memref<1x32xf32, #tpu.memory_space<vmem>>, vector<1x32xf32>
    %80 = vector.broadcast %79 : vector<1x32xf32> to vector<288x32xf32>
    %81 = arith.addf %78, %80 : vector<288x32xf32>
    %c0_70 = arith.constant 0 : index
    %c0_71 = arith.constant 0 : index
    %c0_72 = arith.constant 0 : index
    %82 = vector.load %arg1[%c0_70, %c0_71, %c0_72] : memref<1x288x32xbf16, #tpu.memory_space<vmem>>, vector<1x288x32xbf16>
    %83 = vector.shape_cast %82 : vector<1x288x32xbf16> to vector<288x32xbf16>
    %84 = arith.extf %83 : vector<288x32xbf16> to vector<288x32xf32>
    %85 = arith.addf %81, %84 : vector<288x32xf32>
    %cst_73 = arith.constant 0.000000e+00 : f32
    %86 = vector.broadcast %cst_73 : f32 to vector<288x32xf32>
    %87 = arith.maximumf %85, %86 : vector<288x32xf32>
    %88 = arith.truncf %87 : vector<288x32xf32> to vector<288x32xbf16>
    %c0_74 = arith.constant 0 : index
    %c0_75 = arith.constant 0 : index
    %c0_76 = arith.constant 0 : index
    %89 = vector.load %arg12[%c0_74, %c0_75, %c0_76] : memref<1x288x32xbf16, #tpu.memory_space<vmem>>, vector<1x288x32xbf16>
    %90 = vector.shape_cast %89 : vector<1x288x32xbf16> to vector<288x32xbf16>
    %91 = vector.shape_cast %88 : vector<288x32xbf16> to vector<1x288x32xbf16>
    tpu.vector_store %arg12[%c0_74, %c0_75, %c0_76], %91 {strides = array<i32>} : memref<1x288x32xbf16, #tpu.memory_space<vmem>>, vector<1x288x32xbf16>,
    return
  }
  func.func @transform_0(%arg0: i32) -> (i32, i32, i32) {
    %c0_i32 = arith.constant 0 : i32
    %c0_i32_0 = arith.constant 0 : i32
    %c0_i32_1 = arith.constant 0 : i32
    return %arg0, %c0_i32, %c0_i32_0 : i32, i32, i32
  }
  func.func @transform_1(%arg0: i32) -> (i32, i32) {
    %c0_i32 = arith.constant 0 : i32
    %c0_i32_0 = arith.constant 0 : i32
    %c0_i32_1 = arith.constant 0 : i32
    return %c0_i32, %c0_i32_0 : i32, i32
  }
  func.func @transform_2(%arg0: i32) -> (i32, i32) {
    %c0_i32 = arith.constant 0 : i32
    %c0_i32_0 = arith.constant 0 : i32
    %c0_i32_1 = arith.constant 0 : i32
    return %c0_i32, %c0_i32_0 : i32, i32
  }
  func.func @transform_3(%arg0: i32) -> (i32, i32) {
    %c0_i32 = arith.constant 0 : i32
    %c0_i32_0 = arith.constant 0 : i32
    %c0_i32_1 = arith.constant 0 : i32
    return %c0_i32, %c0_i32_0 : i32, i32
  }
  func.func @transform_4(%arg0: i32) -> (i32, i32) {
    %c0_i32 = arith.constant 0 : i32
    %c0_i32_0 = arith.constant 0 : i32
    %c0_i32_1 = arith.constant 0 : i32
    return %c0_i32, %c0_i32_0 : i32, i32
  }
  func.func @transform_5(%arg0: i32) -> (i32, i32, i32) {
    %c0_i32 = arith.constant 0 : i32
    %c0_i32_0 = arith.constant 0 : i32
    %c0_i32_1 = arith.constant 0 : i32
    %c0_i32_2 = arith.constant 0 : i32
    return %c0_i32, %c0_i32_0, %c0_i32_1 : i32, i32, i32
  }
  func.func @transform_6(%arg0: i32) -> (i32, i32) {
    %c0_i32 = arith.constant 0 : i32
    %c0_i32_0 = arith.constant 0 : i32
    %c0_i32_1 = arith.constant 0 : i32
    return %c0_i32, %c0_i32_0 : i32, i32
  }
  func.func @transform_7(%arg0: i32) -> (i32, i32) {
    %c0_i32 = arith.constant 0 : i32
    %c0_i32_0 = arith.constant 0 : i32
    %c0_i32_1 = arith.constant 0 : i32
    return %c0_i32, %c0_i32_0 : i32, i32
  }
  func.func @transform_8(%arg0: i32) -> (i32, i32) {
    %c0_i32 = arith.constant 0 : i32
    %c0_i32_0 = arith.constant 0 : i32
    %c0_i32_1 = arith.constant 0 : i32
    return %c0_i32, %c0_i32_0 : i32, i32
  }
  func.func @transform_9(%arg0: i32) -> (i32, i32) {
    %c0_i32 = arith.constant 0 : i32
    %c0_i32_0 = arith.constant 0 : i32
    %c0_i32_1 = arith.constant 0 : i32
    return %c0_i32, %c0_i32_0 : i32, i32
  }
  func.func @transform_10(%arg0: i32) -> (i32, i32) {
    %c0_i32 = arith.constant 0 : i32
    %c0_i32_0 = arith.constant 0 : i32
    %c0_i32_1 = arith.constant 0 : i32
    return %c0_i32, %c0_i32_0 : i32, i32
  }
  func.func @transform_11(%arg0: i32) -> (i32, i32, i32) {
    %c0_i32 = arith.constant 0 : i32
    %c0_i32_0 = arith.constant 0 : i32
    %c0_i32_1 = arith.constant 0 : i32
    return %arg0, %c0_i32, %c0_i32_0 : i32, i32, i32
  }
}

</mosaic_0001>

<llo_original>
// kernel: tpu_custom_call.1
$region0: #{tpu_custom_call.1}
  #allocation0 [shape = 'u32[]', space=smem, size = 0x4, offset = 0x4, fixed_abs, tag = 'smem constant byte address 0x4 - core index']
  #allocation1 [shape = 'u32[144,128]{1,0:T(1,128)}', space=vmem, size = 0x12000, scoped, tag = 'internal scratch']
  #allocation2 [shape = 'bf16[326,8]{1,0:T(8,128)(2,1)}', space=vmem, size = 0x14800, scoped, tag = 'scratch operand']
  %s0 = inlined_call_operand.vmem [shape: bf16[2,288,32], index: 0, kind: input, shape index: {}]
  %s1 = inlined_call_operand.vmem [shape: f32[288,1], index: 1, kind: input, shape index: {}]
  %s2 = inlined_call_operand.vmem [shape: bf16[32,8], index: 2, kind: input, shape index: {}]
  %s3 = inlined_call_operand.vmem [shape: f32[1,8], index: 3, kind: input, shape index: {}]
  %s4 = inlined_call_operand.vmem [shape: f32[1,8], index: 4, kind: input, shape index: {}]
  %s5 = inlined_call_operand.vmem [shape: bf16[9,8,8], index: 5, kind: input, shape index: {}]
  %s6 = inlined_call_operand.vmem [shape: f32[1,8], index: 6, kind: input, shape index: {}]
  %s7 = inlined_call_operand.vmem [shape: f32[1,8], index: 7, kind: input, shape index: {}]
  %s8 = inlined_call_operand.vmem [shape: bf16[8,32], index: 8, kind: input, shape index: {}]
  %s9 = inlined_call_operand.vmem [shape: f32[1,32], index: 9, kind: input, shape index: {}]
  %s10 = inlined_call_operand.vmem [shape: f32[1,32], index: 10, kind: input, shape index: {}]
  %s11 = inlined_call_operand.vmem [shape: bf16[2,288,32], index: 11, kind: output, shape index: {}]
  %s12 = sld [smem:[#allocation0]]
  $region77: #{tpu_custom_call.1} parent=0
    _
  %s14 = ssub.s32 1, %s12
  %s15 = scalar_select 0, %s14, %s12
  loop: start=0, step=1, limit=4
  $region2: #{tpu_custom_call.1} parent=0 // loop_pre_header
    _
  $region3: #{tpu_custom_call.1} parent=0 // loop_header
    %s17 = sphi 0, %s21
    %p18 = scmp.ge.s32.totalorder %s17, 4
    %s27 = sphi 0, %s29
    %s30 = sphi 0, %s27
    %s31 = sphi 0, %s30
    %s47 = sphi 0, %s31
    %s51 = sphi 0, %s51
    %s53 = sphi 0, %s51
    %s54 = sphi 0, %s53
    %s68 = sphi 0, %s54
    %s72 = sphi 0, %s72
    %s74 = sphi 0, %s72
    %s75 = sphi 0, %s74
    %s89 = sphi 0, %s75
    %s93 = sphi 0, %s93
    %s95 = sphi 0, %s93
    %s96 = sphi 0, %s95
    %s110 = sphi 0, %s96
    %s114 = sphi 0, %s114
    %s116 = sphi 0, %s114
    %s117 = sphi 0, %s116
    %s131 = sphi 0, %s117
    %s135 = sphi 0, %s135
    %s137 = sphi 0, %s135
    %s138 = sphi 0, %s137
    %s152 = sphi 0, %s138
    %s156 = sphi 0, %s156
    %s158 = sphi 0, %s156
    %s159 = sphi 0, %s158
    %s173 = sphi 0, %s159
    %s177 = sphi 0, %s177
    %s179 = sphi 0, %s177
    %s180 = sphi 0, %s179
    %s194 = sphi 0, %s180
    %s198 = sphi 0, %s198
    %s200 = sphi 0, %s198
    %s201 = sphi 0, %s200
    %s215 = sphi 0, %s201
    %s219 = sphi 0, %s219
    %s221 = sphi 0, %s219
    %s222 = sphi 0, %s221
    %s236 = sphi 0, %s222
    %s240 = sphi 0, %s240
    %s242 = sphi 0, %s240
    %s243 = sphi 0, %s242
    %s257 = sphi 0, %s243
    %s263 = sphi 0, %s265
    %s266 = sphi 0, %s263
    %s267 = sphi 0, %s266
    %s283 = sphi 0, %s267
  $region4: #{tpu_custom_call.1} parent=0 // loop_header_branch
    %20 = sbr.rel (%p18) target = $region8
  $region5: #{tpu_custom_call.1} parent=0 // loop_body
    %s22 = ssub.s32 %s17, 1
    %s23 = ssub.s32 %s17, 2
    %s24 = sadd.s32 %s17, 1
    %s25 = ssub.s32 %s17, %s24
    %p26 = scmp.eq.s32.totalorder %s25, 0
    %s28 = sadd.s32 %s27, 1
    %s29 = scalar_select %p26, %s27, %s28
    %p32 = pneg %p26
    %p33 = scmp.eq.s32.totalorder %s17, 1
    %p34 = por %p32, %p33
    %p35 = scmp.ne.s32.totalorder %s27, %s30
    %p36 = scmp.eq.s32.totalorder %s17, 0
    %p37 = por %p35, %p36
    %p38 = scmp.ne.s32.totalorder %s27, %s30
    %p39 = scmp.eq.s32.totalorder %s22, 1
    %p40 = por %p38, %p39
    %p41 = scmp.ne.s32.totalorder %s30, %s31
    %p42 = scmp.eq.s32.totalorder %s22, 0
    %p43 = por %p41, %p42
    %p44 = scmp.ne.s32.totalorder %s30, %s31
    %p45 = scmp.eq.s32.totalorder %s23, 1
    %p46 = por %p44, %p45
    %p48 = scmp.ne.s32.totalorder %s31, %s47
    %p49 = scmp.eq.s32.totalorder %s23, 0
    %p50 = por %p48, %p49
    %s52 = sadd.s32 %s51, 1
    %p55 = scmp.eq.s32.totalorder %s17, 1
    %p56 = scmp.ne.s32.totalorder %s51, %s53
    %p57 = scmp.eq.s32.totalorder %s17, 0
    %p58 = por %p56, %p57
    %p59 = scmp.ne.s32.totalorder %s51, %s53
    %p60 = scmp.eq.s32.totalorder %s22, 1
    %p61 = por %p59, %p60
    %p62 = scmp.ne.s32.totalorder %s53, %s54
    %p63 = scmp.eq.s32.totalorder %s22, 0
    %p64 = por %p62, %p63
    %p65 = scmp.ne.s32.totalorder %s53, %s54
    %p66 = scmp.eq.s32.totalorder %s23, 1
    %p67 = por %p65, %p66
    %p69 = scmp.ne.s32.totalorder %s54, %s68
    %p70 = scmp.eq.s32.totalorder %s23, 0
    %p71 = por %p69, %p70
    %s73 = sadd.s32 %s72, 1
    %p76 = scmp.eq.s32.totalorder %s17, 1
    %p77 = scmp.ne.s32.totalorder %s72, %s74
    %p78 = scmp.eq.s32.totalorder %s17, 0
    %p79 = por %p77, %p78
    %p80 = scmp.ne.s32.totalorder %s72, %s74
    %p81 = scmp.eq.s32.totalorder %s22, 1
    %p82 = por %p80, %p81
    %p83 = scmp.ne.s32.totalorder %s74, %s75
    %p84 = scmp.eq.s32.totalorder %s22, 0
    %p85 = por %p83, %p84
    %p86 = scmp.ne.s32.totalorder %s74, %s75
    %p87 = scmp.eq.s32.totalorder %s23, 1
    %p88 = por %p86, %p87
    %p90 = scmp.ne.s32.totalorder %s75, %s89
    %p91 = scmp.eq.s32.totalorder %s23, 0
    %p92 = por %p90, %p91
    %s94 = sadd.s32 %s93, 1
    %p97 = scmp.eq.s32.totalorder %s17, 1
    %p98 = scmp.ne.s32.totalorder %s93, %s95
    %p99 = scmp.eq.s32.totalorder %s17, 0
    %p100 = por %p98, %p99
    %p101 = scmp.ne.s32.totalorder %s93, %s95
    %p102 = scmp.eq.s32.totalorder %s22, 1
    %p103 = por %p101, %p102
    %p104 = scmp.ne.s32.totalorder %s95, %s96
    %p105 = scmp.eq.s32.totalorder %s22, 0
    %p106 = por %p104, %p105
    %p107 = scmp.ne.s32.totalorder %s95, %s96
    %p108 = scmp.eq.s32.totalorder %s23, 1
    %p109 = por %p107, %p108
    %p111 = scmp.ne.s32.totalorder %s96, %s110
    %p112 = scmp.eq.s32.totalorder %s23, 0
    %p113 = por %p111, %p112
    %s115 = sadd.s32 %s114, 1
    %p118 = scmp.eq.s32.totalorder %s17, 1
    %p119 = scmp.ne.s32.totalorder %s114, %s116
    %p120 = scmp.eq.s32.totalorder %s17, 0
    %p121 = por %p119, %p120
    %p122 = scmp.ne.s32.totalorder %s114, %s116
    %p123 = scmp.eq.s32.totalorder %s22, 1
    %p124 = por %p122, %p123
    %p125 = scmp.ne.s32.totalorder %s116, %s117
    %p126 = scmp.eq.s32.totalorder %s22, 0
    %p127 = por %p125, %p126
    %p128 = scmp.ne.s32.totalorder %s116, %s117
    %p129 = scmp.eq.s32.totalorder %s23, 1
    %p130 = por %p128, %p129
    %p132 = scmp.ne.s32.totalorder %s117, %s131
    %p133 = scmp.eq.s32.totalorder %s23, 0
    %p134 = por %p132, %p133
    %s136 = sadd.s32 %s135, 1
    %p139 = scmp.eq.s32.totalorder %s17, 1
    %p140 = scmp.ne.s32.totalorder %s135, %s137
    %p141 = scmp.eq.s32.totalorder %s17, 0
    %p142 = por %p140, %p141
    %p143 = scmp.ne.s32.totalorder %s135, %s137
    %p144 = scmp.eq.s32.totalorder %s22, 1
    %p145 = por %p143, %p144
    %p146 = scmp.ne.s32.totalorder %s137, %s138
    %p147 = scmp.eq.s32.totalorder %s22, 0
    %p148 = por %p146, %p147
    %p149 = scmp.ne.s32.totalorder %s137, %s138
    %p150 = scmp.eq.s32.totalorder %s23, 1
    %p151 = por %p149, %p150
    %p153 = scmp.ne.s32.totalorder %s138, %s152
    %p154 = scmp.eq.s32.totalorder %s23, 0
    %p155 = por %p153, %p154
    %s157 = sadd.s32 %s156, 1
    %p160 = scmp.eq.s32.totalorder %s17, 1
    %p161 = scmp.ne.s32.totalorder %s156, %s158
    %p162 = scmp.eq.s32.totalorder %s17, 0
    %p163 = por %p161, %p162
    %p164 = scmp.ne.s32.totalorder %s156, %s158
    %p165 = scmp.eq.s32.totalorder %s22, 1
    %p166 = por %p164, %p165
    %p167 = scmp.ne.s32.totalorder %s158, %s159
    %p168 = scmp.eq.s32.totalorder %s22, 0
    %p169 = por %p167, %p168
    %p170 = scmp.ne.s32.totalorder %s158, %s159
    %p171 = scmp.eq.s32.totalorder %s23, 1
    %p172 = por %p170, %p171
    %p174 = scmp.ne.s32.totalorder %s159, %s173
    %p175 = scmp.eq.s32.totalorder %s23, 0
    %p176 = por %p174, %p175
    %s178 = sadd.s32 %s177, 1
    %p181 = scmp.eq.s32.totalorder %s17, 1
    %p182 = scmp.ne.s32.totalorder %s177, %s179
    %p183 = scmp.eq.s32.totalorder %s17, 0
    %p184 = por %p182, %p183
    %p185 = scmp.ne.s32.totalorder %s177, %s179
    %p186 = scmp.eq.s32.totalorder %s22, 1
    %p187 = por %p185, %p186
    %p188 = scmp.ne.s32.totalorder %s179, %s180
    %p189 = scmp.eq.s32.totalorder %s22, 0
    %p190 = por %p188, %p189
    %p191 = scmp.ne.s32.totalorder %s179, %s180
    %p192 = scmp.eq.s32.totalorder %s23, 1
    %p193 = por %p191, %p192
    %p195 = scmp.ne.s32.totalorder %s180, %s194
    %p196 = scmp.eq.s32.totalorder %s23, 0
    %p197 = por %p195, %p196
    %s199 = sadd.s32 %s198, 1
    %p202 = scmp.eq.s32.totalorder %s17, 1
    %p203 = scmp.ne.s32.totalorder %s198, %s200
    %p204 = scmp.eq.s32.totalorder %s17, 0
    %p205 = por %p203, %p204
    %p206 = scmp.ne.s32.totalorder %s198, %s200
    %p207 = scmp.eq.s32.totalorder %s22, 1
    %p208 = por %p206, %p207
    %p209 = scmp.ne.s32.totalorder %s200, %s201
    %p210 = scmp.eq.s32.totalorder %s22, 0
    %p211 = por %p209, %p210
    %p212 = scmp.ne.s32.totalorder %s200, %s201
    %p213 = scmp.eq.s32.totalorder %s23, 1
    %p214 = por %p212, %p213
    %p216 = scmp.ne.s32.totalorder %s201, %s215
    %p217 = scmp.eq.s32.totalorder %s23, 0
    %p218 = por %p216, %p217
    %s220 = sadd.s32 %s219, 1
    %p223 = scmp.eq.s32.totalorder %s17, 1
    %p224 = scmp.ne.s32.totalorder %s219, %s221
    %p225 = scmp.eq.s32.totalorder %s17, 0
    %p226 = por %p224, %p225
    %p227 = scmp.ne.s32.totalorder %s219, %s221
    %p228 = scmp.eq.s32.totalorder %s22, 1
    %p229 = por %p227, %p228
    %p230 = scmp.ne.s32.totalorder %s221, %s222
    %p231 = scmp.eq.s32.totalorder %s22, 0
    %p232 = por %p230, %p231
    %p233 = scmp.ne.s32.totalorder %s221, %s222
    %p234 = scmp.eq.s32.totalorder %s23, 1
    %p235 = por %p233, %p234
    %p237 = scmp.ne.s32.totalorder %s222, %s236
    %p238 = scmp.eq.s32.totalorder %s23, 0
    %p239 = por %p237, %p238
    %s241 = sadd.s32 %s240, 1
    %p244 = scmp.eq.s32.totalorder %s17, 1
    %p245 = scmp.ne.s32.totalorder %s240, %s242
    %p246 = scmp.eq.s32.totalorder %s17, 0
    %p247 = por %p245, %p246
    %p248 = scmp.ne.s32.totalorder %s240, %s242
    %p249 = scmp.eq.s32.totalorder %s22, 1
    %p250 = por %p248, %p249
    %p251 = scmp.ne.s32.totalorder %s242, %s243
    %p252 = scmp.eq.s32.totalorder %s22, 0
    %p253 = por %p251, %p252
    %p254 = scmp.ne.s32.totalorder %s242, %s243
    %p255 = scmp.eq.s32.totalorder %s23, 1
    %p256 = por %p254, %p255
    %p258 = scmp.ne.s32.totalorder %s243, %s257
    %p259 = scmp.eq.s32.totalorder %s23, 0
    %p260 = por %p258, %p259
    %s261 = ssub.s32 %s17, %s24
    %p262 = scmp.eq.s32.totalorder %s261, 0
    %s264 = sadd.s32 %s263, 1
    %s265 = scalar_select %p262, %s263, %s264
    %p268 = pneg %p262
    %p269 = scmp.eq.s32.totalorder %s17, 1
    %p270 = por %p268, %p269
    %p271 = scmp.ne.s32.totalorder %s263, %s266
    %p272 = scmp.eq.s32.totalorder %s17, 0
    %p273 = por %p271, %p272
    %p274 = scmp.ne.s32.totalorder %s263, %s266
    %p275 = scmp.eq.s32.totalorder %s22, 1
    %p276 = por %p274, %p275
    %p277 = scmp.ne.s32.totalorder %s266, %s267
    %p278 = scmp.eq.s32.totalorder %s22, 0
    %p279 = por %p277, %p278
    %p280 = scmp.ne.s32.totalorder %s266, %s267
    %p281 = scmp.eq.s32.totalorder %s23, 1
    %p282 = por %p280, %p281
    %p284 = scmp.ne.s32.totalorder %s267, %s283
    %p285 = scmp.eq.s32.totalorder %s23, 0
    %p286 = por %p284, %p285
    %p287 = scmp.le.s32.totalorder 1, %s17
    %p288 = scmp.lt.s32.totalorder %s17, 3
    %p289 = pnand %p287, %p288
    %p290 = pneg %p289
    // Predicated region
    $region9: #{tpu_custom_call.1} parent=5 // pred_check
      _
    $region10: #{tpu_custom_call.1} parent=5 // pred_check_branch
      %292 = sbr.rel (%p289) target = $region12
    $region11: #{tpu_custom_call.1} parent=5 // pred_region
      %s293 = ssub.s32 %s17, 1
      // Predicated region
      $region13: #{tpu_custom_call.1} parent=11 // pred_check
        %p294 = pneg %p64
      $region14: #{tpu_custom_call.1} parent=11 // pred_check_branch
        %296 = sbr.rel (%p294) target = $region16
      $region15: #{tpu_custom_call.1} parent=11 // pred_region
        _
      $region16: #{tpu_custom_call.1} parent=11 // pred_fallthru
        _
      // Predicated region
      $region17: #{tpu_custom_call.1} parent=11 // pred_check
        %p297 = pneg %p85
      $region18: #{tpu_custom_call.1} parent=11 // pred_check_branch
        %299 = sbr.rel (%p297) target = $region20
      $region19: #{tpu_custom_call.1} parent=11 // pred_region
        _
      $region20: #{tpu_custom_call.1} parent=11 // pred_fallthru
        _
      // Predicated region
      $region21: #{tpu_custom_call.1} parent=11 // pred_check
        %p300 = pneg %p106
      $region22: #{tpu_custom_call.1} parent=11 // pred_check_branch
        %302 = sbr.rel (%p300) target = $region24
      $region23: #{tpu_custom_call.1} parent=11 // pred_region
        _
      $region24: #{tpu_custom_call.1} parent=11 // pred_fallthru
        _
      // Predicated region
      $region25: #{tpu_custom_call.1} parent=11 // pred_check
        %p303 = pneg %p127
      $region26: #{tpu_custom_call.1} parent=11 // pred_check_branch
        %305 = sbr.rel (%p303) target = $region28
      $region27: #{tpu_custom_call.1} parent=11 // pred_region
        _
      $region28: #{tpu_custom_call.1} parent=11 // pred_fallthru
        _
      // Predicated region
      $region29: #{tpu_custom_call.1} parent=11 // pred_check
        %p306 = pneg %p148
      $region30: #{tpu_custom_call.1} parent=11 // pred_check_branch
        %308 = sbr.rel (%p306) target = $region32
      $region31: #{tpu_custom_call.1} parent=11 // pred_region
        _
      $region32: #{tpu_custom_call.1} parent=11 // pred_fallthru
        _
      // Predicated region
      $region33: #{tpu_custom_call.1} parent=11 // pred_check
        %p309 = pneg %p169
      $region34: #{tpu_custom_call.1} parent=11 // pred_check_branch
        %311 = sbr.rel (%p309) target = $region36
      $region35: #{tpu_custom_call.1} parent=11 // pred_region
        _
      $region36: #{tpu_custom_call.1} parent=11 // pred_fallthru
        _
      // Predicated region
      $region37: #{tpu_custom_call.1} parent=11 // pred_check
        %p312 = pneg %p190
      $region38: #{tpu_custom_call.1} parent=11 // pred_check_branch
        %314 = sbr.rel (%p312) target = $region40
      $region39: #{tpu_custom_call.1} parent=11 // pred_region
        _
      $region40: #{tpu_custom_call.1} parent=11 // pred_fallthru
        _
      // Predicated region
      $region41: #{tpu_custom_call.1} parent=11 // pred_check
        %p315 = pneg %p211
      $region42: #{tpu_custom_call.1} parent=11 // pred_check_branch
        %317 = sbr.rel (%p315) target = $region44
      $region43: #{tpu_custom_call.1} parent=11 // pred_region
        _
      $region44: #{tpu_custom_call.1} parent=11 // pred_fallthru
        _
      // Predicated region
      $region45: #{tpu_custom_call.1} parent=11 // pred_check
        %p318 = pneg %p232
      $region46: #{tpu_custom_call.1} parent=11 // pred_check_branch
        %320 = sbr.rel (%p318) target = $region48
      $region47: #{tpu_custom_call.1} parent=11 // pred_region
        _
      $region48: #{tpu_custom_call.1} parent=11 // pred_fallthru
        _
      // Predicated region
      $region49: #{tpu_custom_call.1} parent=11 // pred_check
        %p321 = pneg %p253
      $region50: #{tpu_custom_call.1} parent=11 // pred_check_branch
        %323 = sbr.rel (%p321) target = $region52
      $region51: #{tpu_custom_call.1} parent=11 // pred_region
        _
      $region52: #{tpu_custom_call.1} parent=11 // pred_fallthru
        _
    $region12: #{tpu_custom_call.1} parent=5 // pred_fallthru
      _
    %p324 = scmp.lt.s32.totalorder %s17, 2
    // Predicated region
    $region53: #{tpu_custom_call.1} parent=5 // pred_check
      %p325 = pneg %p324
    $region54: #{tpu_custom_call.1} parent=5 // pred_check_branch
      %327 = sbr.rel (%p325) target = $region56
    $region55: #{tpu_custom_call.1} parent=5 // pred_region
      // Predicated region
      $region57: #{tpu_custom_call.1} parent=55 // pred_check
        %p328 = pneg %p37
      $region58: #{tpu_custom_call.1} parent=55 // pred_check_branch
        %330 = sbr.rel (%p328) target = $region60
      $region59: #{tpu_custom_call.1} parent=55 // pred_region
        %p331 = scmp.lt.s32.totalorder %s17, 1
        %s332 = scalar_select %p331, %s17, 1
        %s333 = smul.addr %s332, 36
        %s334 = smul.addr %s333, 4
        %s335 = scalar_lea.vmem %s0, %s334
      $region60: #{tpu_custom_call.1} parent=55 // pred_fallthru
        _
    $region56: #{tpu_custom_call.1} parent=5 // pred_fallthru
      _
    %p336 = scmp.le.s32.totalorder 1, %s17
    %p337 = scmp.lt.s32.totalorder %s17, 3
    %p338 = pnand %p336, %p337
    %p339 = pneg %p338
    // Predicated region
    $region61: #{tpu_custom_call.1} parent=5 // pred_check
      _
    $region62: #{tpu_custom_call.1} parent=5 // pred_check_branch
      %341 = sbr.rel (%p338) target = $region64
    $region63: #{tpu_custom_call.1} parent=5 // pred_region
      %s342 = ssub.s32 %s17, 1
      %p343 = scmp.lt.s32.totalorder %s22, 1
      %s344 = scalar_select %p343, %s22, 1
      %s345 = smul.addr %s344, 36
      %s346 = smul.addr %s345, 4
      %s347 = scalar_lea.vmem %s0, %s346
      %p348 = pneg %p43
      %p349 = pneg %p40
      %p350 = pneg %p64
      %p351 = pneg %p61
      %p352 = pneg %p85
      %p353 = pneg %p82
      %p354 = pneg %p106
      %p355 = pneg %p103
      %p356 = pneg %p127
      %p357 = pneg %p124
      %p358 = pneg %p148
      %p359 = pneg %p145
      %p360 = pneg %p169
      %p361 = pneg %p166
      %p362 = pneg %p190
      %p363 = pneg %p187
      %p364 = pneg %p211
      %p365 = pneg %p208
      %p366 = pneg %p232
      %p367 = pneg %p229
      %p368 = pneg %p253
      %p369 = pneg %p250
      %p370 = pneg %p279
      %p371 = pneg %p276
      %p372 = scmp.lt.s32.totalorder %s22, 1
      %s373 = scalar_select %p372, %s22, 1
      %s374 = smul.addr %s373, 36
      %s375 = smul.addr %s374, 4
      %s376 = scalar_lea.vmem %s11, %s375
      %p377 = scmp.lt.s32.totalorder %s22, 1
      %s378 = scalar_select %p377, %s22, 1
      %s379 = smul.addr %s378, 36
      %s380 = smul.addr %s379, 4
      %s381 = scalar_lea.vmem %s0, %s380
      %p382 = scmp.lt.s32.totalorder %s22, 1
      %s383 = scalar_select %p382, %s22, 1
      %s384 = smul.addr %s383, 36
      %s385 = smul.addr %s384, 4
      %s386 = scalar_lea.vmem %s11, %s385
      %v388 = vld [vmem:[%s381] sm:$0xf]
      %v389 = vld [vmem:[%s381 + $0x4] sm:$0xf]
      %v390 = vld [vmem:[%s381 + $0x8] sm:$0xf]
      %v391 = vld [vmem:[%s381 + $0xc] sm:$0xf]
      %v392 = vld [vmem:[%s381 + $0x10] sm:$0xf]
      %v393 = vld [vmem:[%s381 + $0x14] sm:$0xf]
      %v394 = vld [vmem:[%s381 + $0x18] sm:$0xf]
      %v395 = vld [vmem:[%s381 + $0x1c] sm:$0xf]
      %v396 = vld [vmem:[%s381 + $0x20] sm:$0xf]
      %v397 = vld [vmem:[%s381 + $0x24] sm:$0xf]
      %v398 = vld [vmem:[%s381 + $0x28] sm:$0xf]
      %v399 = vld [vmem:[%s381 + $0x2c] sm:$0xf]
      %v400 = vld [vmem:[%s381 + $0x30] sm:$0xf]
      %v401 = vld [vmem:[%s381 + $0x34] sm:$0xf]
      %v402 = vld [vmem:[%s381 + $0x38] sm:$0xf]
      %v403 = vld [vmem:[%s381 + $0x3c] sm:$0xf]
      %v404 = vld [vmem:[%s381 + $0x40] sm:$0xf]
      %v405 = vld [vmem:[%s381 + $0x44] sm:$0xf]
      %v406 = vld [vmem:[%s381 + $0x48] sm:$0xf]
      %v407 = vld [vmem:[%s381 + $0x4c] sm:$0xf]
      %v408 = vld [vmem:[%s381 + $0x50] sm:$0xf]
      %v409 = vld [vmem:[%s381 + $0x54] sm:$0xf]
      %v410 = vld [vmem:[%s381 + $0x58] sm:$0xf]
      %v411 = vld [vmem:[%s381 + $0x5c] sm:$0xf]
      %v412 = vld [vmem:[%s381 + $0x60] sm:$0xf]
      %v413 = vld [vmem:[%s381 + $0x64] sm:$0xf]
      %v414 = vld [vmem:[%s381 + $0x68] sm:$0xf]
      %v415 = vld [vmem:[%s381 + $0x6c] sm:$0xf]
      %v416 = vld [vmem:[%s381 + $0x70] sm:$0xf]
      %v417 = vld [vmem:[%s381 + $0x74] sm:$0xf]
      %v418 = vld [vmem:[%s381 + $0x78] sm:$0xf]
      %v419 = vld [vmem:[%s381 + $0x7c] sm:$0xf]
      %v420 = vld [vmem:[%s381 + $0x80] sm:$0xf]
      %v421 = vld [vmem:[%s381 + $0x84] sm:$0xf]
      %v422 = vld [vmem:[%s381 + $0x88] sm:$0xf]
      %v423 = vld [vmem:[%s381 + $0x8c] sm:$0xf]
      %v424 = vld [vmem:[%s2] sm:$0xf]
      %v425 = vld [vmem:[%s2 + $0x4] sm:$0xf]
      %v426 = vld [vmem:[%s2 + $0x8] sm:$0xf]
      %v427 = vld [vmem:[%s2 + $0xc] sm:$0xf]
      %v464 = vunpack.c.l.b16 %v388
      %v465 = vunpack.c.l.b16 %v389
      %v466 = vunpack.c.l.b16 %v390
      %v467 = vunpack.c.l.b16 %v391
      %v468 = vunpack.c.l.b16 %v392
      %v469 = vunpack.c.l.b16 %v393
      %v470 = vunpack.c.l.b16 %v394
      %v471 = vunpack.c.l.b16 %v395
      %v472 = vunpack.c.l.b16 %v396
      %v473 = vunpack.c.l.b16 %v397
      %v474 = vunpack.c.l.b16 %v398
      %v475 = vunpack.c.l.b16 %v399
      %v476 = vunpack.c.l.b16 %v400
      %v477 = vunpack.c.l.b16 %v401
      %v478 = vunpack.c.l.b16 %v402
      %v479 = vunpack.c.l.b16 %v403
      %v480 = vunpack.c.l.b16 %v404
      %v481 = vunpack.c.l.b16 %v405
      %v482 = vunpack.c.l.b16 %v406
      %v483 = vunpack.c.l.b16 %v407
      %v484 = vunpack.c.l.b16 %v408
      %v485 = vunpack.c.l.b16 %v409
      %v486 = vunpack.c.l.b16 %v410
      %v487 = vunpack.c.l.b16 %v411
      %v488 = vunpack.c.l.b16 %v412
      %v489 = vunpack.c.l.b16 %v413
      %v490 = vunpack.c.l.b16 %v414
      %v491 = vunpack.c.l.b16 %v415
      %v492 = vunpack.c.l.b16 %v416
      %v493 = vunpack.c.l.b16 %v417
      %v494 = vunpack.c.l.b16 %v418
      %v495 = vunpack.c.l.b16 %v419
      %v496 = vunpack.c.l.b16 %v420
      %v497 = vunpack.c.l.b16 %v421
      %v498 = vunpack.c.l.b16 %v422
      %v499 = vunpack.c.l.b16 %v423
      %v500 = vpack.c.b16 %v465, %v464
      %v501 = vpack.c.b16 %v467, %v466
      %v502 = vpack.c.b16 %v469, %v468
      %v503 = vpack.c.b16 %v471, %v470
      %v504 = vpack.c.b16 %v473, %v472
      %v505 = vpack.c.b16 %v475, %v474
      %v506 = vpack.c.b16 %v477, %v476
      %v507 = vpack.c.b16 %v479, %v478
      %v508 = vpack.c.b16 %v481, %v480
      %v509 = vpack.c.b16 %v483, %v482
      %v510 = vpack.c.b16 %v485, %v484
      %v511 = vpack.c.b16 %v487, %v486
      %v512 = vpack.c.b16 %v489, %v488
      %v513 = vpack.c.b16 %v491, %v490
      %v514 = vpack.c.b16 %v493, %v492
      %v515 = vpack.c.b16 %v495, %v494
      %v516 = vpack.c.b16 %v497, %v496
      %v517 = vpack.c.b16 %v499, %v498
      %v522 = vunpack.c.l.b16 %v424
      %v523 = vunpack.c.l.b16 %v425
      %v524 = vunpack.c.l.b16 %v426
      %v525 = vunpack.c.l.b16 %v427
      %v526 = vpack.c.b16 %v523, %v522
      %v527 = vpack.c.b16 %v525, %v524
      %vm530 = vcmask 261120
      %v532 = vsel %vm530, %v500, 0
      %v535 = vsel %vm530, %v501, 0
      %v538 = vsel %vm530, %v502, 0
      %v541 = vsel %vm530, %v503, 0
      %v544 = vsel %vm530, %v504, 0
      %v547 = vsel %vm530, %v505, 0
      %v550 = vsel %vm530, %v506, 0
      %v553 = vsel %vm530, %v507, 0
      %v556 = vsel %vm530, %v508, 0
      %v559 = vsel %vm530, %v509, 0
      %v562 = vsel %vm530, %v510, 0
      %v565 = vsel %vm530, %v511, 0
      %v568 = vsel %vm530, %v512, 0
      %v571 = vsel %vm530, %v513, 0
      %v574 = vsel %vm530, %v514, 0
      %v577 = vsel %vm530, %v515, 0
      %v580 = vsel %vm530, %v516, 0
      %v583 = vsel %vm530, %v517, 0
      %585 = vmatprep.subr.bf16.mxu0 0
      %586 = vmatpush1.bf16.msra.mxu0 0
      %587 = vmatprep.subr.bf16.mxu0 0
      %588 = vmatpush1.bf16.msra.mxu0 0
      %589 = vmatprep.subr.bf16.mxu0 0
      %590 = vmatpush1.bf16.msra.mxu0 0
      %591 = vmatprep.subr.bf16.mxu0 0
      %592 = vmatpush1.bf16.msra.mxu0 0
      %593 = vmatprep.subr.bf16.mxu0 0
      %594 = vmatpush1.bf16.msra.mxu0 0
      %595 = vmatprep.subr.bf16.mxu0 0
      %596 = vmatpush1.bf16.msra.mxu0 0
      %597 = vmatprep.subr.bf16.mxu0 0
      %598 = vmatpush1.bf16.msra.mxu0 %v527
      %599 = vmatprep.subr.bf16.mxu0 0
      %600 = vmatpush1.bf16.msra.mxu0 %v526
      %601 = vmatprep.subr.bf16.mxu0 0
      %602 = vmatpush2.bf16.msra.mxu0 0
      %603 = vmatprep.subr.bf16.mxu0 0
      %604 = vmatpush2.bf16.msra.mxu0 0
      %605 = vmatprep.subr.bf16.mxu0 0
      %606 = vmatpush2.bf16.msra.mxu0 0
      %607 = vmatprep.subr.bf16.mxu0 0
      %608 = vmatpush2.bf16.msra.mxu0 0
      %609 = vmatprep.subr.bf16.mxu0 0
      %610 = vmatpush2.bf16.msra.mxu0 0
      %611 = vmatprep.subr.bf16.mxu0 0
      %612 = vmatpush2.bf16.msra.mxu0 0
      %613 = vmatprep.subr.bf16.mxu0 0
      %614 = vmatpush2.bf16.msra.mxu0 0
      %615 = vmatprep.subr.bf16.mxu0 0
      %616 = vmatpush2.bf16.msra.mxu0 0
      %617 = vmatprep.mubr.bf16.mxu0 0
      %618 = vmatmul.mubr.bf16.gmra.mxu0 %v532
      %v619 = vpop.f32.mrf.mxu0
      %v620 = vadd.f32 0.0, %v619
      %v621 = vpop.f32.mrf.mxu0
      %v622 = vpop.f32.mrf.mxu0
      %v623 = vadd.f32 0.0, %v622
      %v624 = vpop.f32.mrf.mxu0
      %625 = vmatprep.mubr.bf16.mxu0 0
      %626 = vmatmul.mubr.bf16.gmra.mxu0 %v535
      %v627 = vpop.f32.mrf.mxu0
      %v628 = vadd.f32 0.0, %v627
      %v629 = vpop.f32.mrf.mxu0
      %v630 = vpop.f32.mrf.mxu0
      %v631 = vadd.f32 0.0, %v630
      %v632 = vpop.f32.mrf.mxu0
      %633 = vmatprep.mubr.bf16.mxu0 0
      %634 = vmatmul.mubr.bf16.gmra.mxu0 %v538
      %v635 = vpop.f32.mrf.mxu0
      %v636 = vadd.f32 0.0, %v635
      %v637 = vpop.f32.mrf.mxu0
      %v638 = vpop.f32.mrf.mxu0
      %v639 = vadd.f32 0.0, %v638
      %v640 = vpop.f32.mrf.mxu0
      %641 = vmatprep.mubr.bf16.mxu0 0
      %642 = vmatmul.mubr.bf16.gmra.mxu0 %v541
      %v643 = vpop.f32.mrf.mxu0
      %v644 = vadd.f32 0.0, %v643
      %v645 = vpop.f32.mrf.mxu0
      %v646 = vpop.f32.mrf.mxu0
      %v647 = vadd.f32 0.0, %v646
      %v648 = vpop.f32.mrf.mxu0
      %649 = vmatprep.mubr.bf16.mxu0 0
      %650 = vmatmul.mubr.bf16.gmra.mxu0 %v544
      %v651 = vpop.f32.mrf.mxu0
      %v652 = vadd.f32 0.0, %v651
      %v653 = vpop.f32.mrf.mxu0
      %v654 = vpop.f32.mrf.mxu0
      %v655 = vadd.f32 0.0, %v654
      %v656 = vpop.f32.mrf.mxu0
      %657 = vmatprep.mubr.bf16.mxu0 0
      %658 = vmatmul.mubr.bf16.gmra.mxu0 %v547
      %v659 = vpop.f32.mrf.mxu0
      %v660 = vadd.f32 0.0, %v659
      %v661 = vpop.f32.mrf.mxu0
      %v662 = vpop.f32.mrf.mxu0
      %v663 = vadd.f32 0.0, %v662
      %v664 = vpop.f32.mrf.mxu0
      %665 = vmatprep.mubr.bf16.mxu0 0
      %666 = vmatmul.mubr.bf16.gmra.mxu0 %v550
      %v667 = vpop.f32.mrf.mxu0
      %v668 = vadd.f32 0.0, %v667
      %v669 = vpop.f32.mrf.mxu0
      %v670 = vpop.f32.mrf.mxu0
      %v671 = vadd.f32 0.0, %v670
      %v672 = vpop.f32.mrf.mxu0
      %673 = vmatprep.mubr.bf16.mxu0 0
      %674 = vmatmul.mubr.bf16.gmra.mxu0 %v553
      %v675 = vpop.f32.mrf.mxu0
      %v676 = vadd.f32 0.0, %v675
      %v677 = vpop.f32.mrf.mxu0
      %v678 = vpop.f32.mrf.mxu0
      %v679 = vadd.f32 0.0, %v678
      %v680 = vpop.f32.mrf.mxu0
      %681 = vmatprep.mubr.bf16.mxu0 0
      %682 = vmatmul.mubr.bf16.gmra.mxu0 %v556
      %v683 = vpop.f32.mrf.mxu0
      %v684 = vadd.f32 0.0, %v683
      %v685 = vpop.f32.mrf.mxu0
      %v686 = vpop.f32.mrf.mxu0
      %v687 = vadd.f32 0.0, %v686
      %v688 = vpop.f32.mrf.mxu0
      %689 = vmatprep.mubr.bf16.mxu0 0
      %690 = vmatmul.mubr.bf16.gmra.mxu0 %v559
      %v691 = vpop.f32.mrf.mxu0
      %v692 = vadd.f32 0.0, %v691
      %v693 = vpop.f32.mrf.mxu0
      %v694 = vpop.f32.mrf.mxu0
      %v695 = vadd.f32 0.0, %v694
      %v696 = vpop.f32.mrf.mxu0
      %697 = vmatprep.mubr.bf16.mxu0 0
      %698 = vmatmul.mubr.bf16.gmra.mxu0 %v562
      %v699 = vpop.f32.mrf.mxu0
      %v700 = vadd.f32 0.0, %v699
      %v701 = vpop.f32.mrf.mxu0
      %v702 = vpop.f32.mrf.mxu0
      %v703 = vadd.f32 0.0, %v702
      %v704 = vpop.f32.mrf.mxu0
      %705 = vmatprep.mubr.bf16.mxu0 0
      %706 = vmatmul.mubr.bf16.gmra.mxu0 %v565
      %v707 = vpop.f32.mrf.mxu0
      %v708 = vadd.f32 0.0, %v707
      %v709 = vpop.f32.mrf.mxu0
      %v710 = vpop.f32.mrf.mxu0
      %v711 = vadd.f32 0.0, %v710
      %v712 = vpop.f32.mrf.mxu0
      %713 = vmatprep.mubr.bf16.mxu0 0
      %714 = vmatmul.mubr.bf16.gmra.mxu0 %v568
      %v715 = vpop.f32.mrf.mxu0
      %v716 = vadd.f32 0.0, %v715
      %v717 = vpop.f32.mrf.mxu0
      %v718 = vpop.f32.mrf.mxu0
      %v719 = vadd.f32 0.0, %v718
      %v720 = vpop.f32.mrf.mxu0
      %721 = vmatprep.mubr.bf16.mxu0 0
      %722 = vmatmul.mubr.bf16.gmra.mxu0 %v571
      %v723 = vpop.f32.mrf.mxu0
      %v724 = vadd.f32 0.0, %v723
      %v725 = vpop.f32.mrf.mxu0
      %v726 = vpop.f32.mrf.mxu0
      %v727 = vadd.f32 0.0, %v726
      %v728 = vpop.f32.mrf.mxu0
      %729 = vmatprep.mubr.bf16.mxu0 0
      %730 = vmatmul.mubr.bf16.gmra.mxu0 %v574
      %v731 = vpop.f32.mrf.mxu0
      %v732 = vadd.f32 0.0, %v731
      %v733 = vpop.f32.mrf.mxu0
      %v734 = vpop.f32.mrf.mxu0
      %v735 = vadd.f32 0.0, %v734
      %v736 = vpop.f32.mrf.mxu0
      %737 = vmatprep.mubr.bf16.mxu0 0
      %738 = vmatmul.mubr.bf16.gmra.mxu0 %v577
      %v739 = vpop.f32.mrf.mxu0
      %v740 = vadd.f32 0.0, %v739
      %v741 = vpop.f32.mrf.mxu0
      %v742 = vpop.f32.mrf.mxu0
      %v743 = vadd.f32 0.0, %v742
      %v744 = vpop.f32.mrf.mxu0
      %745 = vmatprep.mubr.bf16.mxu0 0
      %746 = vmatmul.mubr.bf16.gmra.mxu0 %v580
      %v747 = vpop.f32.mrf.mxu0
      %v748 = vadd.f32 0.0, %v747
      %v749 = vpop.f32.mrf.mxu0
      %v750 = vpop.f32.mrf.mxu0
      %v751 = vadd.f32 0.0, %v750
      %v752 = vpop.f32.mrf.mxu0
      %753 = vmatprep.mubr.bf16.mxu0 0
      %754 = vmatmul.mubr.bf16.gmra.mxu0 %v583
      %v755 = vpop.f32.mrf.mxu0
      %v756 = vadd.f32 0.0, %v755
      %v757 = vpop.f32.mrf.mxu0
      %v758 = vpop.f32.mrf.mxu0
      %v759 = vadd.f32 0.0, %v758
      %v760 = vpop.f32.mrf.mxu0
      %761 = vdwg.mxu0
      %v762 = vld [vmem:[%s3] sm:$0x1]
      %v764 = vlaneseq
      %v765 = vshrl.u32 %v764, 7
      %v766 = vsub.s32 0, %v765
      %v767 = vrot.slane %v762, %v766
      %v769 = vmul.f32 %v620, %v767
      %v770 = vmul.f32 %v623, %v767
      %v771 = vmul.f32 %v628, %v767
      %v772 = vmul.f32 %v631, %v767
      %v773 = vmul.f32 %v636, %v767
      %v774 = vmul.f32 %v639, %v767
      %v775 = vmul.f32 %v644, %v767
      %v776 = vmul.f32 %v647, %v767
      %v777 = vmul.f32 %v652, %v767
      %v778 = vmul.f32 %v655, %v767
      %v779 = vmul.f32 %v660, %v767
      %v780 = vmul.f32 %v663, %v767
      %v781 = vmul.f32 %v668, %v767
      %v782 = vmul.f32 %v671, %v767
      %v783 = vmul.f32 %v676, %v767
      %v784 = vmul.f32 %v679, %v767
      %v785 = vmul.f32 %v684, %v767
      %v786 = vmul.f32 %v687, %v767
      %v787 = vmul.f32 %v692, %v767
      %v788 = vmul.f32 %v695, %v767
      %v789 = vmul.f32 %v700, %v767
      %v790 = vmul.f32 %v703, %v767
      %v791 = vmul.f32 %v708, %v767
      %v792 = vmul.f32 %v711, %v767
      %v793 = vmul.f32 %v716, %v767
      %v794 = vmul.f32 %v719, %v767
      %v795 = vmul.f32 %v724, %v767
      %v796 = vmul.f32 %v727, %v767
      %v797 = vmul.f32 %v732, %v767
      %v798 = vmul.f32 %v735, %v767
      %v799 = vmul.f32 %v740, %v767
      %v800 = vmul.f32 %v743, %v767
      %v801 = vmul.f32 %v748, %v767
      %v802 = vmul.f32 %v751, %v767
      %v803 = vmul.f32 %v756, %v767
      %v804 = vmul.f32 %v759, %v767
      %v805 = vld [vmem:[%s4] sm:$0x1]
      %v807 = vlaneseq
      %v808 = vshrl.u32 %v807, 7
      %v809 = vsub.s32 0, %v808
      %v810 = vrot.slane %v805, %v809
      %v812 = vadd.f32 %v769, %v810
      %v813 = vadd.f32 %v770, %v810
      %v814 = vadd.f32 %v771, %v810
      %v815 = vadd.f32 %v772, %v810
      %v816 = vadd.f32 %v773, %v810
      %v817 = vadd.f32 %v774, %v810
      %v818 = vadd.f32 %v775, %v810
      %v819 = vadd.f32 %v776, %v810
      %v820 = vadd.f32 %v777, %v810
      %v821 = vadd.f32 %v778, %v810
      %v822 = vadd.f32 %v779, %v810
      %v823 = vadd.f32 %v780, %v810
      %v824 = vadd.f32 %v781, %v810
      %v825 = vadd.f32 %v782, %v810
      %v826 = vadd.f32 %v783, %v810
      %v827 = vadd.f32 %v784, %v810
      %v828 = vadd.f32 %v785, %v810
      %v829 = vadd.f32 %v786, %v810
      %v830 = vadd.f32 %v787, %v810
      %v831 = vadd.f32 %v788, %v810
      %v832 = vadd.f32 %v789, %v810
      %v833 = vadd.f32 %v790, %v810
      %v834 = vadd.f32 %v791, %v810
      %v835 = vadd.f32 %v792, %v810
      %v836 = vadd.f32 %v793, %v810
      %v837 = vadd.f32 %v794, %v810
      %v838 = vadd.f32 %v795, %v810
      %v839 = vadd.f32 %v796, %v810
      %v840 = vadd.f32 %v797, %v810
      %v841 = vadd.f32 %v798, %v810
      %v842 = vadd.f32 %v799, %v810
      %v843 = vadd.f32 %v800, %v810
      %v844 = vadd.f32 %v801, %v810
      %v845 = vadd.f32 %v802, %v810
      %v846 = vadd.f32 %v803, %v810
      %v847 = vadd.f32 %v804, %v810
      %v848 = vmax.f32 %v812, 0.0
      %v849 = vmax.f32 %v813, 0.0
      %v850 = vmax.f32 %v814, 0.0
      %v851 = vmax.f32 %v815, 0.0
      %v852 = vmax.f32 %v816, 0.0
      %v853 = vmax.f32 %v817, 0.0
      %v854 = vmax.f32 %v818, 0.0
      %v855 = vmax.f32 %v819, 0.0
      %v856 = vmax.f32 %v820, 0.0
      %v857 = vmax.f32 %v821, 0.0
      %v858 = vmax.f32 %v822, 0.0
      %v859 = vmax.f32 %v823, 0.0
      %v860 = vmax.f32 %v824, 0.0
      %v861 = vmax.f32 %v825, 0.0
      %v862 = vmax.f32 %v826, 0.0
      %v863 = vmax.f32 %v827, 0.0
      %v864 = vmax.f32 %v828, 0.0
      %v865 = vmax.f32 %v829, 0.0
      %v866 = vmax.f32 %v830, 0.0
      %v867 = vmax.f32 %v831, 0.0
      %v868 = vmax.f32 %v832, 0.0
      %v869 = vmax.f32 %v833, 0.0
      %v870 = vmax.f32 %v834, 0.0
      %v871 = vmax.f32 %v835, 0.0
      %v872 = vmax.f32 %v836, 0.0
      %v873 = vmax.f32 %v837, 0.0
      %v874 = vmax.f32 %v838, 0.0
      %v875 = vmax.f32 %v839, 0.0
      %v876 = vmax.f32 %v840, 0.0
      %v877 = vmax.f32 %v841, 0.0
      %v878 = vmax.f32 %v842, 0.0
      %v879 = vmax.f32 %v843, 0.0
      %v880 = vmax.f32 %v844, 0.0
      %v881 = vmax.f32 %v845, 0.0
      %v882 = vmax.f32 %v846, 0.0
      %v883 = vmax.f32 %v847, 0.0
      %v884 = vld [vmem:[%s1] sm:$0xff]
      %v885 = vld [vmem:[%s1 + $0x8] sm:$0xff]
      %v886 = vld [vmem:[%s1 + $0x10] sm:$0xff]
      %v887 = vld [vmem:[%s1 + $0x18] sm:$0xff]
      %v888 = vld [vmem:[%s1 + $0x20] sm:$0xff]
      %v889 = vld [vmem:[%s1 + $0x28] sm:$0xff]
      %v890 = vld [vmem:[%s1 + $0x30] sm:$0xff]
      %v891 = vld [vmem:[%s1 + $0x38] sm:$0xff]
      %v892 = vld [vmem:[%s1 + $0x40] sm:$0xff]
      %v893 = vld [vmem:[%s1 + $0x48] sm:$0xff]
      %v894 = vld [vmem:[%s1 + $0x50] sm:$0xff]
      %v895 = vld [vmem:[%s1 + $0x58] sm:$0xff]
      %v896 = vld [vmem:[%s1 + $0x60] sm:$0xff]
      %v897 = vld [vmem:[%s1 + $0x68] sm:$0xff]
      %v898 = vld [vmem:[%s1 + $0x70] sm:$0xff]
      %v899 = vld [vmem:[%s1 + $0x78] sm:$0xff]
      %v900 = vld [vmem:[%s1 + $0x80] sm:$0xff]
      %v901 = vld [vmem:[%s1 + $0x88] sm:$0xff]
      %v902 = vld [vmem:[%s1 + $0x90] sm:$0xff]
      %v903 = vld [vmem:[%s1 + $0x98] sm:$0xff]
      %v904 = vld [vmem:[%s1 + $0xa0] sm:$0xff]
      %v905 = vld [vmem:[%s1 + $0xa8] sm:$0xff]
      %v906 = vld [vmem:[%s1 + $0xb0] sm:$0xff]
      %v907 = vld [vmem:[%s1 + $0xb8] sm:$0xff]
      %v908 = vld [vmem:[%s1 + $0xc0] sm:$0xff]
      %v909 = vld [vmem:[%s1 + $0xc8] sm:$0xff]
      %v910 = vld [vmem:[%s1 + $0xd0] sm:$0xff]
      %v911 = vld [vmem:[%s1 + $0xd8] sm:$0xff]
      %v912 = vld [vmem:[%s1 + $0xe0] sm:$0xff]
      %v913 = vld [vmem:[%s1 + $0xe8] sm:$0xff]
      %v914 = vld [vmem:[%s1 + $0xf0] sm:$0xff]
      %v915 = vld [vmem:[%s1 + $0xf8] sm:$0xff]
      %v916 = vld [vmem:[%s1 + $0x100] sm:$0xff]
      %v917 = vld [vmem:[%s1 + $0x108] sm:$0xff]
      %v918 = vld [vmem:[%s1 + $0x110] sm:$0xff]
      %v919 = vld [vmem:[%s1 + $0x118] sm:$0xff]
      %921 = vset.pattern.permute.xlu0 0
      %922 = vperm.xlu0 %921, %v884
      %v923 = vpop.permute.xlu0 %922
      %926 = vset.pattern.permute.xlu0 0
      %927 = vperm.xlu0 %926, %v885
      %v928 = vpop.permute.xlu0 %927
      %931 = vset.pattern.permute.xlu0 0
      %932 = vperm.xlu0 %931, %v886
      %v933 = vpop.permute.xlu0 %932
      %936 = vset.pattern.permute.xlu0 0
      %937 = vperm.xlu0 %936, %v887
      %v938 = vpop.permute.xlu0 %937
      %941 = vset.pattern.permute.xlu0 0
      %942 = vperm.xlu0 %941, %v888
      %v943 = vpop.permute.xlu0 %942
      %946 = vset.pattern.permute.xlu0 0
      %947 = vperm.xlu0 %946, %v889
      %v948 = vpop.permute.xlu0 %947
      %951 = vset.pattern.permute.xlu0 0
      %952 = vperm.xlu0 %951, %v890
      %v953 = vpop.permute.xlu0 %952
      %956 = vset.pattern.permute.xlu0 0
      %957 = vperm.xlu0 %956, %v891
      %v958 = vpop.permute.xlu0 %957
      %961 = vset.pattern.permute.xlu0 0
      %962 = vperm.xlu0 %961, %v892
      %v963 = vpop.permute.xlu0 %962
      %966 = vset.pattern.permute.xlu0 0
      %967 = vperm.xlu0 %966, %v893
      %v968 = vpop.permute.xlu0 %967
      %971 = vset.pattern.permute.xlu0 0
      %972 = vperm.xlu0 %971, %v894
      %v973 = vpop.permute.xlu0 %972
      %976 = vset.pattern.permute.xlu0 0
      %977 = vperm.xlu0 %976, %v895
      %v978 = vpop.permute.xlu0 %977
      %981 = vset.pattern.permute.xlu0 0
      %982 = vperm.xlu0 %981, %v896
      %v983 = vpop.permute.xlu0 %982
      %986 = vset.pattern.permute.xlu0 0
      %987 = vperm.xlu0 %986, %v897
      %v988 = vpop.permute.xlu0 %987
      %991 = vset.pattern.permute.xlu0 0
      %992 = vperm.xlu0 %991, %v898
      %v993 = vpop.permute.xlu0 %992
      %996 = vset.pattern.permute.xlu0 0
      %997 = vperm.xlu0 %996, %v899
      %v998 = vpop.permute.xlu0 %997
      %1001 = vset.pattern.permute.xlu0 0
      %1002 = vperm.xlu0 %1001, %v900
      %v1003 = vpop.permute.xlu0 %1002
      %1006 = vset.pattern.permute.xlu0 0
      %1007 = vperm.xlu0 %1006, %v901
      %v1008 = vpop.permute.xlu0 %1007
      %1011 = vset.pattern.permute.xlu0 0
      %1012 = vperm.xlu0 %1011, %v902
      %v1013 = vpop.permute.xlu0 %1012
      %1016 = vset.pattern.permute.xlu0 0
      %1017 = vperm.xlu0 %1016, %v903
      %v1018 = vpop.permute.xlu0 %1017
      %1021 = vset.pattern.permute.xlu0 0
      %1022 = vperm.xlu0 %1021, %v904
      %v1023 = vpop.permute.xlu0 %1022
      %1026 = vset.pattern.permute.xlu0 0
      %1027 = vperm.xlu0 %1026, %v905
      %v1028 = vpop.permute.xlu0 %1027
      %1031 = vset.pattern.permute.xlu0 0
      %1032 = vperm.xlu0 %1031, %v906
      %v1033 = vpop.permute.xlu0 %1032
      %1036 = vset.pattern.permute.xlu0 0
      %1037 = vperm.xlu0 %1036, %v907
      %v1038 = vpop.permute.xlu0 %1037
      %1041 = vset.pattern.permute.xlu0 0
      %1042 = vperm.xlu0 %1041, %v908
      %v1043 = vpop.permute.xlu0 %1042
      %1046 = vset.pattern.permute.xlu0 0
      %1047 = vperm.xlu0 %1046, %v909
      %v1048 = vpop.permute.xlu0 %1047
      %1051 = vset.pattern.permute.xlu0 0
      %1052 = vperm.xlu0 %1051, %v910
      %v1053 = vpop.permute.xlu0 %1052
      %1056 = vset.pattern.permute.xlu0 0
      %1057 = vperm.xlu0 %1056, %v911
      %v1058 = vpop.permute.xlu0 %1057
      %1061 = vset.pattern.permute.xlu0 0
      %1062 = vperm.xlu0 %1061, %v912
      %v1063 = vpop.permute.xlu0 %1062
      %1066 = vset.pattern.permute.xlu0 0
      %1067 = vperm.xlu0 %1066, %v913
      %v1068 = vpop.permute.xlu0 %1067
      %1071 = vset.pattern.permute.xlu0 0
      %1072 = vperm.xlu0 %1071, %v914
      %v1073 = vpop.permute.xlu0 %1072
      %1076 = vset.pattern.permute.xlu0 0
      %1077 = vperm.xlu0 %1076, %v915
      %v1078 = vpop.permute.xlu0 %1077
      %1081 = vset.pattern.permute.xlu0 0
      %1082 = vperm.xlu0 %1081, %v916
      %v1083 = vpop.permute.xlu0 %1082
      %1086 = vset.pattern.permute.xlu0 0
      %1087 = vperm.xlu0 %1086, %v917
      %v1088 = vpop.permute.xlu0 %1087
      %1091 = vset.pattern.permute.xlu0 0
      %1092 = vperm.xlu0 %1091, %v918
      %v1093 = vpop.permute.xlu0 %1092
      %1096 = vset.pattern.permute.xlu0 0
      %1097 = vperm.xlu0 %1096, %v919
      %v1098 = vpop.permute.xlu0 %1097
      %v1100 = vmul.f32 %v848, %v923
      %v1101 = vmul.f32 %v849, %v928
      %v1102 = vmul.f32 %v850, %v933
      %v1103 = vmul.f32 %v851, %v938
      %v1104 = vmul.f32 %v852, %v943
      %v1105 = vmul.f32 %v853, %v948
      %v1106 = vmul.f32 %v854, %v953
      %v1107 = vmul.f32 %v855, %v958
      %v1108 = vmul.f32 %v856, %v963
      %v1109 = vmul.f32 %v857, %v968
      %v1110 = vmul.f32 %v858, %v973
      %v1111 = vmul.f32 %v859, %v978
      %v1112 = vmul.f32 %v860, %v983
      %v1113 = vmul.f32 %v861, %v988
      %v1114 = vmul.f32 %v862, %v993
      %v1115 = vmul.f32 %v863, %v998
      %v1116 = vmul.f32 %v864, %v1003
      %v1117 = vmul.f32 %v865, %v1008
      %v1118 = vmul.f32 %v866, %v1013
      %v1119 = vmul.f32 %v867, %v1018
      %v1120 = vmul.f32 %v868, %v1023
      %v1121 = vmul.f32 %v869, %v1028
      %v1122 = vmul.f32 %v870, %v1033
      %v1123 = vmul.f32 %v871, %v1038
      %v1124 = vmul.f32 %v872, %v1043
      %v1125 = vmul.f32 %v873, %v1048
      %v1126 = vmul.f32 %v874, %v1053
      %v1127 = vmul.f32 %v875, %v1058
      %v1128 = vmul.f32 %v876, %v1063
      %v1129 = vmul.f32 %v877, %v1068
      %v1130 = vmul.f32 %v878, %v1073
      %v1131 = vmul.f32 %v879, %v1078
      %v1132 = vmul.f32 %v880, %v1083
      %v1133 = vmul.f32 %v881, %v1088
      %v1134 = vmul.f32 %v882, %v1093
      %v1135 = vmul.f32 %v883, %v1098
      %vm1136 = vcmask 60416
      %1137 = vst.msk [vmem:[#allocation2] sm:$0xf] %vm1136, 0
      %1138 = vst.msk [vmem:[#allocation2 + $0x4] sm:$0xf] %vm1136, 0
      %vm1139 = vcmask 58368
      %vm1140 = vsmask.f32 1280
      %vm1141 = vmand %vm1139, %vm1140
      %v1142 = vld [vmem:[#allocation2 + $0x8] sm:$0x3]
      %v1143 = vsel %vm1141, 0, %v1142
      %1144 = vst [vmem:[#allocation2 + $0x8] sm:$0x3] %v1143
      %vm1145 = vcmask 60417
      %vm1146 = vsmask.f32 7942
      %vm1147 = vmand %vm1145, %vm1146
      %v1148 = vld [vmem:[#allocation2 + $0x98] sm:$0xe]
      %v1149 = vsel %vm1147, 0, %v1148
      %1150 = vst [vmem:[#allocation2 + $0x98] sm:$0xe] %v1149
      %1151 = vst.msk [vmem:[#allocation2 + $0x9c] sm:$0xf] %vm1136, 0
      %vm1152 = vcmask 59392
      %1153 = vst.msk [vmem:[#allocation2 + $0xa0] sm:$0x7] %vm1152, 0
      %v1154 = vpack.c.bf16 %v1101, %v1100
      %v1155 = vpack.c.bf16 %v1103, %v1102
      %v1156 = vpack.c.bf16 %v1105, %v1104
      %v1157 = vpack.c.bf16 %v1107, %v1106
      %v1158 = vpack.c.bf16 %v1109, %v1108
      %v1159 = vpack.c.bf16 %v1111, %v1110
      %v1160 = vpack.c.bf16 %v1113, %v1112
      %v1161 = vpack.c.bf16 %v1115, %v1114
      %v1162 = vpack.c.bf16 %v1117, %v1116
      %v1163 = vpack.c.bf16 %v1119, %v1118
      %v1164 = vpack.c.bf16 %v1121, %v1120
      %v1165 = vpack.c.bf16 %v1123, %v1122
      %v1166 = vpack.c.bf16 %v1125, %v1124
      %v1167 = vpack.c.bf16 %v1127, %v1126
      %v1168 = vpack.c.bf16 %v1129, %v1128
      %v1169 = vpack.c.bf16 %v1131, %v1130
      %v1170 = vpack.c.bf16 %v1133, %v1132
      %v1171 = vpack.c.bf16 %v1135, %v1134
      %v1190 = vunpack.c.l.b16 %v1154
      %v1191 = vunpack.c.h.b16 %v1154
      %v1192 = vunpack.c.l.b16 %v1155
      %v1193 = vunpack.c.h.b16 %v1155
      %v1194 = vunpack.c.l.b16 %v1156
      %v1195 = vunpack.c.h.b16 %v1156
      %v1196 = vunpack.c.l.b16 %v1157
      %v1197 = vunpack.c.h.b16 %v1157
      %v1198 = vunpack.c.l.b16 %v1158
      %v1199 = vunpack.c.h.b16 %v1158
      %v1200 = vunpack.c.l.b16 %v1159
      %v1201 = vunpack.c.h.b16 %v1159
      %v1202 = vunpack.c.l.b16 %v1160
      %v1203 = vunpack.c.h.b16 %v1160
      %v1204 = vunpack.c.l.b16 %v1161
      %v1205 = vunpack.c.h.b16 %v1161
      %v1206 = vunpack.c.l.b16 %v1162
      %v1207 = vunpack.c.h.b16 %v1162
      %v1208 = vunpack.c.l.b16 %v1163
      %v1209 = vunpack.c.h.b16 %v1163
      %v1210 = vunpack.c.l.b16 %v1164
      %v1211 = vunpack.c.h.b16 %v1164
      %v1212 = vunpack.c.l.b16 %v1165
      %v1213 = vunpack.c.h.b16 %v1165
      %v1214 = vunpack.c.l.b16 %v1166
      %v1215 = vunpack.c.h.b16 %v1166
      %v1216 = vunpack.c.l.b16 %v1167
      %v1217 = vunpack.c.h.b16 %v1167
      %v1218 = vunpack.c.l.b16 %v1168
      %v1219 = vunpack.c.h.b16 %v1168
      %v1220 = vunpack.c.l.b16 %v1169
      %v1221 = vunpack.c.h.b16 %v1169
      %v1222 = vunpack.c.l.b16 %v1170
      %v1223 = vunpack.c.h.b16 %v1170
      %v1224 = vunpack.c.l.b16 %v1171
      %v1225 = vunpack.c.h.b16 %v1171
      %v1226 = vpack.c.b16 %v1190, %v1190
      %v1227 = vpack.c.b16 %v1191, %v1191
      %v1228 = vpack.c.b16 %v1192, %v1192
      %v1229 = vpack.c.b16 %v1193, %v1193
      %v1230 = vpack.c.b16 %v1194, %v1194
      %v1231 = vpack.c.b16 %v1195, %v1195
      %v1232 = vpack.c.b16 %v1196, %v1196
      %v1233 = vpack.c.b16 %v1197, %v1197
      %v1234 = vpack.c.b16 %v1198, %v1198
      %v1235 = vpack.c.b16 %v1199, %v1199
      %v1236 = vpack.c.b16 %v1200, %v1200
      %v1237 = vpack.c.b16 %v1201, %v1201
      %v1238 = vpack.c.b16 %v1202, %v1202
      %v1239 = vpack.c.b16 %v1203, %v1203
      %v1240 = vpack.c.b16 %v1204, %v1204
      %v1241 = vpack.c.b16 %v1205, %v1205
      %v1242 = vpack.c.b16 %v1206, %v1206
      %v1243 = vpack.c.b16 %v1207, %v1207
      %v1244 = vpack.c.b16 %v1208, %v1208
      %v1245 = vpack.c.b16 %v1209, %v1209
      %v1246 = vpack.c.b16 %v1210, %v1210
      %v1247 = vpack.c.b16 %v1211, %v1211
      %v1248 = vpack.c.b16 %v1212, %v1212
      %v1249 = vpack.c.b16 %v1213, %v1213
      %v1250 = vpack.c.b16 %v1214, %v1214
      %v1251 = vpack.c.b16 %v1215, %v1215
      %v1252 = vpack.c.b16 %v1216, %v1216
      %v1253 = vpack.c.b16 %v1217, %v1217
      %v1254 = vpack.c.b16 %v1218, %v1218
      %v1255 = vpack.c.b16 %v1219, %v1219
      %v1256 = vpack.c.b16 %v1220, %v1220
      %v1257 = vpack.c.b16 %v1221, %v1221
      %v1258 = vpack.c.b16 %v1222, %v1222
      %v1259 = vpack.c.b16 %v1223, %v1223
      %v1260 = vpack.c.b16 %v1224, %v1224
      %v1261 = vpack.c.b16 %v1225, %v1225
      %vm1262 = vsmask.f32 5392
      %vm1263 = vmor %vm1140, %vm1262
      %v1265 = vshrl.u32 %v1226, 16
      %v1267 = vrot.slane %v1265, 6
      %v1268 = vshll.u32 %v1226, 16
      %v1270 = vrot.slane %v1268, 7
      %v1271 = vor.u32 %v1267, %v1270
      %v1272 = vrot.slane %v1271, 4
      %v1274 = vshrl.u32 %v1227, 16
      %v1276 = vrot.slane %v1274, 6
      %v1277 = vshll.u32 %v1227, 16
      %v1279 = vrot.slane %v1277, 7
      %v1280 = vor.u32 %v1276, %v1279
      %v1281 = vsel %vm1263, %v1272, %v1280
      %v1282 = vrot.slane %v1280, 4
      %v1284 = vshrl.u32 %v1228, 16
      %v1286 = vrot.slane %v1284, 6
      %v1287 = vshll.u32 %v1228, 16
      %v1289 = vrot.slane %v1287, 7
      %v1290 = vor.u32 %v1286, %v1289
      %v1291 = vsel %vm1263, %v1282, %v1290
      %v1292 = vrot.slane %v1290, 4
      %v1294 = vshrl.u32 %v1229, 16
      %v1296 = vrot.slane %v1294, 6
      %v1297 = vshll.u32 %v1229, 16
      %v1299 = vrot.slane %v1297, 7
      %v1300 = vor.u32 %v1296, %v1299
      %v1301 = vsel %vm1263, %v1292, %v1300
      %v1302 = vrot.slane %v1300, 4
      %v1304 = vshrl.u32 %v1230, 16
      %v1306 = vrot.slane %v1304, 6
      %v1307 = vshll.u32 %v1230, 16
      %v1309 = vrot.slane %v1307, 7
      %v1310 = vor.u32 %v1306, %v1309
      %v1311 = vsel %vm1263, %v1302, %v1310
      %v1312 = vrot.slane %v1310, 4
      %v1314 = vshrl.u32 %v1231, 16
      %v1316 = vrot.slane %v1314, 6
      %v1317 = vshll.u32 %v1231, 16
      %v1319 = vrot.slane %v1317, 7
      %v1320 = vor.u32 %v1316, %v1319
      %v1321 = vsel %vm1263, %v1312, %v1320
      %v1322 = vrot.slane %v1320, 4
      %v1324 = vshrl.u32 %v1232, 16
      %v1326 = vrot.slane %v1324, 6
      %v1327 = vshll.u32 %v1232, 16
      %v1329 = vrot.slane %v1327, 7
      %v1330 = vor.u32 %v1326, %v1329
      %v1331 = vsel %vm1263, %v1322, %v1330
      %v1332 = vrot.slane %v1330, 4
      %v1334 = vshrl.u32 %v1233, 16
      %v1336 = vrot.slane %v1334, 6
      %v1337 = vshll.u32 %v1233, 16
      %v1339 = vrot.slane %v1337, 7
      %v1340 = vor.u32 %v1336, %v1339
      %v1341 = vsel %vm1263, %v1332, %v1340
      %v1342 = vrot.slane %v1340, 4
      %v1344 = vshrl.u32 %v1234, 16
      %v1346 = vrot.slane %v1344, 6
      %v1347 = vshll.u32 %v1234, 16
      %v1349 = vrot.slane %v1347, 7
      %v1350 = vor.u32 %v1346, %v1349
      %v1351 = vsel %vm1263, %v1342, %v1350
      %v1352 = vrot.slane %v1350, 4
      %v1354 = vshrl.u32 %v1235, 16
      %v1356 = vrot.slane %v1354, 6
      %v1357 = vshll.u32 %v1235, 16
      %v1359 = vrot.slane %v1357, 7
      %v1360 = vor.u32 %v1356, %v1359
      %v1361 = vsel %vm1263, %v1352, %v1360
      %v1362 = vrot.slane %v1360, 4
      %v1364 = vshrl.u32 %v1236, 16
      %v1366 = vrot.slane %v1364, 6
      %v1367 = vshll.u32 %v1236, 16
      %v1369 = vrot.slane %v1367, 7
      %v1370 = vor.u32 %v1366, %v1369
      %v1371 = vsel %vm1263, %v1362, %v1370
      %v1372 = vrot.slane %v1370, 4
      %v1374 = vshrl.u32 %v1237, 16
      %v1376 = vrot.slane %v1374, 6
      %v1377 = vshll.u32 %v1237, 16
      %v1379 = vrot.slane %v1377, 7
      %v1380 = vor.u32 %v1376, %v1379
      %v1381 = vsel %vm1263, %v1372, %v1380
      %v1382 = vrot.slane %v1380, 4
      %v1384 = vshrl.u32 %v1238, 16
      %v1386 = vrot.slane %v1384, 6
      %v1387 = vshll.u32 %v1238, 16
      %v1389 = vrot.slane %v1387, 7
      %v1390 = vor.u32 %v1386, %v1389
      %v1391 = vsel %vm1263, %v1382, %v1390
      %v1392 = vrot.slane %v1390, 4
      %v1394 = vshrl.u32 %v1239, 16
      %v1396 = vrot.slane %v1394, 6
      %v1397 = vshll.u32 %v1239, 16
      %v1399 = vrot.slane %v1397, 7
      %v1400 = vor.u32 %v1396, %v1399
      %v1401 = vsel %vm1263, %v1392, %v1400
      %v1402 = vrot.slane %v1400, 4
      %v1404 = vshrl.u32 %v1240, 16
      %v1406 = vrot.slane %v1404, 6
      %v1407 = vshll.u32 %v1240, 16
      %v1409 = vrot.slane %v1407, 7
      %v1410 = vor.u32 %v1406, %v1409
      %v1411 = vsel %vm1263, %v1402, %v1410
      %v1412 = vrot.slane %v1410, 4
      %v1414 = vshrl.u32 %v1241, 16
      %v1416 = vrot.slane %v1414, 6
      %v1417 = vshll.u32 %v1241, 16
      %v1419 = vrot.slane %v1417, 7
      %v1420 = vor.u32 %v1416, %v1419
      %v1421 = vsel %vm1263, %v1412, %v1420
      %v1422 = vrot.slane %v1420, 4
      %v1424 = vshrl.u32 %v1242, 16
      %v1426 = vrot.slane %v1424, 6
      %v1427 = vshll.u32 %v1242, 16
      %v1429 = vrot.slane %v1427, 7
      %v1430 = vor.u32 %v1426, %v1429
      %v1431 = vsel %vm1263, %v1422, %v1430
      %v1432 = vrot.slane %v1430, 4
      %v1434 = vshrl.u32 %v1243, 16
      %v1436 = vrot.slane %v1434, 6
      %v1437 = vshll.u32 %v1243, 16
      %v1439 = vrot.slane %v1437, 7
      %v1440 = vor.u32 %v1436, %v1439
      %v1441 = vsel %vm1263, %v1432, %v1440
      %v1442 = vrot.slane %v1440, 4
      %v1444 = vshrl.u32 %v1244, 16
      %v1446 = vrot.slane %v1444, 6
      %v1447 = vshll.u32 %v1244, 16
      %v1449 = vrot.slane %v1447, 7
      %v1450 = vor.u32 %v1446, %v1449
      %v1451 = vsel %vm1263, %v1442, %v1450
      %v1452 = vrot.slane %v1450, 4
      %v1454 = vshrl.u32 %v1245, 16
      %v1456 = vrot.slane %v1454, 6
      %v1457 = vshll.u32 %v1245, 16
      %v1459 = vrot.slane %v1457, 7
      %v1460 = vor.u32 %v1456, %v1459
      %v1461 = vsel %vm1263, %v1452, %v1460
      %v1462 = vrot.slane %v1460, 4
      %v1464 = vshrl.u32 %v1246, 16
      %v1466 = vrot.slane %v1464, 6
      %v1467 = vshll.u32 %v1246, 16
      %v1469 = vrot.slane %v1467, 7
      %v1470 = vor.u32 %v1466, %v1469
      %v1471 = vsel %vm1263, %v1462, %v1470
      %v1472 = vrot.slane %v1470, 4
      %v1474 = vshrl.u32 %v1247, 16
      %v1476 = vrot.slane %v1474, 6
      %v1477 = vshll.u32 %v1247, 16
      %v1479 = vrot.slane %v1477, 7
      %v1480 = vor.u32 %v1476, %v1479
      %v1481 = vsel %vm1263, %v1472, %v1480
      %v1482 = vrot.slane %v1480, 4
      %v1484 = vshrl.u32 %v1248, 16
      %v1486 = vrot.slane %v1484, 6
      %v1487 = vshll.u32 %v1248, 16
      %v1489 = vrot.slane %v1487, 7
      %v1490 = vor.u32 %v1486, %v1489
      %v1491 = vsel %vm1263, %v1482, %v1490
      %v1492 = vrot.slane %v1490, 4
      %v1494 = vshrl.u32 %v1249, 16
      %v1496 = vrot.slane %v1494, 6
      %v1497 = vshll.u32 %v1249, 16
      %v1499 = vrot.slane %v1497, 7
      %v1500 = vor.u32 %v1496, %v1499
      %v1501 = vsel %vm1263, %v1492, %v1500
      %v1502 = vrot.slane %v1500, 4
      %v1504 = vshrl.u32 %v1250, 16
      %v1506 = vrot.slane %v1504, 6
      %v1507 = vshll.u32 %v1250, 16
      %v1509 = vrot.slane %v1507, 7
      %v1510 = vor.u32 %v1506, %v1509
      %v1511 = vsel %vm1263, %v1502, %v1510
      %v1512 = vrot.slane %v1510, 4
      %v1514 = vshrl.u32 %v1251, 16
      %v1516 = vrot.slane %v1514, 6
      %v1517 = vshll.u32 %v1251, 16
      %v1519 = vrot.slane %v1517, 7
      %v1520 = vor.u32 %v1516, %v1519
      %v1521 = vsel %vm1263, %v1512, %v1520
      %v1522 = vrot.slane %v1520, 4
      %v1524 = vshrl.u32 %v1252, 16
      %v1526 = vrot.slane %v1524, 6
      %v1527 = vshll.u32 %v1252, 16
      %v1529 = vrot.slane %v1527, 7
      %v1530 = vor.u32 %v1526, %v1529
      %v1531 = vsel %vm1263, %v1522, %v1530
      %v1532 = vrot.slane %v1530, 4
      %v1534 = vshrl.u32 %v1253, 16
      %v1536 = vrot.slane %v1534, 6
      %v1537 = vshll.u32 %v1253, 16
      %v1539 = vrot.slane %v1537, 7
      %v1540 = vor.u32 %v1536, %v1539
      %v1541 = vsel %vm1263, %v1532, %v1540
      %v1542 = vrot.slane %v1540, 4
      %v1544 = vshrl.u32 %v1254, 16
      %v1546 = vrot.slane %v1544, 6
      %v1547 = vshll.u32 %v1254, 16
      %v1549 = vrot.slane %v1547, 7
      %v1550 = vor.u32 %v1546, %v1549
      %v1551 = vsel %vm1263, %v1542, %v1550
      %v1552 = vrot.slane %v1550, 4
      %v1554 = vshrl.u32 %v1255, 16
      %v1556 = vrot.slane %v1554, 6
      %v1557 = vshll.u32 %v1255, 16
      %v1559 = vrot.slane %v1557, 7
      %v1560 = vor.u32 %v1556, %v1559
      %v1561 = vsel %vm1263, %v1552, %v1560
      %v1562 = vrot.slane %v1560, 4
      %v1564 = vshrl.u32 %v1256, 16
      %v1566 = vrot.slane %v1564, 6
      %v1567 = vshll.u32 %v1256, 16
      %v1569 = vrot.slane %v1567, 7
      %v1570 = vor.u32 %v1566, %v1569
      %v1571 = vsel %vm1263, %v1562, %v1570
      %v1572 = vrot.slane %v1570, 4
      %v1574 = vshrl.u32 %v1257, 16
      %v1576 = vrot.slane %v1574, 6
      %v1577 = vshll.u32 %v1257, 16
      %v1579 = vrot.slane %v1577, 7
      %v1580 = vor.u32 %v1576, %v1579
      %v1581 = vsel %vm1263, %v1572, %v1580
      %v1582 = vrot.slane %v1580, 4
      %v1584 = vshrl.u32 %v1258, 16
      %v1586 = vrot.slane %v1584, 6
      %v1587 = vshll.u32 %v1258, 16
      %v1589 = vrot.slane %v1587, 7
      %v1590 = vor.u32 %v1586, %v1589
      %v1591 = vsel %vm1263, %v1582, %v1590
      %v1592 = vrot.slane %v1590, 4
      %v1594 = vshrl.u32 %v1259, 16
      %v1596 = vrot.slane %v1594, 6
      %v1597 = vshll.u32 %v1259, 16
      %v1599 = vrot.slane %v1597, 7
      %v1600 = vor.u32 %v1596, %v1599
      %v1601 = vsel %vm1263, %v1592, %v1600
      %v1602 = vrot.slane %v1600, 4
      %v1604 = vshrl.u32 %v1260, 16
      %v1606 = vrot.slane %v1604, 6
      %v1607 = vshll.u32 %v1260, 16
      %v1609 = vrot.slane %v1607, 7
      %v1610 = vor.u32 %v1606, %v1609
      %v1611 = vsel %vm1263, %v1602, %v1610
      %v1612 = vrot.slane %v1610, 4
      %v1614 = vshrl.u32 %v1261, 16
      %v1616 = vrot.slane %v1614, 6
      %v1617 = vshll.u32 %v1261, 16
      %v1619 = vrot.slane %v1617, 7
      %v1620 = vor.u32 %v1616, %v1619
      %v1621 = vsel %vm1263, %v1612, %v1620
      %v1622 = vrot.slane %v1620, 4
      %v1660 = vld [vmem:[#allocation2 + $0x8] sm:$0xe]
      %v1661 = vsel %vm1147, %v1271, %v1660
      %1662 = vst [vmem:[#allocation2 + $0x8] sm:$0xe] %v1661
      %1663 = vst.msk [vmem:[#allocation2 + $0xc] sm:$0xf] %vm1136, %v1281
      %1664 = vst.msk [vmem:[#allocation2 + $0x10] sm:$0xf] %vm1136, %v1291
      %1665 = vst.msk [vmem:[#allocation2 + $0x14] sm:$0xf] %vm1136, %v1301
      %1666 = vst.msk [vmem:[#allocation2 + $0x18] sm:$0xf] %vm1136, %v1311
      %1667 = vst.msk [vmem:[#allocation2 + $0x1c] sm:$0xf] %vm1136, %v1321
      %1668 = vst.msk [vmem:[#allocation2 + $0x20] sm:$0xf] %vm1136, %v1331
      %1669 = vst.msk [vmem:[#allocation2 + $0x24] sm:$0xf] %vm1136, %v1341
      %1670 = vst.msk [vmem:[#allocation2 + $0x28] sm:$0xf] %vm1136, %v1351
      %1671 = vst.msk [vmem:[#allocation2 + $0x2c] sm:$0xf] %vm1136, %v1361
      %1672 = vst.msk [vmem:[#allocation2 + $0x30] sm:$0xf] %vm1136, %v1371
      %1673 = vst.msk [vmem:[#allocation2 + $0x34] sm:$0xf] %vm1136, %v1381
      %1674 = vst.msk [vmem:[#allocation2 + $0x38] sm:$0xf] %vm1136, %v1391
      %1675 = vst.msk [vmem:[#allocation2 + $0x3c] sm:$0xf] %vm1136, %v1401
      %1676 = vst.msk [vmem:[#allocation2 + $0x40] sm:$0xf] %vm1136, %v1411
      %1677 = vst.msk [vmem:[#allocation2 + $0x44] sm:$0xf] %vm1136, %v1421
      %1678 = vst.msk [vmem:[#allocation2 + $0x48] sm:$0xf] %vm1136, %v1431
      %1679 = vst.msk [vmem:[#allocation2 + $0x4c] sm:$0xf] %vm1136, %v1441
      %1680 = vst.msk [vmem:[#allocation2 + $0x50] sm:$0xf] %vm1136, %v1451
      %1681 = vst.msk [vmem:[#allocation2 + $0x54] sm:$0xf] %vm1136, %v1461
      %1682 = vst.msk [vmem:[#allocation2 + $0x58] sm:$0xf] %vm1136, %v1471
      %1683 = vst.msk [vmem:[#allocation2 + $0x5c] sm:$0xf] %vm1136, %v1481
      %1684 = vst.msk [vmem:[#allocation2 + $0x60] sm:$0xf] %vm1136, %v1491
      %1685 = vst.msk [vmem:[#allocation2 + $0x64] sm:$0xf] %vm1136, %v1501
      %1686 = vst.msk [vmem:[#allocation2 + $0x68] sm:$0xf] %vm1136, %v1511
      %1687 = vst.msk [vmem:[#allocation2 + $0x6c] sm:$0xf] %vm1136, %v1521
      %1688 = vst.msk [vmem:[#allocation2 + $0x70] sm:$0xf] %vm1136, %v1531
      %1689 = vst.msk [vmem:[#allocation2 + $0x74] sm:$0xf] %vm1136, %v1541
      %1690 = vst.msk [vmem:[#allocation2 + $0x78] sm:$0xf] %vm1136, %v1551
      %1691 = vst.msk [vmem:[#allocation2 + $0x7c] sm:$0xf] %vm1136, %v1561
      %1692 = vst.msk [vmem:[#allocation2 + $0x80] sm:$0xf] %vm1136, %v1571
      %1693 = vst.msk [vmem:[#allocation2 + $0x84] sm:$0xf] %vm1136, %v1581
      %1694 = vst.msk [vmem:[#allocation2 + $0x88] sm:$0xf] %vm1136, %v1591
      %1695 = vst.msk [vmem:[#allocation2 + $0x8c] sm:$0xf] %vm1136, %v1601
      %1696 = vst.msk [vmem:[#allocation2 + $0x90] sm:$0xf] %vm1136, %v1611
      %1697 = vst.msk [vmem:[#allocation2 + $0x94] sm:$0xf] %vm1136, %v1621
      %v1698 = vld [vmem:[#allocation2 + $0x98] sm:$0x3]
      %v1699 = vsel %vm1141, %v1622, %v1698
      %1700 = vst [vmem:[#allocation2 + $0x98] sm:$0x3] %v1699
      %v1701 = vld [vmem:[#allocation2] sm:$0xf]
      %v1702 = vld [vmem:[#allocation2 + $0x4] sm:$0xf]
      %v1703 = vld [vmem:[#allocation2 + $0x8] sm:$0xf]
      %v1704 = vld [vmem:[#allocation2 + $0xc] sm:$0xf]
      %v1705 = vld [vmem:[#allocation2 + $0x10] sm:$0xf]
      %v1706 = vld [vmem:[#allocation2 + $0x14] sm:$0xf]
      %v1707 = vld [vmem:[#allocation2 + $0x18] sm:$0xf]
      %v1708 = vld [vmem:[#allocation2 + $0x1c] sm:$0xf]
      %v1709 = vld [vmem:[#allocation2 + $0x20] sm:$0xf]
      %v1710 = vld [vmem:[#allocation2 + $0x24] sm:$0xf]
      %v1711 = vld [vmem:[#allocation2 + $0x28] sm:$0xf]
      %v1712 = vld [vmem:[#allocation2 + $0x2c] sm:$0xf]
      %v1713 = vld [vmem:[#allocation2 + $0x30] sm:$0xf]
      %v1714 = vld [vmem:[#allocation2 + $0x34] sm:$0xf]
      %v1715 = vld [vmem:[#allocation2 + $0x38] sm:$0xf]
      %v1716 = vld [vmem:[#allocation2 + $0x3c] sm:$0xf]
      %v1717 = vld [vmem:[#allocation2 + $0x40] sm:$0xf]
      %v1718 = vld [vmem:[#allocation2 + $0x44] sm:$0xf]
      %v1719 = vld [vmem:[#allocation2 + $0x48] sm:$0xf]
      %v1720 = vld [vmem:[#allocation2 + $0x4c] sm:$0xf]
      %v1721 = vld [vmem:[#allocation2 + $0x50] sm:$0xf]
      %v1722 = vld [vmem:[#allocation2 + $0x54] sm:$0xf]
      %v1723 = vld [vmem:[#allocation2 + $0x58] sm:$0xf]
      %v1724 = vld [vmem:[#allocation2 + $0x5c] sm:$0xf]
      %v1725 = vld [vmem:[#allocation2 + $0x60] sm:$0xf]
      %v1726 = vld [vmem:[#allocation2 + $0x64] sm:$0xf]
      %v1727 = vld [vmem:[#allocation2 + $0x68] sm:$0xf]
      %v1728 = vld [vmem:[#allocation2 + $0x6c] sm:$0xf]
      %v1729 = vld [vmem:[#allocation2 + $0x70] sm:$0xf]
      %v1730 = vld [vmem:[#allocation2 + $0x74] sm:$0xf]
      %v1731 = vld [vmem:[#allocation2 + $0x78] sm:$0xf]
      %v1732 = vld [vmem:[#allocation2 + $0x7c] sm:$0xf]
      %v1733 = vld [vmem:[#allocation2 + $0x80] sm:$0xf]
      %v1734 = vld [vmem:[#allocation2 + $0x84] sm:$0xf]
      %v1735 = vld [vmem:[#allocation2 + $0x88] sm:$0xf]
      %v1736 = vld [vmem:[#allocation2 + $0x8c] sm:$0xf]
      %v1737 = vld [vmem:[%s5] sm:$0xf]
      %v1738 = vld [vmem:[#allocation2 + $0x90] sm:$0x1]
      %s1739 = scalar_lea.vmem %s5, 4
      %v1740 = vld [vmem:[%s1739] sm:$0xf]
      %v1778 = vunpack.c.l.b16 %v1701
      %v1779 = vunpack.c.l.b16 %v1702
      %v1780 = vunpack.c.l.b16 %v1703
      %v1781 = vunpack.c.l.b16 %v1704
      %v1782 = vunpack.c.l.b16 %v1705
      %v1783 = vunpack.c.l.b16 %v1706
      %v1784 = vunpack.c.l.b16 %v1707
      %v1785 = vunpack.c.l.b16 %v1708
      %v1786 = vunpack.c.l.b16 %v1709
      %v1787 = vunpack.c.l.b16 %v1710
      %v1788 = vunpack.c.l.b16 %v1711
      %v1789 = vunpack.c.l.b16 %v1712
      %v1790 = vunpack.c.l.b16 %v1713
      %v1791 = vunpack.c.l.b16 %v1714
      %v1792 = vunpack.c.l.b16 %v1715
      %v1793 = vunpack.c.l.b16 %v1716
      %v1794 = vunpack.c.l.b16 %v1717
      %v1795 = vunpack.c.l.b16 %v1718
      %v1796 = vunpack.c.l.b16 %v1719
      %v1797 = vunpack.c.l.b16 %v1720
      %v1798 = vunpack.c.l.b16 %v1721
      %v1799 = vunpack.c.l.b16 %v1722
      %v1800 = vunpack.c.l.b16 %v1723
      %v1801 = vunpack.c.l.b16 %v1724
      %v1802 = vunpack.c.l.b16 %v1725
      %v1803 = vunpack.c.l.b16 %v1726
      %v1804 = vunpack.c.l.b16 %v1727
      %v1805 = vunpack.c.l.b16 %v1728
      %v1806 = vunpack.c.l.b16 %v1729
      %v1807 = vunpack.c.l.b16 %v1730
      %v1808 = vunpack.c.l.b16 %v1731
      %v1809 = vunpack.c.l.b16 %v1732
      %v1810 = vunpack.c.l.b16 %v1733
      %v1811 = vunpack.c.l.b16 %v1734
      %v1812 = vunpack.c.l.b16 %v1735
      %v1813 = vunpack.c.l.b16 %v1736
      %v1814 = vunpack.c.l.b16 %v1738
      %v1815 = vpack.c.b16 %v1779, %v1778
      %v1816 = vpack.c.b16 %v1781, %v1780
      %v1817 = vpack.c.b16 %v1783, %v1782
      %v1818 = vpack.c.b16 %v1785, %v1784
      %v1819 = vpack.c.b16 %v1787, %v1786
      %v1820 = vpack.c.b16 %v1789, %v1788
      %v1821 = vpack.c.b16 %v1791, %v1790
      %v1822 = vpack.c.b16 %v1793, %v1792
      %v1823 = vpack.c.b16 %v1795, %v1794
      %v1824 = vpack.c.b16 %v1797, %v1796
      %v1825 = vpack.c.b16 %v1799, %v1798
      %v1826 = vpack.c.b16 %v1801, %v1800
      %v1827 = vpack.c.b16 %v1803, %v1802
      %v1828 = vpack.c.b16 %v1805, %v1804
      %v1829 = vpack.c.b16 %v1807, %v1806
      %v1830 = vpack.c.b16 %v1809, %v1808
      %v1831 = vpack.c.b16 %v1811, %v1810
      %v1832 = vpack.c.b16 %v1813, %v1812
      %v1833 = vpack.c.b16 %v1814, %v1814
      %vm1834 = vsmask.f32 7424
      %v1836 = vshrl.u32 %v1815, 16
      %v1838 = vshll.u32 %v1815, 16
      %v1840 = vrot.slane %v1838, 1
      %v1841 = vor.u32 %v1836, %v1840
      %v1843 = vshll.u32 %v1816, 16
      %v1845 = vrot.slane %v1843, 1
      %v1846 = vsel %vm1834, %v1841, %v1845
      %v1847 = vshrl.u32 %v1816, 16
      %v1849 = vor.u32 %v1847, %v1845
      %v1851 = vshll.u32 %v1817, 16
      %v1853 = vrot.slane %v1851, 1
      %v1854 = vsel %vm1834, %v1849, %v1853
      %v1855 = vshrl.u32 %v1817, 16
      %v1857 = vor.u32 %v1855, %v1853
      %v1859 = vshll.u32 %v1818, 16
      %v1861 = vrot.slane %v1859, 1
      %v1862 = vsel %vm1834, %v1857, %v1861
      %v1863 = vshrl.u32 %v1818, 16
      %v1865 = vor.u32 %v1863, %v1861
      %v1867 = vshll.u32 %v1819, 16
      %v1869 = vrot.slane %v1867, 1
      %v1870 = vsel %vm1834, %v1865, %v1869
      %v1871 = vshrl.u32 %v1819, 16
      %v1873 = vor.u32 %v1871, %v1869
      %v1875 = vshll.u32 %v1820, 16
      %v1877 = vrot.slane %v1875, 1
      %v1878 = vsel %vm1834, %v1873, %v1877
      %v1879 = vshrl.u32 %v1820, 16
      %v1881 = vor.u32 %v1879, %v1877
      %v1883 = vshll.u32 %v1821, 16
      %v1885 = vrot.slane %v1883, 1
      %v1886 = vsel %vm1834, %v1881, %v1885
      %v1887 = vshrl.u32 %v1821, 16
      %v1889 = vor.u32 %v1887, %v1885
      %v1891 = vshll.u32 %v1822, 16
      %v1893 = vrot.slane %v1891, 1
      %v1894 = vsel %vm1834, %v1889, %v1893
      %v1895 = vshrl.u32 %v1822, 16
      %v1897 = vor.u32 %v1895, %v1893
      %v1899 = vshll.u32 %v1823, 16
      %v1901 = vrot.slane %v1899, 1
      %v1902 = vsel %vm1834, %v1897, %v1901
      %v1903 = vshrl.u32 %v1823, 16
      %v1905 = vor.u32 %v1903, %v1901
      %v1907 = vshll.u32 %v1824, 16
      %v1909 = vrot.slane %v1907, 1
      %v1910 = vsel %vm1834, %v1905, %v1909
      %v1911 = vshrl.u32 %v1824, 16
      %v1913 = vor.u32 %v1911, %v1909
      %v1915 = vshll.u32 %v1825, 16
      %v1917 = vrot.slane %v1915, 1
      %v1918 = vsel %vm1834, %v1913, %v1917
      %v1919 = vshrl.u32 %v1825, 16
      %v1921 = vor.u32 %v1919, %v1917
      %v1923 = vshll.u32 %v1826, 16
      %v1925 = vrot.slane %v1923, 1
      %v1926 = vsel %vm1834, %v1921, %v1925
      %v1927 = vshrl.u32 %v1826, 16
      %v1929 = vor.u32 %v1927, %v1925
      %v1931 = vshll.u32 %v1827, 16
      %v1933 = vrot.slane %v1931, 1
      %v1934 = vsel %vm1834, %v1929, %v1933
      %v1935 = vshrl.u32 %v1827, 16
      %v1937 = vor.u32 %v1935, %v1933
      %v1939 = vshll.u32 %v1828, 16
      %v1941 = vrot.slane %v1939, 1
      %v1942 = vsel %vm1834, %v1937, %v1941
      %v1943 = vshrl.u32 %v1828, 16
      %v1945 = vor.u32 %v1943, %v1941
      %v1947 = vshll.u32 %v1829, 16
      %v1949 = vrot.slane %v1947, 1
      %v1950 = vsel %vm1834, %v1945, %v1949
      %v1951 = vshrl.u32 %v1829, 16
      %v1953 = vor.u32 %v1951, %v1949
      %v1955 = vshll.u32 %v1830, 16
      %v1957 = vrot.slane %v1955, 1
      %v1958 = vsel %vm1834, %v1953, %v1957
      %v1959 = vshrl.u32 %v1830, 16
      %v1961 = vor.u32 %v1959, %v1957
      %v1963 = vshll.u32 %v1831, 16
      %v1965 = vrot.slane %v1963, 1
      %v1966 = vsel %vm1834, %v1961, %v1965
      %v1967 = vshrl.u32 %v1831, 16
      %v1969 = vor.u32 %v1967, %v1965
      %v1971 = vshll.u32 %v1832, 16
      %v1973 = vrot.slane %v1971, 1
      %v1974 = vsel %vm1834, %v1969, %v1973
      %v1975 = vshrl.u32 %v1832, 16
      %v1977 = vor.u32 %v1975, %v1973
      %v1979 = vshll.u32 %v1833, 16
      %v1981 = vrot.slane %v1979, 1
      %v1982 = vsel %vm1834, %v1977, %v1981
      %vm1983 = vcmask 64512
      %v1985 = vsel %vm1983, %v1846, 0
      %v1988 = vsel %vm1983, %v1854, 0
      %v1991 = vsel %vm1983, %v1862, 0
      %v1994 = vsel %vm1983, %v1870, 0
      %v1997 = vsel %vm1983, %v1878, 0
      %v2000 = vsel %vm1983, %v1886, 0
      %v2003 = vsel %vm1983, %v1894, 0
      %v2006 = vsel %vm1983, %v1902, 0
      %v2009 = vsel %vm1983, %v1910, 0
      %v2012 = vsel %vm1983, %v1918, 0
      %v2015 = vsel %vm1983, %v1926, 0
      %v2018 = vsel %vm1983, %v1934, 0
      %v2021 = vsel %vm1983, %v1942, 0
      %v2024 = vsel %vm1983, %v1950, 0
      %v2027 = vsel %vm1983, %v1958, 0
      %v2030 = vsel %vm1983, %v1966, 0
      %v2033 = vsel %vm1983, %v1974, 0
      %v2036 = vsel %vm1983, %v1982, 0
      %vm2038 = vcmask 1043456
      %v2040 = vsel %vm2038, %v1740, 0
      %2042 = vmatprep.subr.bf16.mxu0 0
      %2043 = vmatpush1.bf16.msra.mxu0 0
      %2044 = vmatprep.subr.bf16.mxu0 0
      %2045 = vmatpush1.bf16.msra.mxu0 0
      %2046 = vmatprep.subr.bf16.mxu0 0
      %2047 = vmatpush1.bf16.msra.mxu0 0
      %2048 = vmatprep.subr.bf16.mxu0 0
      %2049 = vmatpush1.bf16.msra.mxu0 0
      %2050 = vmatprep.subr.bf16.mxu0 0
      %2051 = vmatpush1.bf16.msra.mxu0 0
      %2052 = vmatprep.subr.bf16.mxu0 0
      %2053 = vmatpush1.bf16.msra.mxu0 0
      %2054 = vmatprep.subr.bf16.mxu0 0
      %2055 = vmatpush1.bf16.msra.mxu0 0
      %2056 = vmatprep.subr.bf16.mxu0 0
      %2057 = vmatpush1.bf16.msra.mxu0 %v2040
      %2058 = vmatprep.subr.bf16.mxu0 0
      %2059 = vmatpush2.bf16.msra.mxu0 0
      %2060 = vmatprep.subr.bf16.mxu0 0
      %2061 = vmatpush2.bf16.msra.mxu0 0
      %2062 = vmatprep.subr.bf16.mxu0 0
      %2063 = vmatpush2.bf16.msra.mxu0 0
      %2064 = vmatprep.subr.bf16.mxu0 0
      %2065 = vmatpush2.bf16.msra.mxu0 0
      %2066 = vmatprep.subr.bf16.mxu0 0
      %2067 = vmatpush2.bf16.msra.mxu0 0
      %2068 = vmatprep.subr.bf16.mxu0 0
      %2069 = vmatpush2.bf16.msra.mxu0 0
      %2070 = vmatprep.subr.bf16.mxu0 0
      %2071 = vmatpush2.bf16.msra.mxu0 0
      %2072 = vmatprep.subr.bf16.mxu0 0
      %2073 = vmatpush2.bf16.msra.mxu0 0
      %2074 = vmatprep.mubr.bf16.mxu0 0
      %2075 = vmatmul.mubr.bf16.gmra.mxu0 %v1985
      %v2076 = vpop.f32.mrf.mxu0
      %v2077 = vadd.f32 0.0, %v2076
      %v2078 = vpop.f32.mrf.mxu0
      %v2079 = vpop.f32.mrf.mxu0
      %v2080 = vadd.f32 0.0, %v2079
      %v2081 = vpop.f32.mrf.mxu0
      %2082 = vmatprep.mubr.bf16.mxu0 0
      %2083 = vmatmul.mubr.bf16.gmra.mxu0 %v1988
      %v2084 = vpop.f32.mrf.mxu0
      %v2085 = vadd.f32 0.0, %v2084
      %v2086 = vpop.f32.mrf.mxu0
      %v2087 = vpop.f32.mrf.mxu0
      %v2088 = vadd.f32 0.0, %v2087
      %v2089 = vpop.f32.mrf.mxu0
      %2090 = vmatprep.mubr.bf16.mxu0 0
      %2091 = vmatmul.mubr.bf16.gmra.mxu0 %v1991
      %v2092 = vpop.f32.mrf.mxu0
      %v2093 = vadd.f32 0.0, %v2092
      %v2094 = vpop.f32.mrf.mxu0
      %v2095 = vpop.f32.mrf.mxu0
      %v2096 = vadd.f32 0.0, %v2095
      %v2097 = vpop.f32.mrf.mxu0
      %2098 = vmatprep.mubr.bf16.mxu0 0
      %2099 = vmatmul.mubr.bf16.gmra.mxu0 %v1994
      %v2100 = vpop.f32.mrf.mxu0
      %v2101 = vadd.f32 0.0, %v2100
      %v2102 = vpop.f32.mrf.mxu0
      %v2103 = vpop.f32.mrf.mxu0
      %v2104 = vadd.f32 0.0, %v2103
      %v2105 = vpop.f32.mrf.mxu0
      %2106 = vmatprep.mubr.bf16.mxu0 0
      %2107 = vmatmul.mubr.bf16.gmra.mxu0 %v1997
      %v2108 = vpop.f32.mrf.mxu0
      %v2109 = vadd.f32 0.0, %v2108
      %v2110 = vpop.f32.mrf.mxu0
      %v2111 = vpop.f32.mrf.mxu0
      %v2112 = vadd.f32 0.0, %v2111
      %v2113 = vpop.f32.mrf.mxu0
      %2114 = vmatprep.mubr.bf16.mxu0 0
      %2115 = vmatmul.mubr.bf16.gmra.mxu0 %v2000
      %v2116 = vpop.f32.mrf.mxu0
      %v2117 = vadd.f32 0.0, %v2116
      %v2118 = vpop.f32.mrf.mxu0
      %v2119 = vpop.f32.mrf.mxu0
      %v2120 = vadd.f32 0.0, %v2119
      %v2121 = vpop.f32.mrf.mxu0
      %2122 = vmatprep.mubr.bf16.mxu0 0
      %2123 = vmatmul.mubr.bf16.gmra.mxu0 %v2003
      %v2124 = vpop.f32.mrf.mxu0
      %v2125 = vadd.f32 0.0, %v2124
      %v2126 = vpop.f32.mrf.mxu0
      %v2127 = vpop.f32.mrf.mxu0
      %v2128 = vadd.f32 0.0, %v2127
      %v2129 = vpop.f32.mrf.mxu0
      %2130 = vmatprep.mubr.bf16.mxu0 0
      %2131 = vmatmul.mubr.bf16.gmra.mxu0 %v2006
      %v2132 = vpop.f32.mrf.mxu0
      %v2133 = vadd.f32 0.0, %v2132
      %v2134 = vpop.f32.mrf.mxu0
      %v2135 = vpop.f32.mrf.mxu0
      %v2136 = vadd.f32 0.0, %v2135
      %v2137 = vpop.f32.mrf.mxu0
      %2138 = vmatprep.mubr.bf16.mxu0 0
      %2139 = vmatmul.mubr.bf16.gmra.mxu0 %v2009
      %v2140 = vpop.f32.mrf.mxu0
      %v2141 = vadd.f32 0.0, %v2140
      %v2142 = vpop.f32.mrf.mxu0
      %v2143 = vpop.f32.mrf.mxu0
      %v2144 = vadd.f32 0.0, %v2143
      %v2145 = vpop.f32.mrf.mxu0
      %2146 = vmatprep.mubr.bf16.mxu0 0
      %2147 = vmatmul.mubr.bf16.gmra.mxu0 %v2012
      %v2148 = vpop.f32.mrf.mxu0
      %v2149 = vadd.f32 0.0, %v2148
      %v2150 = vpop.f32.mrf.mxu0
      %v2151 = vpop.f32.mrf.mxu0
      %v2152 = vadd.f32 0.0, %v2151
      %v2153 = vpop.f32.mrf.mxu0
      %2154 = vmatprep.mubr.bf16.mxu0 0
      %2155 = vmatmul.mubr.bf16.gmra.mxu0 %v2015
      %v2156 = vpop.f32.mrf.mxu0
      %v2157 = vadd.f32 0.0, %v2156
      %v2158 = vpop.f32.mrf.mxu0
      %v2159 = vpop.f32.mrf.mxu0
      %v2160 = vadd.f32 0.0, %v2159
      %v2161 = vpop.f32.mrf.mxu0
      %2162 = vmatprep.mubr.bf16.mxu0 0
      %2163 = vmatmul.mubr.bf16.gmra.mxu0 %v2018
      %v2164 = vpop.f32.mrf.mxu0
      %v2165 = vadd.f32 0.0, %v2164
      %v2166 = vpop.f32.mrf.mxu0
      %v2167 = vpop.f32.mrf.mxu0
      %v2168 = vadd.f32 0.0, %v2167
      %v2169 = vpop.f32.mrf.mxu0
      %2170 = vmatprep.mubr.bf16.mxu0 0
      %2171 = vmatmul.mubr.bf16.gmra.mxu0 %v2021
      %v2172 = vpop.f32.mrf.mxu0
      %v2173 = vadd.f32 0.0, %v2172
      %v2174 = vpop.f32.mrf.mxu0
      %v2175 = vpop.f32.mrf.mxu0
      %v2176 = vadd.f32 0.0, %v2175
      %v2177 = vpop.f32.mrf.mxu0
      %2178 = vmatprep.mubr.bf16.mxu0 0
      %2179 = vmatmul.mubr.bf16.gmra.mxu0 %v2024
      %v2180 = vpop.f32.mrf.mxu0
      %v2181 = vadd.f32 0.0, %v2180
      %v2182 = vpop.f32.mrf.mxu0
      %v2183 = vpop.f32.mrf.mxu0
      %v2184 = vadd.f32 0.0, %v2183
      %v2185 = vpop.f32.mrf.mxu0
      %2186 = vmatprep.mubr.bf16.mxu0 0
      %2187 = vmatmul.mubr.bf16.gmra.mxu0 %v2027
      %v2188 = vpop.f32.mrf.mxu0
      %v2189 = vadd.f32 0.0, %v2188
      %v2190 = vpop.f32.mrf.mxu0
      %v2191 = vpop.f32.mrf.mxu0
      %v2192 = vadd.f32 0.0, %v2191
      %v2193 = vpop.f32.mrf.mxu0
      %2194 = vmatprep.mubr.bf16.mxu0 0
      %2195 = vmatmul.mubr.bf16.gmra.mxu0 %v2030
      %v2196 = vpop.f32.mrf.mxu0
      %v2197 = vadd.f32 0.0, %v2196
      %v2198 = vpop.f32.mrf.mxu0
      %v2199 = vpop.f32.mrf.mxu0
      %v2200 = vadd.f32 0.0, %v2199
      %v2201 = vpop.f32.mrf.mxu0
      %2202 = vmatprep.mubr.bf16.mxu0 0
      %2203 = vmatmul.mubr.bf16.gmra.mxu0 %v2033
      %v2204 = vpop.f32.mrf.mxu0
      %v2205 = vadd.f32 0.0, %v2204
      %v2206 = vpop.f32.mrf.mxu0
      %v2207 = vpop.f32.mrf.mxu0
      %v2208 = vadd.f32 0.0, %v2207
      %v2209 = vpop.f32.mrf.mxu0
      %2210 = vmatprep.mubr.bf16.mxu0 0
      %2211 = vmatmul.mubr.bf16.gmra.mxu0 %v2036
      %v2212 = vpop.f32.mrf.mxu0
      %v2213 = vadd.f32 0.0, %v2212
      %v2214 = vpop.f32.mrf.mxu0
      %v2215 = vpop.f32.mrf.mxu0
      %v2216 = vadd.f32 0.0, %v2215
      %v2217 = vpop.f32.mrf.mxu0
      %2218 = vdwg.mxu0
      %v2219 = vsel %vm1983, %v1815, 0
      %v2221 = vsel %vm1983, %v1816, 0
      %v2223 = vsel %vm1983, %v1817, 0
      %v2225 = vsel %vm1983, %v1818, 0
      %v2227 = vsel %vm1983, %v1819, 0
      %v2229 = vsel %vm1983, %v1820, 0
      %v2231 = vsel %vm1983, %v1821, 0
      %v2233 = vsel %vm1983, %v1822, 0
      %v2235 = vsel %vm1983, %v1823, 0
      %v2237 = vsel %vm1983, %v1824, 0
      %v2239 = vsel %vm1983, %v1825, 0
      %v2241 = vsel %vm1983, %v1826, 0
      %v2243 = vsel %vm1983, %v1827, 0
      %v2245 = vsel %vm1983, %v1828, 0
      %v2247 = vsel %vm1983, %v1829, 0
      %v2249 = vsel %vm1983, %v1830, 0
      %v2251 = vsel %vm1983, %v1831, 0
      %v2253 = vsel %vm1983, %v1832, 0
      %v2256 = vsel %vm2038, %v1737, 0
      %2258 = vmatprep.subr.bf16.mxu0 0
      %2259 = vmatpush1.bf16.msra.mxu0 0
      %2260 = vmatprep.subr.bf16.mxu0 0
      %2261 = vmatpush1.bf16.msra.mxu0 0
      %2262 = vmatprep.subr.bf16.mxu0 0
      %2263 = vmatpush1.bf16.msra.mxu0 0
      %2264 = vmatprep.subr.bf16.mxu0 0
      %2265 = vmatpush1.bf16.msra.mxu0 0
      %2266 = vmatprep.subr.bf16.mxu0 0
      %2267 = vmatpush1.bf16.msra.mxu0 0
      %2268 = vmatprep.subr.bf16.mxu0 0
      %2269 = vmatpush1.bf16.msra.mxu0 0
      %2270 = vmatprep.subr.bf16.mxu0 0
      %2271 = vmatpush1.bf16.msra.mxu0 0
      %2272 = vmatprep.subr.bf16.mxu0 0
      %2273 = vmatpush1.bf16.msra.mxu0 %v2256
      %2274 = vmatprep.subr.bf16.mxu0 0
      %2275 = vmatpush2.bf16.msra.mxu0 0
      %2276 = vmatprep.subr.bf16.mxu0 0
      %2277 = vmatpush2.bf16.msra.mxu0 0
      %2278 = vmatprep.subr.bf16.mxu0 0
      %2279 = vmatpush2.bf16.msra.mxu0 0
      %2280 = vmatprep.subr.bf16.mxu0 0
      %2281 = vmatpush2.bf16.msra.mxu0 0
      %2282 = vmatprep.subr.bf16.mxu0 0
      %2283 = vmatpush2.bf16.msra.mxu0 0
      %2284 = vmatprep.subr.bf16.mxu0 0
      %2285 = vmatpush2.bf16.msra.mxu0 0
      %2286 = vmatprep.subr.bf16.mxu0 0
      %2287 = vmatpush2.bf16.msra.mxu0 0
      %2288 = vmatprep.subr.bf16.mxu0 0
      %2289 = vmatpush2.bf16.msra.mxu0 0
      %2290 = vmatprep.mubr.bf16.mxu0 0
      %2291 = vmatmul.mubr.bf16.gmra.mxu0 %v2219
      %v2292 = vpop.f32.mrf.mxu0
      %v2293 = vadd.f32 %v2077, %v2292
      %v2294 = vpop.f32.mrf.mxu0
      %v2295 = vpop.f32.mrf.mxu0
      %v2296 = vadd.f32 %v2080, %v2295
      %v2297 = vpop.f32.mrf.mxu0
      %2298 = vmatprep.mubr.bf16.mxu0 0
      %2299 = vmatmul.mubr.bf16.gmra.mxu0 %v2221
      %v2300 = vpop.f32.mrf.mxu0
      %v2301 = vadd.f32 %v2085, %v2300
      %v2302 = vpop.f32.mrf.mxu0
      %v2303 = vpop.f32.mrf.mxu0
      %v2304 = vadd.f32 %v2088, %v2303
      %v2305 = vpop.f32.mrf.mxu0
      %2306 = vmatprep.mubr.bf16.mxu0 0
      %2307 = vmatmul.mubr.bf16.gmra.mxu0 %v2223
      %v2308 = vpop.f32.mrf.mxu0
      %v2309 = vadd.f32 %v2093, %v2308
      %v2310 = vpop.f32.mrf.mxu0
      %v2311 = vpop.f32.mrf.mxu0
      %v2312 = vadd.f32 %v2096, %v2311
      %v2313 = vpop.f32.mrf.mxu0
      %2314 = vmatprep.mubr.bf16.mxu0 0
      %2315 = vmatmul.mubr.bf16.gmra.mxu0 %v2225
      %v2316 = vpop.f32.mrf.mxu0
      %v2317 = vadd.f32 %v2101, %v2316
      %v2318 = vpop.f32.mrf.mxu0
      %v2319 = vpop.f32.mrf.mxu0
      %v2320 = vadd.f32 %v2104, %v2319
      %v2321 = vpop.f32.mrf.mxu0
      %2322 = vmatprep.mubr.bf16.mxu0 0
      %2323 = vmatmul.mubr.bf16.gmra.mxu0 %v2227
      %v2324 = vpop.f32.mrf.mxu0
      %v2325 = vadd.f32 %v2109, %v2324
      %v2326 = vpop.f32.mrf.mxu0
      %v2327 = vpop.f32.mrf.mxu0
      %v2328 = vadd.f32 %v2112, %v2327
      %v2329 = vpop.f32.mrf.mxu0
      %2330 = vmatprep.mubr.bf16.mxu0 0
      %2331 = vmatmul.mubr.bf16.gmra.mxu0 %v2229
      %v2332 = vpop.f32.mrf.mxu0
      %v2333 = vadd.f32 %v2117, %v2332
      %v2334 = vpop.f32.mrf.mxu0
      %v2335 = vpop.f32.mrf.mxu0
      %v2336 = vadd.f32 %v2120, %v2335
      %v2337 = vpop.f32.mrf.mxu0
      %2338 = vmatprep.mubr.bf16.mxu0 0
      %2339 = vmatmul.mubr.bf16.gmra.mxu0 %v2231
      %v2340 = vpop.f32.mrf.mxu0
      %v2341 = vadd.f32 %v2125, %v2340
      %v2342 = vpop.f32.mrf.mxu0
      %v2343 = vpop.f32.mrf.mxu0
      %v2344 = vadd.f32 %v2128, %v2343
      %v2345 = vpop.f32.mrf.mxu0
      %2346 = vmatprep.mubr.bf16.mxu0 0
      %2347 = vmatmul.mubr.bf16.gmra.mxu0 %v2233
      %v2348 = vpop.f32.mrf.mxu0
      %v2349 = vadd.f32 %v2133, %v2348
      %v2350 = vpop.f32.mrf.mxu0
      %v2351 = vpop.f32.mrf.mxu0
      %v2352 = vadd.f32 %v2136, %v2351
      %v2353 = vpop.f32.mrf.mxu0
      %2354 = vmatprep.mubr.bf16.mxu0 0
      %2355 = vmatmul.mubr.bf16.gmra.mxu0 %v2235
      %v2356 = vpop.f32.mrf.mxu0
      %v2357 = vadd.f32 %v2141, %v2356
      %v2358 = vpop.f32.mrf.mxu0
      %v2359 = vpop.f32.mrf.mxu0
      %v2360 = vadd.f32 %v2144, %v2359
      %v2361 = vpop.f32.mrf.mxu0
      %2362 = vmatprep.mubr.bf16.mxu0 0
      %2363 = vmatmul.mubr.bf16.gmra.mxu0 %v2237
      %v2364 = vpop.f32.mrf.mxu0
      %v2365 = vadd.f32 %v2149, %v2364
      %v2366 = vpop.f32.mrf.mxu0
      %v2367 = vpop.f32.mrf.mxu0
      %v2368 = vadd.f32 %v2152, %v2367
      %v2369 = vpop.f32.mrf.mxu0
      %2370 = vmatprep.mubr.bf16.mxu0 0
      %2371 = vmatmul.mubr.bf16.gmra.mxu0 %v2239
      %v2372 = vpop.f32.mrf.mxu0
      %v2373 = vadd.f32 %v2157, %v2372
      %v2374 = vpop.f32.mrf.mxu0
      %v2375 = vpop.f32.mrf.mxu0
      %v2376 = vadd.f32 %v2160, %v2375
      %v2377 = vpop.f32.mrf.mxu0
      %2378 = vmatprep.mubr.bf16.mxu0 0
      %2379 = vmatmul.mubr.bf16.gmra.mxu0 %v2241
      %v2380 = vpop.f32.mrf.mxu0
      %v2381 = vadd.f32 %v2165, %v2380
      %v2382 = vpop.f32.mrf.mxu0
      %v2383 = vpop.f32.mrf.mxu0
      %v2384 = vadd.f32 %v2168, %v2383
      %v2385 = vpop.f32.mrf.mxu0
      %2386 = vmatprep.mubr.bf16.mxu0 0
      %2387 = vmatmul.mubr.bf16.gmra.mxu0 %v2243
      %v2388 = vpop.f32.mrf.mxu0
      %v2389 = vadd.f32 %v2173, %v2388
      %v2390 = vpop.f32.mrf.mxu0
      %v2391 = vpop.f32.mrf.mxu0
      %v2392 = vadd.f32 %v2176, %v2391
      %v2393 = vpop.f32.mrf.mxu0
      %2394 = vmatprep.mubr.bf16.mxu0 0
      %2395 = vmatmul.mubr.bf16.gmra.mxu0 %v2245
      %v2396 = vpop.f32.mrf.mxu0
      %v2397 = vadd.f32 %v2181, %v2396
      %v2398 = vpop.f32.mrf.mxu0
      %v2399 = vpop.f32.mrf.mxu0
      %v2400 = vadd.f32 %v2184, %v2399
      %v2401 = vpop.f32.mrf.mxu0
      %2402 = vmatprep.mubr.bf16.mxu0 0
      %2403 = vmatmul.mubr.bf16.gmra.mxu0 %v2247
      %v2404 = vpop.f32.mrf.mxu0
      %v2405 = vadd.f32 %v2189, %v2404
      %v2406 = vpop.f32.mrf.mxu0
      %v2407 = vpop.f32.mrf.mxu0
      %v2408 = vadd.f32 %v2192, %v2407
      %v2409 = vpop.f32.mrf.mxu0
      %2410 = vmatprep.mubr.bf16.mxu0 0
      %2411 = vmatmul.mubr.bf16.gmra.mxu0 %v2249
      %v2412 = vpop.f32.mrf.mxu0
      %v2413 = vadd.f32 %v2197, %v2412
      %v2414 = vpop.f32.mrf.mxu0
      %v2415 = vpop.f32.mrf.mxu0
      %v2416 = vadd.f32 %v2200, %v2415
      %v2417 = vpop.f32.mrf.mxu0
      %2418 = vmatprep.mubr.bf16.mxu0 0
      %2419 = vmatmul.mubr.bf16.gmra.mxu0 %v2251
      %v2420 = vpop.f32.mrf.mxu0
      %v2421 = vadd.f32 %v2205, %v2420
      %v2422 = vpop.f32.mrf.mxu0
      %v2423 = vpop.f32.mrf.mxu0
      %v2424 = vadd.f32 %v2208, %v2423
      %v2425 = vpop.f32.mrf.mxu0
      %2426 = vmatprep.mubr.bf16.mxu0 0
      %2427 = vmatmul.mubr.bf16.gmra.mxu0 %v2253
      %v2428 = vpop.f32.mrf.mxu0
      %v2429 = vadd.f32 %v2213, %v2428
      %v2430 = vpop.f32.mrf.mxu0
      %v2431 = vpop.f32.mrf.mxu0
      %v2432 = vadd.f32 %v2216, %v2431
      %v2433 = vpop.f32.mrf.mxu0
      %2434 = vdwg.mxu0
      %v2435 = vld [vmem:[#allocation2] sm:$0xe]
      %s2436 = scalar_lea.vmem %s5, 8
      %v2437 = vld [vmem:[%s2436] sm:$0xf]
      %v2439 = vunpack.c.l.b16 %v2435
      %v2440 = vpack.c.b16 %v1779, %v2439
      %vm2441 = vcmask 1046528
      %v2442 = vrot.slane %v2440, 1
      %v2443 = vrot.slane %v1816, 1
      %v2444 = vsel %vm2441, %v2442, %v2443
      %v2445 = vrot.slane %v1817, 1
      %v2446 = vsel %vm2441, %v2443, %v2445
      %v2447 = vrot.slane %v1818, 1
      %v2448 = vsel %vm2441, %v2445, %v2447
      %v2449 = vrot.slane %v1819, 1
      %v2450 = vsel %vm2441, %v2447, %v2449
      %v2451 = vrot.slane %v1820, 1
      %v2452 = vsel %vm2441, %v2449, %v2451
      %v2453 = vrot.slane %v1821, 1
      %v2454 = vsel %vm2441, %v2451, %v2453
      %v2455 = vrot.slane %v1822, 1
      %v2456 = vsel %vm2441, %v2453, %v2455
      %v2457 = vrot.slane %v1823, 1
      %v2458 = vsel %vm2441, %v2455, %v2457
      %v2459 = vrot.slane %v1824, 1
      %v2460 = vsel %vm2441, %v2457, %v2459
      %v2461 = vrot.slane %v1825, 1
      %v2462 = vsel %vm2441, %v2459, %v2461
      %v2463 = vrot.slane %v1826, 1
      %v2464 = vsel %vm2441, %v2461, %v2463
      %v2465 = vrot.slane %v1827, 1
      %v2466 = vsel %vm2441, %v2463, %v2465
      %v2467 = vrot.slane %v1828, 1
      %v2468 = vsel %vm2441, %v2465, %v2467
      %v2469 = vrot.slane %v1829, 1
      %v2470 = vsel %vm2441, %v2467, %v2469
      %v2471 = vrot.slane %v1830, 1
      %v2472 = vsel %vm2441, %v2469, %v2471
      %v2473 = vrot.slane %v1831, 1
      %v2474 = vsel %vm2441, %v2471, %v2473
      %v2475 = vrot.slane %v1832, 1
      %v2476 = vsel %vm2441, %v2473, %v2475
      %v2477 = vrot.slane %v1833, 1
      %v2478 = vsel %vm2441, %v2475, %v2477
      %v2480 = vsel %vm1983, %v2444, 0
      %v2483 = vsel %vm1983, %v2446, 0
      %v2486 = vsel %vm1983, %v2448, 0
      %v2489 = vsel %vm1983, %v2450, 0
      %v2492 = vsel %vm1983, %v2452, 0
      %v2495 = vsel %vm1983, %v2454, 0
      %v2498 = vsel %vm1983, %v2456, 0
      %v2501 = vsel %vm1983, %v2458, 0
      %v2504 = vsel %vm1983, %v2460, 0
      %v2507 = vsel %vm1983, %v2462, 0
      %v2510 = vsel %vm1983, %v2464, 0
      %v2513 = vsel %vm1983, %v2466, 0
      %v2516 = vsel %vm1983, %v2468, 0
      %v2519 = vsel %vm1983, %v2470, 0
      %v2522 = vsel %vm1983, %v2472, 0
      %v2525 = vsel %vm1983, %v2474, 0
      %v2528 = vsel %vm1983, %v2476, 0
      %v2531 = vsel %vm1983, %v2478, 0
      %v2534 = vsel %vm2038, %v2437, 0
      %2536 = vmatprep.subr.bf16.mxu0 0
      %2537 = vmatpush1.bf16.msra.mxu0 0
      %2538 = vmatprep.subr.bf16.mxu0 0
      %2539 = vmatpush1.bf16.msra.mxu0 0
      %2540 = vmatprep.subr.bf16.mxu0 0
      %2541 = vmatpush1.bf16.msra.mxu0 0
      %2542 = vmatprep.subr.bf16.mxu0 0
      %2543 = vmatpush1.bf16.msra.mxu0 0
      %2544 = vmatprep.subr.bf16.mxu0 0
      %2545 = vmatpush1.bf16.msra.mxu0 0
      %2546 = vmatprep.subr.bf16.mxu0 0
      %2547 = vmatpush1.bf16.msra.mxu0 0
      %2548 = vmatprep.subr.bf16.mxu0 0
      %2549 = vmatpush1.bf16.msra.mxu0 0
      %2550 = vmatprep.subr.bf16.mxu0 0
      %2551 = vmatpush1.bf16.msra.mxu0 %v2534
      %2552 = vmatprep.subr.bf16.mxu0 0
      %2553 = vmatpush2.bf16.msra.mxu0 0
      %2554 = vmatprep.subr.bf16.mxu0 0
      %2555 = vmatpush2.bf16.msra.mxu0 0
      %2556 = vmatprep.subr.bf16.mxu0 0
      %2557 = vmatpush2.bf16.msra.mxu0 0
      %2558 = vmatprep.subr.bf16.mxu0 0
      %2559 = vmatpush2.bf16.msra.mxu0 0
      %2560 = vmatprep.subr.bf16.mxu0 0
      %2561 = vmatpush2.bf16.msra.mxu0 0
      %2562 = vmatprep.subr.bf16.mxu0 0
      %2563 = vmatpush2.bf16.msra.mxu0 0
      %2564 = vmatprep.subr.bf16.mxu0 0
      %2565 = vmatpush2.bf16.msra.mxu0 0
      %2566 = vmatprep.subr.bf16.mxu0 0
      %2567 = vmatpush2.bf16.msra.mxu0 0
      %2568 = vmatprep.mubr.bf16.mxu0 0
      %2569 = vmatmul.mubr.bf16.gmra.mxu0 %v2480
      %v2570 = vpop.f32.mrf.mxu0
      %v2571 = vadd.f32 0.0, %v2570
      %v2572 = vpop.f32.mrf.mxu0
      %v2573 = vpop.f32.mrf.mxu0
      %v2574 = vadd.f32 0.0, %v2573
      %v2575 = vpop.f32.mrf.mxu0
      %2576 = vmatprep.mubr.bf16.mxu0 0
      %2577 = vmatmul.mubr.bf16.gmra.mxu0 %v2483
      %v2578 = vpop.f32.mrf.mxu0
      %v2579 = vadd.f32 0.0, %v2578
      %v2580 = vpop.f32.mrf.mxu0
      %v2581 = vpop.f32.mrf.mxu0
      %v2582 = vadd.f32 0.0, %v2581
      %v2583 = vpop.f32.mrf.mxu0
      %2584 = vmatprep.mubr.bf16.mxu0 0
      %2585 = vmatmul.mubr.bf16.gmra.mxu0 %v2486
      %v2586 = vpop.f32.mrf.mxu0
      %v2587 = vadd.f32 0.0, %v2586
      %v2588 = vpop.f32.mrf.mxu0
      %v2589 = vpop.f32.mrf.mxu0
      %v2590 = vadd.f32 0.0, %v2589
      %v2591 = vpop.f32.mrf.mxu0
      %2592 = vmatprep.mubr.bf16.mxu0 0
      %2593 = vmatmul.mubr.bf16.gmra.mxu0 %v2489
      %v2594 = vpop.f32.mrf.mxu0
      %v2595 = vadd.f32 0.0, %v2594
      %v2596 = vpop.f32.mrf.mxu0
      %v2597 = vpop.f32.mrf.mxu0
      %v2598 = vadd.f32 0.0, %v2597
      %v2599 = vpop.f32.mrf.mxu0
      %2600 = vmatprep.mubr.bf16.mxu0 0
      %2601 = vmatmul.mubr.bf16.gmra.mxu0 %v2492
      %v2602 = vpop.f32.mrf.mxu0
      %v2603 = vadd.f32 0.0, %v2602
      %v2604 = vpop.f32.mrf.mxu0
      %v2605 = vpop.f32.mrf.mxu0
      %v2606 = vadd.f32 0.0, %v2605
      %v2607 = vpop.f32.mrf.mxu0
      %2608 = vmatprep.mubr.bf16.mxu0 0
      %2609 = vmatmul.mubr.bf16.gmra.mxu0 %v2495
      %v2610 = vpop.f32.mrf.mxu0
      %v2611 = vadd.f32 0.0, %v2610
      %v2612 = vpop.f32.mrf.mxu0
      %v2613 = vpop.f32.mrf.mxu0
      %v2614 = vadd.f32 0.0, %v2613
      %v2615 = vpop.f32.mrf.mxu0
      %2616 = vmatprep.mubr.bf16.mxu0 0
      %2617 = vmatmul.mubr.bf16.gmra.mxu0 %v2498
      %v2618 = vpop.f32.mrf.mxu0
      %v2619 = vadd.f32 0.0, %v2618
      %v2620 = vpop.f32.mrf.mxu0
      %v2621 = vpop.f32.mrf.mxu0
      %v2622 = vadd.f32 0.0, %v2621
      %v2623 = vpop.f32.mrf.mxu0
      %2624 = vmatprep.mubr.bf16.mxu0 0
      %2625 = vmatmul.mubr.bf16.gmra.mxu0 %v2501
      %v2626 = vpop.f32.mrf.mxu0
      %v2627 = vadd.f32 0.0, %v2626
      %v2628 = vpop.f32.mrf.mxu0
      %v2629 = vpop.f32.mrf.mxu0
      %v2630 = vadd.f32 0.0, %v2629
      %v2631 = vpop.f32.mrf.mxu0
      %2632 = vmatprep.mubr.bf16.mxu0 0
      %2633 = vmatmul.mubr.bf16.gmra.mxu0 %v2504
      %v2634 = vpop.f32.mrf.mxu0
      %v2635 = vadd.f32 0.0, %v2634
      %v2636 = vpop.f32.mrf.mxu0
      %v2637 = vpop.f32.mrf.mxu0
      %v2638 = vadd.f32 0.0, %v2637
      %v2639 = vpop.f32.mrf.mxu0
      %2640 = vmatprep.mubr.bf16.mxu0 0
      %2641 = vmatmul.mubr.bf16.gmra.mxu0 %v2507
      %v2642 = vpop.f32.mrf.mxu0
      %v2643 = vadd.f32 0.0, %v2642
      %v2644 = vpop.f32.mrf.mxu0
      %v2645 = vpop.f32.mrf.mxu0
      %v2646 = vadd.f32 0.0, %v2645
      %v2647 = vpop.f32.mrf.mxu0
      %2648 = vmatprep.mubr.bf16.mxu0 0
      %2649 = vmatmul.mubr.bf16.gmra.mxu0 %v2510
      %v2650 = vpop.f32.mrf.mxu0
      %v2651 = vadd.f32 0.0, %v2650
      %v2652 = vpop.f32.mrf.mxu0
      %v2653 = vpop.f32.mrf.mxu0
      %v2654 = vadd.f32 0.0, %v2653
      %v2655 = vpop.f32.mrf.mxu0
      %2656 = vmatprep.mubr.bf16.mxu0 0
      %2657 = vmatmul.mubr.bf16.gmra.mxu0 %v2513
      %v2658 = vpop.f32.mrf.mxu0
      %v2659 = vadd.f32 0.0, %v2658
      %v2660 = vpop.f32.mrf.mxu0
      %v2661 = vpop.f32.mrf.mxu0
      %v2662 = vadd.f32 0.0, %v2661
      %v2663 = vpop.f32.mrf.mxu0
      %2664 = vmatprep.mubr.bf16.mxu0 0
      %2665 = vmatmul.mubr.bf16.gmra.mxu0 %v2516
      %v2666 = vpop.f32.mrf.mxu0
      %v2667 = vadd.f32 0.0, %v2666
      %v2668 = vpop.f32.mrf.mxu0
      %v2669 = vpop.f32.mrf.mxu0
      %v2670 = vadd.f32 0.0, %v2669
      %v2671 = vpop.f32.mrf.mxu0
      %2672 = vmatprep.mubr.bf16.mxu0 0
      %2673 = vmatmul.mubr.bf16.gmra.mxu0 %v2519
      %v2674 = vpop.f32.mrf.mxu0
      %v2675 = vadd.f32 0.0, %v2674
      %v2676 = vpop.f32.mrf.mxu0
      %v2677 = vpop.f32.mrf.mxu0
      %v2678 = vadd.f32 0.0, %v2677
      %v2679 = vpop.f32.mrf.mxu0
      %2680 = vmatprep.mubr.bf16.mxu0 0
      %2681 = vmatmul.mubr.bf16.gmra.mxu0 %v2522
      %v2682 = vpop.f32.mrf.mxu0
      %v2683 = vadd.f32 0.0, %v2682
      %v2684 = vpop.f32.mrf.mxu0
      %v2685 = vpop.f32.mrf.mxu0
      %v2686 = vadd.f32 0.0, %v2685
      %v2687 = vpop.f32.mrf.mxu0
      %2688 = vmatprep.mubr.bf16.mxu0 0
      %2689 = vmatmul.mubr.bf16.gmra.mxu0 %v2525
      %v2690 = vpop.f32.mrf.mxu0
      %v2691 = vadd.f32 0.0, %v2690
      %v2692 = vpop.f32.mrf.mxu0
      %v2693 = vpop.f32.mrf.mxu0
      %v2694 = vadd.f32 0.0, %v2693
      %v2695 = vpop.f32.mrf.mxu0
      %2696 = vmatprep.mubr.bf16.mxu0 0
      %2697 = vmatmul.mubr.bf16.gmra.mxu0 %v2528
      %v2698 = vpop.f32.mrf.mxu0
      %v2699 = vadd.f32 0.0, %v2698
      %v2700 = vpop.f32.mrf.mxu0
      %v2701 = vpop.f32.mrf.mxu0
      %v2702 = vadd.f32 0.0, %v2701
      %v2703 = vpop.f32.mrf.mxu0
      %2704 = vmatprep.mubr.bf16.mxu0 0
      %2705 = vmatmul.mubr.bf16.gmra.mxu0 %v2531
      %v2706 = vpop.f32.mrf.mxu0
      %v2707 = vadd.f32 0.0, %v2706
      %v2708 = vpop.f32.mrf.mxu0
      %v2709 = vpop.f32.mrf.mxu0
      %v2710 = vadd.f32 0.0, %v2709
      %v2711 = vpop.f32.mrf.mxu0
      %2712 = vdwg.mxu0
      %v2713 = vadd.f32 %v2293, %v2571
      %v2714 = vadd.f32 %v2296, %v2574
      %v2715 = vadd.f32 %v2301, %v2579
      %v2716 = vadd.f32 %v2304, %v2582
      %v2717 = vadd.f32 %v2309, %v2587
      %v2718 = vadd.f32 %v2312, %v2590
      %v2719 = vadd.f32 %v2317, %v2595
      %v2720 = vadd.f32 %v2320, %v2598
      %v2721 = vadd.f32 %v2325, %v2603
      %v2722 = vadd.f32 %v2328, %v2606
      %v2723 = vadd.f32 %v2333, %v2611
      %v2724 = vadd.f32 %v2336, %v2614
      %v2725 = vadd.f32 %v2341, %v2619
      %v2726 = vadd.f32 %v2344, %v2622
      %v2727 = vadd.f32 %v2349, %v2627
      %v2728 = vadd.f32 %v2352, %v2630
      %v2729 = vadd.f32 %v2357, %v2635
      %v2730 = vadd.f32 %v2360, %v2638
      %v2731 = vadd.f32 %v2365, %v2643
      %v2732 = vadd.f32 %v2368, %v2646
      %v2733 = vadd.f32 %v2373, %v2651
      %v2734 = vadd.f32 %v2376, %v2654
      %v2735 = vadd.f32 %v2381, %v2659
      %v2736 = vadd.f32 %v2384, %v2662
      %v2737 = vadd.f32 %v2389, %v2667
      %v2738 = vadd.f32 %v2392, %v2670
      %v2739 = vadd.f32 %v2397, %v2675
      %v2740 = vadd.f32 %v2400, %v2678
      %v2741 = vadd.f32 %v2405, %v2683
      %v2742 = vadd.f32 %v2408, %v2686
      %v2743 = vadd.f32 %v2413, %v2691
      %v2744 = vadd.f32 %v2416, %v2694
      %v2745 = vadd.f32 %v2421, %v2699
      %v2746 = vadd.f32 %v2424, %v2702
      %v2747 = vadd.f32 %v2429, %v2707
      %v2748 = vadd.f32 %v2432, %v2710
      %v2749 = vld [vmem:[#allocation2 + $0x8] sm:$0xe]
      %v2750 = vld [vmem:[#allocation2 + $0xc] sm:$0xf]
      %v2751 = vld [vmem:[#allocation2 + $0x10] sm:$0xf]
      %v2752 = vld [vmem:[#allocation2 + $0x14] sm:$0xf]
      %v2753 = vld [vmem:[#allocation2 + $0x18] sm:$0xf]
      %v2754 = vld [vmem:[#allocation2 + $0x1c] sm:$0xf]
      %v2755 = vld [vmem:[#allocation2 + $0x20] sm:$0xf]
      %v2756 = vld [vmem:[#allocation2 + $0x24] sm:$0xf]
      %v2757 = vld [vmem:[#allocation2 + $0x28] sm:$0xf]
      %v2758 = vld [vmem:[#allocation2 + $0x2c] sm:$0xf]
      %v2759 = vld [vmem:[#allocation2 + $0x30] sm:$0xf]
      %v2760 = vld [vmem:[#allocation2 + $0x34] sm:$0xf]
      %v2761 = vld [vmem:[#allocation2 + $0x38] sm:$0xf]
      %v2762 = vld [vmem:[#allocation2 + $0x3c] sm:$0xf]
      %v2763 = vld [vmem:[#allocation2 + $0x40] sm:$0xf]
      %v2764 = vld [vmem:[#allocation2 + $0x44] sm:$0xf]
      %v2765 = vld [vmem:[#allocation2 + $0x48] sm:$0xf]
      %v2766 = vld [vmem:[#allocation2 + $0x4c] sm:$0xf]
      %v2767 = vld [vmem:[#allocation2 + $0x50] sm:$0xf]
      %v2768 = vld [vmem:[#allocation2 + $0x54] sm:$0xf]
      %v2769 = vld [vmem:[#allocation2 + $0x58] sm:$0xf]
      %v2770 = vld [vmem:[#allocation2 + $0x5c] sm:$0xf]
      %v2771 = vld [vmem:[#allocation2 + $0x60] sm:$0xf]
      %v2772 = vld [vmem:[#allocation2 + $0x64] sm:$0xf]
      %v2773 = vld [vmem:[#allocation2 + $0x68] sm:$0xf]
      %v2774 = vld [vmem:[#allocation2 + $0x6c] sm:$0xf]
      %v2775 = vld [vmem:[#allocation2 + $0x70] sm:$0xf]
      %v2776 = vld [vmem:[#allocation2 + $0x74] sm:$0xf]
      %v2777 = vld [vmem:[#allocation2 + $0x78] sm:$0xf]
      %v2778 = vld [vmem:[#allocation2 + $0x7c] sm:$0xf]
      %v2779 = vld [vmem:[#allocation2 + $0x80] sm:$0xf]
      %v2780 = vld [vmem:[#allocation2 + $0x84] sm:$0xf]
      %v2781 = vld [vmem:[#allocation2 + $0x88] sm:$0xf]
      %v2782 = vld [vmem:[#allocation2 + $0x8c] sm:$0xf]
      %v2783 = vld [vmem:[#allocation2 + $0x90] sm:$0xf]
      %v2784 = vld [vmem:[#allocation2 + $0x94] sm:$0xf]
      %v2785 = vld [vmem:[#allocation2 + $0x98] sm:$0x1]
      %s2786 = scalar_lea.vmem %s5, 12
      %v2787 = vld [vmem:[%s2786] sm:$0xf]
      %v2825 = vunpack.c.l.b16 %v2749
      %v2826 = vunpack.c.l.b16 %v2750
      %v2827 = vunpack.c.l.b16 %v2751
      %v2828 = vunpack.c.l.b16 %v2752
      %v2829 = vunpack.c.l.b16 %v2753
      %v2830 = vunpack.c.l.b16 %v2754
      %v2831 = vunpack.c.l.b16 %v2755
      %v2832 = vunpack.c.l.b16 %v2756
      %v2833 = vunpack.c.l.b16 %v2757
      %v2834 = vunpack.c.l.b16 %v2758
      %v2835 = vunpack.c.l.b16 %v2759
      %v2836 = vunpack.c.l.b16 %v2760
      %v2837 = vunpack.c.l.b16 %v2761
      %v2838 = vunpack.c.l.b16 %v2762
      %v2839 = vunpack.c.l.b16 %v2763
      %v2840 = vunpack.c.l.b16 %v2764
      %v2841 = vunpack.c.l.b16 %v2765
      %v2842 = vunpack.c.l.b16 %v2766
      %v2843 = vunpack.c.l.b16 %v2767
      %v2844 = vunpack.c.l.b16 %v2768
      %v2845 = vunpack.c.l.b16 %v2769
      %v2846 = vunpack.c.l.b16 %v2770
      %v2847 = vunpack.c.l.b16 %v2771
      %v2848 = vunpack.c.l.b16 %v2772
      %v2849 = vunpack.c.l.b16 %v2773
      %v2850 = vunpack.c.l.b16 %v2774
      %v2851 = vunpack.c.l.b16 %v2775
      %v2852 = vunpack.c.l.b16 %v2776
      %v2853 = vunpack.c.l.b16 %v2777
      %v2854 = vunpack.c.l.b16 %v2778
      %v2855 = vunpack.c.l.b16 %v2779
      %v2856 = vunpack.c.l.b16 %v2780
      %v2857 = vunpack.c.l.b16 %v2781
      %v2858 = vunpack.c.l.b16 %v2782
      %v2859 = vunpack.c.l.b16 %v2783
      %v2860 = vunpack.c.l.b16 %v2784
      %v2861 = vunpack.c.l.b16 %v2785
      %v2862 = vpack.c.b16 %v2826, %v2825
      %v2863 = vpack.c.b16 %v2828, %v2827
      %v2864 = vpack.c.b16 %v2830, %v2829
      %v2865 = vpack.c.b16 %v2832, %v2831
      %v2866 = vpack.c.b16 %v2834, %v2833
      %v2867 = vpack.c.b16 %v2836, %v2835
      %v2868 = vpack.c.b16 %v2838, %v2837
      %v2869 = vpack.c.b16 %v2840, %v2839
      %v2870 = vpack.c.b16 %v2842, %v2841
      %v2871 = vpack.c.b16 %v2844, %v2843
      %v2872 = vpack.c.b16 %v2846, %v2845
      %v2873 = vpack.c.b16 %v2848, %v2847
      %v2874 = vpack.c.b16 %v2850, %v2849
      %v2875 = vpack.c.b16 %v2852, %v2851
      %v2876 = vpack.c.b16 %v2854, %v2853
      %v2877 = vpack.c.b16 %v2856, %v2855
      %v2878 = vpack.c.b16 %v2858, %v2857
      %v2879 = vpack.c.b16 %v2860, %v2859
      %v2880 = vpack.c.b16 %v2861, %v2861
      %v2881 = vrot.slane %v2862, 1
      %v2882 = vrot.slane %v2863, 1
      %v2883 = vsel %vm2441, %v2881, %v2882
      %v2884 = vrot.slane %v2864, 1
      %v2885 = vsel %vm2441, %v2882, %v2884
      %v2886 = vrot.slane %v2865, 1
      %v2887 = vsel %vm2441, %v2884, %v2886
      %v2888 = vrot.slane %v2866, 1
      %v2889 = vsel %vm2441, %v2886, %v2888
      %v2890 = vrot.slane %v2867, 1
      %v2891 = vsel %vm2441, %v2888, %v2890
      %v2892 = vrot.slane %v2868, 1
      %v2893 = vsel %vm2441, %v2890, %v2892
      %v2894 = vrot.slane %v2869, 1
      %v2895 = vsel %vm2441, %v2892, %v2894
      %v2896 = vrot.slane %v2870, 1
      %v2897 = vsel %vm2441, %v2894, %v2896
      %v2898 = vrot.slane %v2871, 1
      %v2899 = vsel %vm2441, %v2896, %v2898
      %v2900 = vrot.slane %v2872, 1
      %v2901 = vsel %vm2441, %v2898, %v2900
      %v2902 = vrot.slane %v2873, 1
      %v2903 = vsel %vm2441, %v2900, %v2902
      %v2904 = vrot.slane %v2874, 1
      %v2905 = vsel %vm2441, %v2902, %v2904
      %v2906 = vrot.slane %v2875, 1
      %v2907 = vsel %vm2441, %v2904, %v2906
      %v2908 = vrot.slane %v2876, 1
      %v2909 = vsel %vm2441, %v2906, %v2908
      %v2910 = vrot.slane %v2877, 1
      %v2911 = vsel %vm2441, %v2908, %v2910
      %v2912 = vrot.slane %v2878, 1
      %v2913 = vsel %vm2441, %v2910, %v2912
      %v2914 = vrot.slane %v2879, 1
      %v2915 = vsel %vm2441, %v2912, %v2914
      %v2916 = vrot.slane %v2880, 1
      %v2917 = vsel %vm2441, %v2914, %v2916
      %v2919 = vsel %vm1983, %v2883, 0
      %v2922 = vsel %vm1983, %v2885, 0
      %v2925 = vsel %vm1983, %v2887, 0
      %v2928 = vsel %vm1983, %v2889, 0
      %v2931 = vsel %vm1983, %v2891, 0
      %v2934 = vsel %vm1983, %v2893, 0
      %v2937 = vsel %vm1983, %v2895, 0
      %v2940 = vsel %vm1983, %v2897, 0
      %v2943 = vsel %vm1983, %v2899, 0
      %v2946 = vsel %vm1983, %v2901, 0
      %v2949 = vsel %vm1983, %v2903, 0
      %v2952 = vsel %vm1983, %v2905, 0
      %v2955 = vsel %vm1983, %v2907, 0
      %v2958 = vsel %vm1983, %v2909, 0
      %v2961 = vsel %vm1983, %v2911, 0
      %v2964 = vsel %vm1983, %v2913, 0
      %v2967 = vsel %vm1983, %v2915, 0
      %v2970 = vsel %vm1983, %v2917, 0
      %v2973 = vsel %vm2038, %v2787, 0
      %2975 = vmatprep.subr.bf16.mxu0 0
      %2976 = vmatpush1.bf16.msra.mxu0 0
      %2977 = vmatprep.subr.bf16.mxu0 0
      %2978 = vmatpush1.bf16.msra.mxu0 0
      %2979 = vmatprep.subr.bf16.mxu0 0
      %2980 = vmatpush1.bf16.msra.mxu0 0
      %2981 = vmatprep.subr.bf16.mxu0 0
      %2982 = vmatpush1.bf16.msra.mxu0 0
      %2983 = vmatprep.subr.bf16.mxu0 0
      %2984 = vmatpush1.bf16.msra.mxu0 0
      %2985 = vmatprep.subr.bf16.mxu0 0
      %2986 = vmatpush1.bf16.msra.mxu0 0
      %2987 = vmatprep.subr.bf16.mxu0 0
      %2988 = vmatpush1.bf16.msra.mxu0 0
      %2989 = vmatprep.subr.bf16.mxu0 0
      %2990 = vmatpush1.bf16.msra.mxu0 %v2973
      %2991 = vmatprep.subr.bf16.mxu0 0
      %2992 = vmatpush2.bf16.msra.mxu0 0
      %2993 = vmatprep.subr.bf16.mxu0 0
      %2994 = vmatpush2.bf16.msra.mxu0 0
      %2995 = vmatprep.subr.bf16.mxu0 0
      %2996 = vmatpush2.bf16.msra.mxu0 0
      %2997 = vmatprep.subr.bf16.mxu0 0
      %2998 = vmatpush2.bf16.msra.mxu0 0
      %2999 = vmatprep.subr.bf16.mxu0 0
      %3000 = vmatpush2.bf16.msra.mxu0 0
      %3001 = vmatprep.subr.bf16.mxu0 0
      %3002 = vmatpush2.bf16.msra.mxu0 0
      %3003 = vmatprep.subr.bf16.mxu0 0
      %3004 = vmatpush2.bf16.msra.mxu0 0
      %3005 = vmatprep.subr.bf16.mxu0 0
      %3006 = vmatpush2.bf16.msra.mxu0 0
      %3007 = vmatprep.mubr.bf16.mxu0 0
      %3008 = vmatmul.mubr.bf16.gmra.mxu0 %v2919
      %v3009 = vpop.f32.mrf.mxu0
      %v3010 = vadd.f32 0.0, %v3009
      %v3011 = vpop.f32.mrf.mxu0
      %v3012 = vpop.f32.mrf.mxu0
      %v3013 = vadd.f32 0.0, %v3012
      %v3014 = vpop.f32.mrf.mxu0
      %3015 = vmatprep.mubr.bf16.mxu0 0
      %3016 = vmatmul.mubr.bf16.gmra.mxu0 %v2922
      %v3017 = vpop.f32.mrf.mxu0
      %v3018 = vadd.f32 0.0, %v3017
      %v3019 = vpop.f32.mrf.mxu0
      %v3020 = vpop.f32.mrf.mxu0
      %v3021 = vadd.f32 0.0, %v3020
      %v3022 = vpop.f32.mrf.mxu0
      %3023 = vmatprep.mubr.bf16.mxu0 0
      %3024 = vmatmul.mubr.bf16.gmra.mxu0 %v2925
      %v3025 = vpop.f32.mrf.mxu0
      %v3026 = vadd.f32 0.0, %v3025
      %v3027 = vpop.f32.mrf.mxu0
      %v3028 = vpop.f32.mrf.mxu0
      %v3029 = vadd.f32 0.0, %v3028
      %v3030 = vpop.f32.mrf.mxu0
      %3031 = vmatprep.mubr.bf16.mxu0 0
      %3032 = vmatmul.mubr.bf16.gmra.mxu0 %v2928
      %v3033 = vpop.f32.mrf.mxu0
      %v3034 = vadd.f32 0.0, %v3033
      %v3035 = vpop.f32.mrf.mxu0
      %v3036 = vpop.f32.mrf.mxu0
      %v3037 = vadd.f32 0.0, %v3036
      %v3038 = vpop.f32.mrf.mxu0
      %3039 = vmatprep.mubr.bf16.mxu0 0
      %3040 = vmatmul.mubr.bf16.gmra.mxu0 %v2931
      %v3041 = vpop.f32.mrf.mxu0
      %v3042 = vadd.f32 0.0, %v3041
      %v3043 = vpop.f32.mrf.mxu0
      %v3044 = vpop.f32.mrf.mxu0
      %v3045 = vadd.f32 0.0, %v3044
      %v3046 = vpop.f32.mrf.mxu0
      %3047 = vmatprep.mubr.bf16.mxu0 0
      %3048 = vmatmul.mubr.bf16.gmra.mxu0 %v2934
      %v3049 = vpop.f32.mrf.mxu0
      %v3050 = vadd.f32 0.0, %v3049
      %v3051 = vpop.f32.mrf.mxu0
      %v3052 = vpop.f32.mrf.mxu0
      %v3053 = vadd.f32 0.0, %v3052
      %v3054 = vpop.f32.mrf.mxu0
      %3055 = vmatprep.mubr.bf16.mxu0 0
      %3056 = vmatmul.mubr.bf16.gmra.mxu0 %v2937
      %v3057 = vpop.f32.mrf.mxu0
      %v3058 = vadd.f32 0.0, %v3057
      %v3059 = vpop.f32.mrf.mxu0
      %v3060 = vpop.f32.mrf.mxu0
      %v3061 = vadd.f32 0.0, %v3060
      %v3062 = vpop.f32.mrf.mxu0
      %3063 = vmatprep.mubr.bf16.mxu0 0
      %3064 = vmatmul.mubr.bf16.gmra.mxu0 %v2940
      %v3065 = vpop.f32.mrf.mxu0
      %v3066 = vadd.f32 0.0, %v3065
      %v3067 = vpop.f32.mrf.mxu0
      %v3068 = vpop.f32.mrf.mxu0
      %v3069 = vadd.f32 0.0, %v3068
      %v3070 = vpop.f32.mrf.mxu0
      %3071 = vmatprep.mubr.bf16.mxu0 0
      %3072 = vmatmul.mubr.bf16.gmra.mxu0 %v2943
      %v3073 = vpop.f32.mrf.mxu0
      %v3074 = vadd.f32 0.0, %v3073
      %v3075 = vpop.f32.mrf.mxu0
      %v3076 = vpop.f32.mrf.mxu0
      %v3077 = vadd.f32 0.0, %v3076
      %v3078 = vpop.f32.mrf.mxu0
      %3079 = vmatprep.mubr.bf16.mxu0 0
      %3080 = vmatmul.mubr.bf16.gmra.mxu0 %v2946
      %v3081 = vpop.f32.mrf.mxu0
      %v3082 = vadd.f32 0.0, %v3081
      %v3083 = vpop.f32.mrf.mxu0
      %v3084 = vpop.f32.mrf.mxu0
      %v3085 = vadd.f32 0.0, %v3084
      %v3086 = vpop.f32.mrf.mxu0
      %3087 = vmatprep.mubr.bf16.mxu0 0
      %3088 = vmatmul.mubr.bf16.gmra.mxu0 %v2949
      %v3089 = vpop.f32.mrf.mxu0
      %v3090 = vadd.f32 0.0, %v3089
      %v3091 = vpop.f32.mrf.mxu0
      %v3092 = vpop.f32.mrf.mxu0
      %v3093 = vadd.f32 0.0, %v3092
      %v3094 = vpop.f32.mrf.mxu0
      %3095 = vmatprep.mubr.bf16.mxu0 0
      %3096 = vmatmul.mubr.bf16.gmra.mxu0 %v2952
      %v3097 = vpop.f32.mrf.mxu0
      %v3098 = vadd.f32 0.0, %v3097
      %v3099 = vpop.f32.mrf.mxu0
      %v3100 = vpop.f32.mrf.mxu0
      %v3101 = vadd.f32 0.0, %v3100
      %v3102 = vpop.f32.mrf.mxu0
      %3103 = vmatprep.mubr.bf16.mxu0 0
      %3104 = vmatmul.mubr.bf16.gmra.mxu0 %v2955
      %v3105 = vpop.f32.mrf.mxu0
      %v3106 = vadd.f32 0.0, %v3105
      %v3107 = vpop.f32.mrf.mxu0
      %v3108 = vpop.f32.mrf.mxu0
      %v3109 = vadd.f32 0.0, %v3108
      %v3110 = vpop.f32.mrf.mxu0
      %3111 = vmatprep.mubr.bf16.mxu0 0
      %3112 = vmatmul.mubr.bf16.gmra.mxu0 %v2958
      %v3113 = vpop.f32.mrf.mxu0
      %v3114 = vadd.f32 0.0, %v3113
      %v3115 = vpop.f32.mrf.mxu0
      %v3116 = vpop.f32.mrf.mxu0
      %v3117 = vadd.f32 0.0, %v3116
      %v3118 = vpop.f32.mrf.mxu0
      %3119 = vmatprep.mubr.bf16.mxu0 0
      %3120 = vmatmul.mubr.bf16.gmra.mxu0 %v2961
      %v3121 = vpop.f32.mrf.mxu0
      %v3122 = vadd.f32 0.0, %v3121
      %v3123 = vpop.f32.mrf.mxu0
      %v3124 = vpop.f32.mrf.mxu0
      %v3125 = vadd.f32 0.0, %v3124
      %v3126 = vpop.f32.mrf.mxu0
      %3127 = vmatprep.mubr.bf16.mxu0 0
      %3128 = vmatmul.mubr.bf16.gmra.mxu0 %v2964
      %v3129 = vpop.f32.mrf.mxu0
      %v3130 = vadd.f32 0.0, %v3129
      %v3131 = vpop.f32.mrf.mxu0
      %v3132 = vpop.f32.mrf.mxu0
      %v3133 = vadd.f32 0.0, %v3132
      %v3134 = vpop.f32.mrf.mxu0
      %3135 = vmatprep.mubr.bf16.mxu0 0
      %3136 = vmatmul.mubr.bf16.gmra.mxu0 %v2967
      %v3137 = vpop.f32.mrf.mxu0
      %v3138 = vadd.f32 0.0, %v3137
      %v3139 = vpop.f32.mrf.mxu0
      %v3140 = vpop.f32.mrf.mxu0
      %v3141 = vadd.f32 0.0, %v3140
      %v3142 = vpop.f32.mrf.mxu0
      %3143 = vmatprep.mubr.bf16.mxu0 0
      %3144 = vmatmul.mubr.bf16.gmra.mxu0 %v2970
      %v3145 = vpop.f32.mrf.mxu0
      %v3146 = vadd.f32 0.0, %v3145
      %v3147 = vpop.f32.mrf.mxu0
      %v3148 = vpop.f32.mrf.mxu0
      %v3149 = vadd.f32 0.0, %v3148
      %v3150 = vpop.f32.mrf.mxu0
      %3151 = vdwg.mxu0
      %v3152 = vadd.f32 %v2713, %v3010
      %v3153 = vadd.f32 %v2714, %v3013
      %v3154 = vadd.f32 %v2715, %v3018
      %v3155 = vadd.f32 %v2716, %v3021
      %v3156 = vadd.f32 %v2717, %v3026
      %v3157 = vadd.f32 %v2718, %v3029
      %v3158 = vadd.f32 %v2719, %v3034
      %v3159 = vadd.f32 %v2720, %v3037
      %v3160 = vadd.f32 %v2721, %v3042
      %v3161 = vadd.f32 %v2722, %v3045
      %v3162 = vadd.f32 %v2723, %v3050
      %v3163 = vadd.f32 %v2724, %v3053
      %v3164 = vadd.f32 %v2725, %v3058
      %v3165 = vadd.f32 %v2726, %v3061
      %v3166 = vadd.f32 %v2727, %v3066
      %v3167 = vadd.f32 %v2728, %v3069
      %v3168 = vadd.f32 %v2729, %v3074
      %v3169 = vadd.f32 %v2730, %v3077
      %v3170 = vadd.f32 %v2731, %v3082
      %v3171 = vadd.f32 %v2732, %v3085
      %v3172 = vadd.f32 %v2733, %v3090
      %v3173 = vadd.f32 %v2734, %v3093
      %v3174 = vadd.f32 %v2735, %v3098
      %v3175 = vadd.f32 %v2736, %v3101
      %v3176 = vadd.f32 %v2737, %v3106
      %v3177 = vadd.f32 %v2738, %v3109
      %v3178 = vadd.f32 %v2739, %v3114
      %v3179 = vadd.f32 %v2740, %v3117
      %v3180 = vadd.f32 %v2741, %v3122
      %v3181 = vadd.f32 %v2742, %v3125
      %v3182 = vadd.f32 %v2743, %v3130
      %v3183 = vadd.f32 %v2744, %v3133
      %v3184 = vadd.f32 %v2745, %v3138
      %v3185 = vadd.f32 %v2746, %v3141
      %v3186 = vadd.f32 %v2747, %v3146
      %v3187 = vadd.f32 %v2748, %v3149
      %v3188 = vld [vmem:[#allocation2 + $0x98] sm:$0x3]
      %s3189 = scalar_lea.vmem %s5, 16
      %v3190 = vld [vmem:[%s3189] sm:$0xf]
      %v3192 = vunpack.c.l.b16 %v3188
      %v3193 = vpack.c.b16 %v3192, %v3192
      %vm3194 = vsmask.f32 6400
      %v3196 = vshrl.u32 %v2862, 16
      %v3198 = vrot.slane %v3196, 1
      %v3199 = vshll.u32 %v2862, 16
      %v3201 = vrot.slane %v3199, 2
      %v3202 = vor.u32 %v3198, %v3201
      %v3204 = vshrl.u32 %v2863, 16
      %v3206 = vrot.slane %v3204, 1
      %v3207 = vshll.u32 %v2863, 16
      %v3209 = vrot.slane %v3207, 2
      %v3210 = vor.u32 %v3206, %v3209
      %v3211 = vsel %vm3194, %v3202, %v3210
      %v3213 = vshrl.u32 %v2864, 16
      %v3215 = vrot.slane %v3213, 1
      %v3216 = vshll.u32 %v2864, 16
      %v3218 = vrot.slane %v3216, 2
      %v3219 = vor.u32 %v3215, %v3218
      %v3220 = vsel %vm3194, %v3210, %v3219
      %v3222 = vshrl.u32 %v2865, 16
      %v3224 = vrot.slane %v3222, 1
      %v3225 = vshll.u32 %v2865, 16
      %v3227 = vrot.slane %v3225, 2
      %v3228 = vor.u32 %v3224, %v3227
      %v3229 = vsel %vm3194, %v3219, %v3228
      %v3231 = vshrl.u32 %v2866, 16
      %v3233 = vrot.slane %v3231, 1
      %v3234 = vshll.u32 %v2866, 16
      %v3236 = vrot.slane %v3234, 2
      %v3237 = vor.u32 %v3233, %v3236
      %v3238 = vsel %vm3194, %v3228, %v3237
      %v3240 = vshrl.u32 %v2867, 16
      %v3242 = vrot.slane %v3240, 1
      %v3243 = vshll.u32 %v2867, 16
      %v3245 = vrot.slane %v3243, 2
      %v3246 = vor.u32 %v3242, %v3245
      %v3247 = vsel %vm3194, %v3237, %v3246
      %v3249 = vshrl.u32 %v2868, 16
      %v3251 = vrot.slane %v3249, 1
      %v3252 = vshll.u32 %v2868, 16
      %v3254 = vrot.slane %v3252, 2
      %v3255 = vor.u32 %v3251, %v3254
      %v3256 = vsel %vm3194, %v3246, %v3255
      %v3258 = vshrl.u32 %v2869, 16
      %v3260 = vrot.slane %v3258, 1
      %v3261 = vshll.u32 %v2869, 16
      %v3263 = vrot.slane %v3261, 2
      %v3264 = vor.u32 %v3260, %v3263
      %v3265 = vsel %vm3194, %v3255, %v3264
      %v3267 = vshrl.u32 %v2870, 16
      %v3269 = vrot.slane %v3267, 1
      %v3270 = vshll.u32 %v2870, 16
      %v3272 = vrot.slane %v3270, 2
      %v3273 = vor.u32 %v3269, %v3272
      %v3274 = vsel %vm3194, %v3264, %v3273
      %v3276 = vshrl.u32 %v2871, 16
      %v3278 = vrot.slane %v3276, 1
      %v3279 = vshll.u32 %v2871, 16
      %v3281 = vrot.slane %v3279, 2
      %v3282 = vor.u32 %v3278, %v3281
      %v3283 = vsel %vm3194, %v3273, %v3282
      %v3285 = vshrl.u32 %v2872, 16
      %v3287 = vrot.slane %v3285, 1
      %v3288 = vshll.u32 %v2872, 16
      %v3290 = vrot.slane %v3288, 2
      %v3291 = vor.u32 %v3287, %v3290
      %v3292 = vsel %vm3194, %v3282, %v3291
      %v3294 = vshrl.u32 %v2873, 16
      %v3296 = vrot.slane %v3294, 1
      %v3297 = vshll.u32 %v2873, 16
      %v3299 = vrot.slane %v3297, 2
      %v3300 = vor.u32 %v3296, %v3299
      %v3301 = vsel %vm3194, %v3291, %v3300
      %v3303 = vshrl.u32 %v2874, 16
      %v3305 = vrot.slane %v3303, 1
      %v3306 = vshll.u32 %v2874, 16
      %v3308 = vrot.slane %v3306, 2
      %v3309 = vor.u32 %v3305, %v3308
      %v3310 = vsel %vm3194, %v3300, %v3309
      %v3312 = vshrl.u32 %v2875, 16
      %v3314 = vrot.slane %v3312, 1
      %v3315 = vshll.u32 %v2875, 16
      %v3317 = vrot.slane %v3315, 2
      %v3318 = vor.u32 %v3314, %v3317
      %v3319 = vsel %vm3194, %v3309, %v3318
      %v3321 = vshrl.u32 %v2876, 16
      %v3323 = vrot.slane %v3321, 1
      %v3324 = vshll.u32 %v2876, 16
      %v3326 = vrot.slane %v3324, 2
      %v3327 = vor.u32 %v3323, %v3326
      %v3328 = vsel %vm3194, %v3318, %v3327
      %v3330 = vshrl.u32 %v2877, 16
      %v3332 = vrot.slane %v3330, 1
      %v3333 = vshll.u32 %v2877, 16
      %v3335 = vrot.slane %v3333, 2
      %v3336 = vor.u32 %v3332, %v3335
      %v3337 = vsel %vm3194, %v3327, %v3336
      %v3339 = vshrl.u32 %v2878, 16
      %v3341 = vrot.slane %v3339, 1
      %v3342 = vshll.u32 %v2878, 16
      %v3344 = vrot.slane %v3342, 2
      %v3345 = vor.u32 %v3341, %v3344
      %v3346 = vsel %vm3194, %v3336, %v3345
      %v3348 = vshrl.u32 %v2879, 16
      %v3350 = vrot.slane %v3348, 1
      %v3351 = vshll.u32 %v2879, 16
      %v3353 = vrot.slane %v3351, 2
      %v3354 = vor.u32 %v3350, %v3353
      %v3355 = vsel %vm3194, %v3345, %v3354
      %v3357 = vshrl.u32 %v3193, 16
      %v3359 = vrot.slane %v3357, 1
      %v3360 = vshll.u32 %v3193, 16
      %v3362 = vrot.slane %v3360, 2
      %v3363 = vor.u32 %v3359, %v3362
      %v3364 = vsel %vm3194, %v3354, %v3363
      %v3366 = vsel %vm1983, %v3211, 0
      %v3369 = vsel %vm1983, %v3220, 0
      %v3372 = vsel %vm1983, %v3229, 0
      %v3375 = vsel %vm1983, %v3238, 0
      %v3378 = vsel %vm1983, %v3247, 0
      %v3381 = vsel %vm1983, %v3256, 0
      %v3384 = vsel %vm1983, %v3265, 0
      %v3387 = vsel %vm1983, %v3274, 0
      %v3390 = vsel %vm1983, %v3283, 0
      %v3393 = vsel %vm1983, %v3292, 0
      %v3396 = vsel %vm1983, %v3301, 0
      %v3399 = vsel %vm1983, %v3310, 0
      %v3402 = vsel %vm1983, %v3319, 0
      %v3405 = vsel %vm1983, %v3328, 0
      %v3408 = vsel %vm1983, %v3337, 0
      %v3411 = vsel %vm1983, %v3346, 0
      %v3414 = vsel %vm1983, %v3355, 0
      %v3417 = vsel %vm1983, %v3364, 0
      %v3420 = vsel %vm2038, %v3190, 0
      %3422 = vmatprep.subr.bf16.mxu0 0
      %3423 = vmatpush1.bf16.msra.mxu0 0
      %3424 = vmatprep.subr.bf16.mxu0 0
      %3425 = vmatpush1.bf16.msra.mxu0 0
      %3426 = vmatprep.subr.bf16.mxu0 0
      %3427 = vmatpush1.bf16.msra.mxu0 0
      %3428 = vmatprep.subr.bf16.mxu0 0
      %3429 = vmatpush1.bf16.msra.mxu0 0
      %3430 = vmatprep.subr.bf16.mxu0 0
      %3431 = vmatpush1.bf16.msra.mxu0 0
      %3432 = vmatprep.subr.bf16.mxu0 0
      %3433 = vmatpush1.bf16.msra.mxu0 0
      %3434 = vmatprep.subr.bf16.mxu0 0
      %3435 = vmatpush1.bf16.msra.mxu0 0
      %3436 = vmatprep.subr.bf16.mxu0 0
      %3437 = vmatpush1.bf16.msra.mxu0 %v3420
      %3438 = vmatprep.subr.bf16.mxu0 0
      %3439 = vmatpush2.bf16.msra.mxu0 0
      %3440 = vmatprep.subr.bf16.mxu0 0
      %3441 = vmatpush2.bf16.msra.mxu0 0
      %3442 = vmatprep.subr.bf16.mxu0 0
      %3443 = vmatpush2.bf16.msra.mxu0 0
      %3444 = vmatprep.subr.bf16.mxu0 0
      %3445 = vmatpush2.bf16.msra.mxu0 0
      %3446 = vmatprep.subr.bf16.mxu0 0
      %3447 = vmatpush2.bf16.msra.mxu0 0
      %3448 = vmatprep.subr.bf16.mxu0 0
      %3449 = vmatpush2.bf16.msra.mxu0 0
      %3450 = vmatprep.subr.bf16.mxu0 0
      %3451 = vmatpush2.bf16.msra.mxu0 0
      %3452 = vmatprep.subr.bf16.mxu0 0
      %3453 = vmatpush2.bf16.msra.mxu0 0
      %3454 = vmatprep.mubr.bf16.mxu0 0
      %3455 = vmatmul.mubr.bf16.gmra.mxu0 %v3366
      %v3456 = vpop.f32.mrf.mxu0
      %v3457 = vadd.f32 0.0, %v3456
      %v3458 = vpop.f32.mrf.mxu0
      %v3459 = vpop.f32.mrf.mxu0
      %v3460 = vadd.f32 0.0, %v3459
      %v3461 = vpop.f32.mrf.mxu0
      %3462 = vmatprep.mubr.bf16.mxu0 0
      %3463 = vmatmul.mubr.bf16.gmra.mxu0 %v3369
      %v3464 = vpop.f32.mrf.mxu0
      %v3465 = vadd.f32 0.0, %v3464
      %v3466 = vpop.f32.mrf.mxu0
      %v3467 = vpop.f32.mrf.mxu0
      %v3468 = vadd.f32 0.0, %v3467
      %v3469 = vpop.f32.mrf.mxu0
      %3470 = vmatprep.mubr.bf16.mxu0 0
      %3471 = vmatmul.mubr.bf16.gmra.mxu0 %v3372
      %v3472 = vpop.f32.mrf.mxu0
      %v3473 = vadd.f32 0.0, %v3472
      %v3474 = vpop.f32.mrf.mxu0
      %v3475 = vpop.f32.mrf.mxu0
      %v3476 = vadd.f32 0.0, %v3475
      %v3477 = vpop.f32.mrf.mxu0
      %3478 = vmatprep.mubr.bf16.mxu0 0
      %3479 = vmatmul.mubr.bf16.gmra.mxu0 %v3375
      %v3480 = vpop.f32.mrf.mxu0
      %v3481 = vadd.f32 0.0, %v3480
      %v3482 = vpop.f32.mrf.mxu0
      %v3483 = vpop.f32.mrf.mxu0
      %v3484 = vadd.f32 0.0, %v3483
      %v3485 = vpop.f32.mrf.mxu0
      %3486 = vmatprep.mubr.bf16.mxu0 0
      %3487 = vmatmul.mubr.bf16.gmra.mxu0 %v3378
      %v3488 = vpop.f32.mrf.mxu0
      %v3489 = vadd.f32 0.0, %v3488
      %v3490 = vpop.f32.mrf.mxu0
      %v3491 = vpop.f32.mrf.mxu0
      %v3492 = vadd.f32 0.0, %v3491
      %v3493 = vpop.f32.mrf.mxu0
      %3494 = vmatprep.mubr.bf16.mxu0 0
      %3495 = vmatmul.mubr.bf16.gmra.mxu0 %v3381
      %v3496 = vpop.f32.mrf.mxu0
      %v3497 = vadd.f32 0.0, %v3496
      %v3498 = vpop.f32.mrf.mxu0
      %v3499 = vpop.f32.mrf.mxu0
      %v3500 = vadd.f32 0.0, %v3499
      %v3501 = vpop.f32.mrf.mxu0
      %3502 = vmatprep.mubr.bf16.mxu0 0
      %3503 = vmatmul.mubr.bf16.gmra.mxu0 %v3384
      %v3504 = vpop.f32.mrf.mxu0
      %v3505 = vadd.f32 0.0, %v3504
      %v3506 = vpop.f32.mrf.mxu0
      %v3507 = vpop.f32.mrf.mxu0
      %v3508 = vadd.f32 0.0, %v3507
      %v3509 = vpop.f32.mrf.mxu0
      %3510 = vmatprep.mubr.bf16.mxu0 0
      %3511 = vmatmul.mubr.bf16.gmra.mxu0 %v3387
      %v3512 = vpop.f32.mrf.mxu0
      %v3513 = vadd.f32 0.0, %v3512
      %v3514 = vpop.f32.mrf.mxu0
      %v3515 = vpop.f32.mrf.mxu0
      %v3516 = vadd.f32 0.0, %v3515
      %v3517 = vpop.f32.mrf.mxu0
      %3518 = vmatprep.mubr.bf16.mxu0 0
      %3519 = vmatmul.mubr.bf16.gmra.mxu0 %v3390
      %v3520 = vpop.f32.mrf.mxu0
      %v3521 = vadd.f32 0.0, %v3520
      %v3522 = vpop.f32.mrf.mxu0
      %v3523 = vpop.f32.mrf.mxu0
      %v3524 = vadd.f32 0.0, %v3523
      %v3525 = vpop.f32.mrf.mxu0
      %3526 = vmatprep.mubr.bf16.mxu0 0
      %3527 = vmatmul.mubr.bf16.gmra.mxu0 %v3393
      %v3528 = vpop.f32.mrf.mxu0
      %v3529 = vadd.f32 0.0, %v3528
      %v3530 = vpop.f32.mrf.mxu0
      %v3531 = vpop.f32.mrf.mxu0
      %v3532 = vadd.f32 0.0, %v3531
      %v3533 = vpop.f32.mrf.mxu0
      %3534 = vmatprep.mubr.bf16.mxu0 0
      %3535 = vmatmul.mubr.bf16.gmra.mxu0 %v3396
      %v3536 = vpop.f32.mrf.mxu0
      %v3537 = vadd.f32 0.0, %v3536
      %v3538 = vpop.f32.mrf.mxu0
      %v3539 = vpop.f32.mrf.mxu0
      %v3540 = vadd.f32 0.0, %v3539
      %v3541 = vpop.f32.mrf.mxu0
      %3542 = vmatprep.mubr.bf16.mxu0 0
      %3543 = vmatmul.mubr.bf16.gmra.mxu0 %v3399
      %v3544 = vpop.f32.mrf.mxu0
      %v3545 = vadd.f32 0.0, %v3544
      %v3546 = vpop.f32.mrf.mxu0
      %v3547 = vpop.f32.mrf.mxu0
      %v3548 = vadd.f32 0.0, %v3547
      %v3549 = vpop.f32.mrf.mxu0
      %3550 = vmatprep.mubr.bf16.mxu0 0
      %3551 = vmatmul.mubr.bf16.gmra.mxu0 %v3402
      %v3552 = vpop.f32.mrf.mxu0
      %v3553 = vadd.f32 0.0, %v3552
      %v3554 = vpop.f32.mrf.mxu0
      %v3555 = vpop.f32.mrf.mxu0
      %v3556 = vadd.f32 0.0, %v3555
      %v3557 = vpop.f32.mrf.mxu0
      %3558 = vmatprep.mubr.bf16.mxu0 0
      %3559 = vmatmul.mubr.bf16.gmra.mxu0 %v3405
      %v3560 = vpop.f32.mrf.mxu0
      %v3561 = vadd.f32 0.0, %v3560
      %v3562 = vpop.f32.mrf.mxu0
      %v3563 = vpop.f32.mrf.mxu0
      %v3564 = vadd.f32 0.0, %v3563
      %v3565 = vpop.f32.mrf.mxu0
      %3566 = vmatprep.mubr.bf16.mxu0 0
      %3567 = vmatmul.mubr.bf16.gmra.mxu0 %v3408
      %v3568 = vpop.f32.mrf.mxu0
      %v3569 = vadd.f32 0.0, %v3568
      %v3570 = vpop.f32.mrf.mxu0
      %v3571 = vpop.f32.mrf.mxu0
      %v3572 = vadd.f32 0.0, %v3571
      %v3573 = vpop.f32.mrf.mxu0
      %3574 = vmatprep.mubr.bf16.mxu0 0
      %3575 = vmatmul.mubr.bf16.gmra.mxu0 %v3411
      %v3576 = vpop.f32.mrf.mxu0
      %v3577 = vadd.f32 0.0, %v3576
      %v3578 = vpop.f32.mrf.mxu0
      %v3579 = vpop.f32.mrf.mxu0
      %v3580 = vadd.f32 0.0, %v3579
      %v3581 = vpop.f32.mrf.mxu0
      %3582 = vmatprep.mubr.bf16.mxu0 0
      %3583 = vmatmul.mubr.bf16.gmra.mxu0 %v3414
      %v3584 = vpop.f32.mrf.mxu0
      %v3585 = vadd.f32 0.0, %v3584
      %v3586 = vpop.f32.mrf.mxu0
      %v3587 = vpop.f32.mrf.mxu0
      %v3588 = vadd.f32 0.0, %v3587
      %v3589 = vpop.f32.mrf.mxu0
      %3590 = vmatprep.mubr.bf16.mxu0 0
      %3591 = vmatmul.mubr.bf16.gmra.mxu0 %v3417
      %v3592 = vpop.f32.mrf.mxu0
      %v3593 = vadd.f32 0.0, %v3592
      %v3594 = vpop.f32.mrf.mxu0
      %v3595 = vpop.f32.mrf.mxu0
      %v3596 = vadd.f32 0.0, %v3595
      %v3597 = vpop.f32.mrf.mxu0
      %3598 = vdwg.mxu0
      %v3599 = vadd.f32 %v3152, %v3457
      %v3600 = vadd.f32 %v3153, %v3460
      %v3601 = vadd.f32 %v3154, %v3465
      %v3602 = vadd.f32 %v3155, %v3468
      %v3603 = vadd.f32 %v3156, %v3473
      %v3604 = vadd.f32 %v3157, %v3476
      %v3605 = vadd.f32 %v3158, %v3481
      %v3606 = vadd.f32 %v3159, %v3484
      %v3607 = vadd.f32 %v3160, %v3489
      %v3608 = vadd.f32 %v3161, %v3492
      %v3609 = vadd.f32 %v3162, %v3497
      %v3610 = vadd.f32 %v3163, %v3500
      %v3611 = vadd.f32 %v3164, %v3505
      %v3612 = vadd.f32 %v3165, %v3508
      %v3613 = vadd.f32 %v3166, %v3513
      %v3614 = vadd.f32 %v3167, %v3516
      %v3615 = vadd.f32 %v3168, %v3521
      %v3616 = vadd.f32 %v3169, %v3524
      %v3617 = vadd.f32 %v3170, %v3529
      %v3618 = vadd.f32 %v3171, %v3532
      %v3619 = vadd.f32 %v3172, %v3537
      %v3620 = vadd.f32 %v3173, %v3540
      %v3621 = vadd.f32 %v3174, %v3545
      %v3622 = vadd.f32 %v3175, %v3548
      %v3623 = vadd.f32 %v3176, %v3553
      %v3624 = vadd.f32 %v3177, %v3556
      %v3625 = vadd.f32 %v3178, %v3561
      %v3626 = vadd.f32 %v3179, %v3564
      %v3627 = vadd.f32 %v3180, %v3569
      %v3628 = vadd.f32 %v3181, %v3572
      %v3629 = vadd.f32 %v3182, %v3577
      %v3630 = vadd.f32 %v3183, %v3580
      %v3631 = vadd.f32 %v3184, %v3585
      %v3632 = vadd.f32 %v3185, %v3588
      %v3633 = vadd.f32 %v3186, %v3593
      %v3634 = vadd.f32 %v3187, %v3596
      %v3635 = vld [vmem:[#allocation2 + $0x8] sm:$0xc]
      %s3636 = scalar_lea.vmem %s5, 20
      %v3637 = vld [vmem:[%s3636] sm:$0xf]
      %v3639 = vunpack.c.l.b16 %v3635
      %v3640 = vpack.c.b16 %v2826, %v3639
      %vm3641 = vcmask 1045504
      %v3642 = vrot.slane %v3640, 2
      %v3643 = vrot.slane %v2863, 2
      %v3644 = vsel %vm3641, %v3642, %v3643
      %v3645 = vrot.slane %v2864, 2
      %v3646 = vsel %vm3641, %v3643, %v3645
      %v3647 = vrot.slane %v2865, 2
      %v3648 = vsel %vm3641, %v3645, %v3647
      %v3649 = vrot.slane %v2866, 2
      %v3650 = vsel %vm3641, %v3647, %v3649
      %v3651 = vrot.slane %v2867, 2
      %v3652 = vsel %vm3641, %v3649, %v3651
      %v3653 = vrot.slane %v2868, 2
      %v3654 = vsel %vm3641, %v3651, %v3653
      %v3655 = vrot.slane %v2869, 2
      %v3656 = vsel %vm3641, %v3653, %v3655
      %v3657 = vrot.slane %v2870, 2
      %v3658 = vsel %vm3641, %v3655, %v3657
      %v3659 = vrot.slane %v2871, 2
      %v3660 = vsel %vm3641, %v3657, %v3659
      %v3661 = vrot.slane %v2872, 2
      %v3662 = vsel %vm3641, %v3659, %v3661
      %v3663 = vrot.slane %v2873, 2
      %v3664 = vsel %vm3641, %v3661, %v3663
      %v3665 = vrot.slane %v2874, 2
      %v3666 = vsel %vm3641, %v3663, %v3665
      %v3667 = vrot.slane %v2875, 2
      %v3668 = vsel %vm3641, %v3665, %v3667
      %v3669 = vrot.slane %v2876, 2
      %v3670 = vsel %vm3641, %v3667, %v3669
      %v3671 = vrot.slane %v2877, 2
      %v3672 = vsel %vm3641, %v3669, %v3671
      %v3673 = vrot.slane %v2878, 2
      %v3674 = vsel %vm3641, %v3671, %v3673
      %v3675 = vrot.slane %v2879, 2
      %v3676 = vsel %vm3641, %v3673, %v3675
      %v3677 = vrot.slane %v3193, 2
      %v3678 = vsel %vm3641, %v3675, %v3677
      %v3680 = vsel %vm1983, %v3644, 0
      %v3683 = vsel %vm1983, %v3646, 0
      %v3686 = vsel %vm1983, %v3648, 0
      %v3689 = vsel %vm1983, %v3650, 0
      %v3692 = vsel %vm1983, %v3652, 0
      %v3695 = vsel %vm1983, %v3654, 0
      %v3698 = vsel %vm1983, %v3656, 0
      %v3701 = vsel %vm1983, %v3658, 0
      %v3704 = vsel %vm1983, %v3660, 0
      %v3707 = vsel %vm1983, %v3662, 0
      %v3710 = vsel %vm1983, %v3664, 0
      %v3713 = vsel %vm1983, %v3666, 0
      %v3716 = vsel %vm1983, %v3668, 0
      %v3719 = vsel %vm1983, %v3670, 0
      %v3722 = vsel %vm1983, %v3672, 0
      %v3725 = vsel %vm1983, %v3674, 0
      %v3728 = vsel %vm1983, %v3676, 0
      %v3731 = vsel %vm1983, %v3678, 0
      %v3734 = vsel %vm2038, %v3637, 0
      %3736 = vmatprep.subr.bf16.mxu0 0
      %3737 = vmatpush1.bf16.msra.mxu0 0
      %3738 = vmatprep.subr.bf16.mxu0 0
      %3739 = vmatpush1.bf16.msra.mxu0 0
      %3740 = vmatprep.subr.bf16.mxu0 0
      %3741 = vmatpush1.bf16.msra.mxu0 0
      %3742 = vmatprep.subr.bf16.mxu0 0
      %3743 = vmatpush1.bf16.msra.mxu0 0
      %3744 = vmatprep.subr.bf16.mxu0 0
      %3745 = vmatpush1.bf16.msra.mxu0 0
      %3746 = vmatprep.subr.bf16.mxu0 0
      %3747 = vmatpush1.bf16.msra.mxu0 0
      %3748 = vmatprep.subr.bf16.mxu0 0
      %3749 = vmatpush1.bf16.msra.mxu0 0
      %3750 = vmatprep.subr.bf16.mxu0 0
      %3751 = vmatpush1.bf16.msra.mxu0 %v3734
      %3752 = vmatprep.subr.bf16.mxu0 0
      %3753 = vmatpush2.bf16.msra.mxu0 0
      %3754 = vmatprep.subr.bf16.mxu0 0
      %3755 = vmatpush2.bf16.msra.mxu0 0
      %3756 = vmatprep.subr.bf16.mxu0 0
      %3757 = vmatpush2.bf16.msra.mxu0 0
      %3758 = vmatprep.subr.bf16.mxu0 0
      %3759 = vmatpush2.bf16.msra.mxu0 0
      %3760 = vmatprep.subr.bf16.mxu0 0
      %3761 = vmatpush2.bf16.msra.mxu0 0
      %3762 = vmatprep.subr.bf16.mxu0 0
      %3763 = vmatpush2.bf16.msra.mxu0 0
      %3764 = vmatprep.subr.bf16.mxu0 0
      %3765 = vmatpush2.bf16.msra.mxu0 0
      %3766 = vmatprep.subr.bf16.mxu0 0
      %3767 = vmatpush2.bf16.msra.mxu0 0
      %3768 = vmatprep.mubr.bf16.mxu0 0
      %3769 = vmatmul.mubr.bf16.gmra.mxu0 %v3680
      %v3770 = vpop.f32.mrf.mxu0
      %v3771 = vadd.f32 0.0, %v3770
      %v3772 = vpop.f32.mrf.mxu0
      %v3773 = vpop.f32.mrf.mxu0
      %v3774 = vadd.f32 0.0, %v3773
      %v3775 = vpop.f32.mrf.mxu0
      %3776 = vmatprep.mubr.bf16.mxu0 0
      %3777 = vmatmul.mubr.bf16.gmra.mxu0 %v3683
      %v3778 = vpop.f32.mrf.mxu0
      %v3779 = vadd.f32 0.0, %v3778
      %v3780 = vpop.f32.mrf.mxu0
      %v3781 = vpop.f32.mrf.mxu0
      %v3782 = vadd.f32 0.0, %v3781
      %v3783 = vpop.f32.mrf.mxu0
      %3784 = vmatprep.mubr.bf16.mxu0 0
      %3785 = vmatmul.mubr.bf16.gmra.mxu0 %v3686
      %v3786 = vpop.f32.mrf.mxu0
      %v3787 = vadd.f32 0.0, %v3786
      %v3788 = vpop.f32.mrf.mxu0
      %v3789 = vpop.f32.mrf.mxu0
      %v3790 = vadd.f32 0.0, %v3789
      %v3791 = vpop.f32.mrf.mxu0
      %3792 = vmatprep.mubr.bf16.mxu0 0
      %3793 = vmatmul.mubr.bf16.gmra.mxu0 %v3689
      %v3794 = vpop.f32.mrf.mxu0
      %v3795 = vadd.f32 0.0, %v3794
      %v3796 = vpop.f32.mrf.mxu0
      %v3797 = vpop.f32.mrf.mxu0
      %v3798 = vadd.f32 0.0, %v3797
      %v3799 = vpop.f32.mrf.mxu0
      %3800 = vmatprep.mubr.bf16.mxu0 0
      %3801 = vmatmul.mubr.bf16.gmra.mxu0 %v3692
      %v3802 = vpop.f32.mrf.mxu0
      %v3803 = vadd.f32 0.0, %v3802
      %v3804 = vpop.f32.mrf.mxu0
      %v3805 = vpop.f32.mrf.mxu0
      %v3806 = vadd.f32 0.0, %v3805
      %v3807 = vpop.f32.mrf.mxu0
      %3808 = vmatprep.mubr.bf16.mxu0 0
      %3809 = vmatmul.mubr.bf16.gmra.mxu0 %v3695
      %v3810 = vpop.f32.mrf.mxu0
      %v3811 = vadd.f32 0.0, %v3810
      %v3812 = vpop.f32.mrf.mxu0
      %v3813 = vpop.f32.mrf.mxu0
      %v3814 = vadd.f32 0.0, %v3813
      %v3815 = vpop.f32.mrf.mxu0
      %3816 = vmatprep.mubr.bf16.mxu0 0
      %3817 = vmatmul.mubr.bf16.gmra.mxu0 %v3698
      %v3818 = vpop.f32.mrf.mxu0
      %v3819 = vadd.f32 0.0, %v3818
      %v3820 = vpop.f32.mrf.mxu0
      %v3821 = vpop.f32.mrf.mxu0
      %v3822 = vadd.f32 0.0, %v3821
      %v3823 = vpop.f32.mrf.mxu0
      %3824 = vmatprep.mubr.bf16.mxu0 0
      %3825 = vmatmul.mubr.bf16.gmra.mxu0 %v3701
      %v3826 = vpop.f32.mrf.mxu0
      %v3827 = vadd.f32 0.0, %v3826
      %v3828 = vpop.f32.mrf.mxu0
      %v3829 = vpop.f32.mrf.mxu0
      %v3830 = vadd.f32 0.0, %v3829
      %v3831 = vpop.f32.mrf.mxu0
      %3832 = vmatprep.mubr.bf16.mxu0 0
      %3833 = vmatmul.mubr.bf16.gmra.mxu0 %v3704
      %v3834 = vpop.f32.mrf.mxu0
      %v3835 = vadd.f32 0.0, %v3834
      %v3836 = vpop.f32.mrf.mxu0
      %v3837 = vpop.f32.mrf.mxu0
      %v3838 = vadd.f32 0.0, %v3837
      %v3839 = vpop.f32.mrf.mxu0
      %3840 = vmatprep.mubr.bf16.mxu0 0
      %3841 = vmatmul.mubr.bf16.gmra.mxu0 %v3707
      %v3842 = vpop.f32.mrf.mxu0
      %v3843 = vadd.f32 0.0, %v3842
      %v3844 = vpop.f32.mrf.mxu0
      %v3845 = vpop.f32.mrf.mxu0
      %v3846 = vadd.f32 0.0, %v3845
      %v3847 = vpop.f32.mrf.mxu0
      %3848 = vmatprep.mubr.bf16.mxu0 0
      %3849 = vmatmul.mubr.bf16.gmra.mxu0 %v3710
      %v3850 = vpop.f32.mrf.mxu0
      %v3851 = vadd.f32 0.0, %v3850
      %v3852 = vpop.f32.mrf.mxu0
      %v3853 = vpop.f32.mrf.mxu0
      %v3854 = vadd.f32 0.0, %v3853
      %v3855 = vpop.f32.mrf.mxu0
      %3856 = vmatprep.mubr.bf16.mxu0 0
      %3857 = vmatmul.mubr.bf16.gmra.mxu0 %v3713
      %v3858 = vpop.f32.mrf.mxu0
      %v3859 = vadd.f32 0.0, %v3858
      %v3860 = vpop.f32.mrf.mxu0
      %v3861 = vpop.f32.mrf.mxu0
      %v3862 = vadd.f32 0.0, %v3861
      %v3863 = vpop.f32.mrf.mxu0
      %3864 = vmatprep.mubr.bf16.mxu0 0
      %3865 = vmatmul.mubr.bf16.gmra.mxu0 %v3716
      %v3866 = vpop.f32.mrf.mxu0
      %v3867 = vadd.f32 0.0, %v3866
      %v3868 = vpop.f32.mrf.mxu0
      %v3869 = vpop.f32.mrf.mxu0
      %v3870 = vadd.f32 0.0, %v3869
      %v3871 = vpop.f32.mrf.mxu0
      %3872 = vmatprep.mubr.bf16.mxu0 0
      %3873 = vmatmul.mubr.bf16.gmra.mxu0 %v3719
      %v3874 = vpop.f32.mrf.mxu0
      %v3875 = vadd.f32 0.0, %v3874
      %v3876 = vpop.f32.mrf.mxu0
      %v3877 = vpop.f32.mrf.mxu0
      %v3878 = vadd.f32 0.0, %v3877
      %v3879 = vpop.f32.mrf.mxu0
      %3880 = vmatprep.mubr.bf16.mxu0 0
      %3881 = vmatmul.mubr.bf16.gmra.mxu0 %v3722
      %v3882 = vpop.f32.mrf.mxu0
      %v3883 = vadd.f32 0.0, %v3882
      %v3884 = vpop.f32.mrf.mxu0
      %v3885 = vpop.f32.mrf.mxu0
      %v3886 = vadd.f32 0.0, %v3885
      %v3887 = vpop.f32.mrf.mxu0
      %3888 = vmatprep.mubr.bf16.mxu0 0
      %3889 = vmatmul.mubr.bf16.gmra.mxu0 %v3725
      %v3890 = vpop.f32.mrf.mxu0
      %v3891 = vadd.f32 0.0, %v3890
      %v3892 = vpop.f32.mrf.mxu0
      %v3893 = vpop.f32.mrf.mxu0
      %v3894 = vadd.f32 0.0, %v3893
      %v3895 = vpop.f32.mrf.mxu0
      %3896 = vmatprep.mubr.bf16.mxu0 0
      %3897 = vmatmul.mubr.bf16.gmra.mxu0 %v3728
      %v3898 = vpop.f32.mrf.mxu0
      %v3899 = vadd.f32 0.0, %v3898
      %v3900 = vpop.f32.mrf.mxu0
      %v3901 = vpop.f32.mrf.mxu0
      %v3902 = vadd.f32 0.0, %v3901
      %v3903 = vpop.f32.mrf.mxu0
      %3904 = vmatprep.mubr.bf16.mxu0 0
      %3905 = vmatmul.mubr.bf16.gmra.mxu0 %v3731
      %v3906 = vpop.f32.mrf.mxu0
      %v3907 = vadd.f32 0.0, %v3906
      %v3908 = vpop.f32.mrf.mxu0
      %v3909 = vpop.f32.mrf.mxu0
      %v3910 = vadd.f32 0.0, %v3909
      %v3911 = vpop.f32.mrf.mxu0
      %3912 = vdwg.mxu0
      %v3913 = vadd.f32 %v3599, %v3771
      %v3914 = vadd.f32 %v3600, %v3774
      %v3915 = vadd.f32 %v3601, %v3779
      %v3916 = vadd.f32 %v3602, %v3782
      %v3917 = vadd.f32 %v3603, %v3787
      %v3918 = vadd.f32 %v3604, %v3790
      %v3919 = vadd.f32 %v3605, %v3795
      %v3920 = vadd.f32 %v3606, %v3798
      %v3921 = vadd.f32 %v3607, %v3803
      %v3922 = vadd.f32 %v3608, %v3806
      %v3923 = vadd.f32 %v3609, %v3811
      %v3924 = vadd.f32 %v3610, %v3814
      %v3925 = vadd.f32 %v3611, %v3819
      %v3926 = vadd.f32 %v3612, %v3822
      %v3927 = vadd.f32 %v3613, %v3827
      %v3928 = vadd.f32 %v3614, %v3830
      %v3929 = vadd.f32 %v3615, %v3835
      %v3930 = vadd.f32 %v3616, %v3838
      %v3931 = vadd.f32 %v3617, %v3843
      %v3932 = vadd.f32 %v3618, %v3846
      %v3933 = vadd.f32 %v3619, %v3851
      %v3934 = vadd.f32 %v3620, %v3854
      %v3935 = vadd.f32 %v3621, %v3859
      %v3936 = vadd.f32 %v3622, %v3862
      %v3937 = vadd.f32 %v3623, %v3867
      %v3938 = vadd.f32 %v3624, %v3870
      %v3939 = vadd.f32 %v3625, %v3875
      %v3940 = vadd.f32 %v3626, %v3878
      %v3941 = vadd.f32 %v3627, %v3883
      %v3942 = vadd.f32 %v3628, %v3886
      %v3943 = vadd.f32 %v3629, %v3891
      %v3944 = vadd.f32 %v3630, %v3894
      %v3945 = vadd.f32 %v3631, %v3899
      %v3946 = vadd.f32 %v3632, %v3902
      %v3947 = vadd.f32 %v3633, %v3907
      %v3948 = vadd.f32 %v3634, %v3910
      %v3949 = vld [vmem:[#allocation2 + $0x10] sm:$0xc]
      %v3950 = vld [vmem:[#allocation2 + $0x14] sm:$0xf]
      %v3951 = vld [vmem:[#allocation2 + $0x18] sm:$0xf]
      %v3952 = vld [vmem:[#allocation2 + $0x1c] sm:$0xf]
      %v3953 = vld [vmem:[#allocation2 + $0x20] sm:$0xf]
      %v3954 = vld [vmem:[#allocation2 + $0x24] sm:$0xf]
      %v3955 = vld [vmem:[#allocation2 + $0x28] sm:$0xf]
      %v3956 = vld [vmem:[#allocation2 + $0x2c] sm:$0xf]
      %v3957 = vld [vmem:[#allocation2 + $0x30] sm:$0xf]
      %v3958 = vld [vmem:[#allocation2 + $0x34] sm:$0xf]
      %v3959 = vld [vmem:[#allocation2 + $0x38] sm:$0xf]
      %v3960 = vld [vmem:[#allocation2 + $0x3c] sm:$0xf]
      %v3961 = vld [vmem:[#allocation2 + $0x40] sm:$0xf]
      %v3962 = vld [vmem:[#allocation2 + $0x44] sm:$0xf]
      %v3963 = vld [vmem:[#allocation2 + $0x48] sm:$0xf]
      %v3964 = vld [vmem:[#allocation2 + $0x4c] sm:$0xf]
      %v3965 = vld [vmem:[#allocation2 + $0x50] sm:$0xf]
      %v3966 = vld [vmem:[#allocation2 + $0x54] sm:$0xf]
      %v3967 = vld [vmem:[#allocation2 + $0x58] sm:$0xf]
      %v3968 = vld [vmem:[#allocation2 + $0x5c] sm:$0xf]
      %v3969 = vld [vmem:[#allocation2 + $0x60] sm:$0xf]
      %v3970 = vld [vmem:[#allocation2 + $0x64] sm:$0xf]
      %v3971 = vld [vmem:[#allocation2 + $0x68] sm:$0xf]
      %v3972 = vld [vmem:[#allocation2 + $0x6c] sm:$0xf]
      %v3973 = vld [vmem:[#allocation2 + $0x70] sm:$0xf]
      %v3974 = vld [vmem:[#allocation2 + $0x74] sm:$0xf]
      %v3975 = vld [vmem:[#allocation2 + $0x78] sm:$0xf]
      %v3976 = vld [vmem:[#allocation2 + $0x7c] sm:$0xf]
      %v3977 = vld [vmem:[#allocation2 + $0x80] sm:$0xf]
      %v3978 = vld [vmem:[#allocation2 + $0x84] sm:$0xf]
      %v3979 = vld [vmem:[#allocation2 + $0x88] sm:$0xf]
      %v3980 = vld [vmem:[#allocation2 + $0x8c] sm:$0xf]
      %v3981 = vld [vmem:[#allocation2 + $0x90] sm:$0xf]
      %v3982 = vld [vmem:[#allocation2 + $0x94] sm:$0xf]
      %v3983 = vld [vmem:[#allocation2 + $0x98] sm:$0xf]
      %v3984 = vld [vmem:[#allocation2 + $0x9c] sm:$0xf]
      %v3985 = vld [vmem:[#allocation2 + $0xa0] sm:$0x3]
      %s3986 = scalar_lea.vmem %s5, 24
      %v3987 = vld [vmem:[%s3986] sm:$0xf]
      %v4025 = vunpack.c.l.b16 %v3949
      %v4026 = vunpack.c.l.b16 %v3950
      %v4027 = vunpack.c.l.b16 %v3951
      %v4028 = vunpack.c.l.b16 %v3952
      %v4029 = vunpack.c.l.b16 %v3953
      %v4030 = vunpack.c.l.b16 %v3954
      %v4031 = vunpack.c.l.b16 %v3955
      %v4032 = vunpack.c.l.b16 %v3956
      %v4033 = vunpack.c.l.b16 %v3957
      %v4034 = vunpack.c.l.b16 %v3958
      %v4035 = vunpack.c.l.b16 %v3959
      %v4036 = vunpack.c.l.b16 %v3960
      %v4037 = vunpack.c.l.b16 %v3961
      %v4038 = vunpack.c.l.b16 %v3962
      %v4039 = vunpack.c.l.b16 %v3963
      %v4040 = vunpack.c.l.b16 %v3964
      %v4041 = vunpack.c.l.b16 %v3965
      %v4042 = vunpack.c.l.b16 %v3966
      %v4043 = vunpack.c.l.b16 %v3967
      %v4044 = vunpack.c.l.b16 %v3968
      %v4045 = vunpack.c.l.b16 %v3969
      %v4046 = vunpack.c.l.b16 %v3970
      %v4047 = vunpack.c.l.b16 %v3971
      %v4048 = vunpack.c.l.b16 %v3972
      %v4049 = vunpack.c.l.b16 %v3973
      %v4050 = vunpack.c.l.b16 %v3974
      %v4051 = vunpack.c.l.b16 %v3975
      %v4052 = vunpack.c.l.b16 %v3976
      %v4053 = vunpack.c.l.b16 %v3977
      %v4054 = vunpack.c.l.b16 %v3978
      %v4055 = vunpack.c.l.b16 %v3979
      %v4056 = vunpack.c.l.b16 %v3980
      %v4057 = vunpack.c.l.b16 %v3981
      %v4058 = vunpack.c.l.b16 %v3982
      %v4059 = vunpack.c.l.b16 %v3983
      %v4060 = vunpack.c.l.b16 %v3984
      %v4061 = vunpack.c.l.b16 %v3985
      %v4062 = vpack.c.b16 %v4026, %v4025
      %v4063 = vpack.c.b16 %v4028, %v4027
      %v4064 = vpack.c.b16 %v4030, %v4029
      %v4065 = vpack.c.b16 %v4032, %v4031
      %v4066 = vpack.c.b16 %v4034, %v4033
      %v4067 = vpack.c.b16 %v4036, %v4035
      %v4068 = vpack.c.b16 %v4038, %v4037
      %v4069 = vpack.c.b16 %v4040, %v4039
      %v4070 = vpack.c.b16 %v4042, %v4041
      %v4071 = vpack.c.b16 %v4044, %v4043
      %v4072 = vpack.c.b16 %v4046, %v4045
      %v4073 = vpack.c.b16 %v4048, %v4047
      %v4074 = vpack.c.b16 %v4050, %v4049
      %v4075 = vpack.c.b16 %v4052, %v4051
      %v4076 = vpack.c.b16 %v4054, %v4053
      %v4077 = vpack.c.b16 %v4056, %v4055
      %v4078 = vpack.c.b16 %v4058, %v4057
      %v4079 = vpack.c.b16 %v4060, %v4059
      %v4080 = vpack.c.b16 %v4061, %v4061
      %v4081 = vrot.slane %v4062, 2
      %v4082 = vrot.slane %v4063, 2
      %v4083 = vsel %vm3641, %v4081, %v4082
      %v4084 = vrot.slane %v4064, 2
      %v4085 = vsel %vm3641, %v4082, %v4084
      %v4086 = vrot.slane %v4065, 2
      %v4087 = vsel %vm3641, %v4084, %v4086
      %v4088 = vrot.slane %v4066, 2
      %v4089 = vsel %vm3641, %v4086, %v4088
      %v4090 = vrot.slane %v4067, 2
      %v4091 = vsel %vm3641, %v4088, %v4090
      %v4092 = vrot.slane %v4068, 2
      %v4093 = vsel %vm3641, %v4090, %v4092
      %v4094 = vrot.slane %v4069, 2
      %v4095 = vsel %vm3641, %v4092, %v4094
      %v4096 = vrot.slane %v4070, 2
      %v4097 = vsel %vm3641, %v4094, %v4096
      %v4098 = vrot.slane %v4071, 2
      %v4099 = vsel %vm3641, %v4096, %v4098
      %v4100 = vrot.slane %v4072, 2
      %v4101 = vsel %vm3641, %v4098, %v4100
      %v4102 = vrot.slane %v4073, 2
      %v4103 = vsel %vm3641, %v4100, %v4102
      %v4104 = vrot.slane %v4074, 2
      %v4105 = vsel %vm3641, %v4102, %v4104
      %v4106 = vrot.slane %v4075, 2
      %v4107 = vsel %vm3641, %v4104, %v4106
      %v4108 = vrot.slane %v4076, 2
      %v4109 = vsel %vm3641, %v4106, %v4108
      %v4110 = vrot.slane %v4077, 2
      %v4111 = vsel %vm3641, %v4108, %v4110
      %v4112 = vrot.slane %v4078, 2
      %v4113 = vsel %vm3641, %v4110, %v4112
      %v4114 = vrot.slane %v4079, 2
      %v4115 = vsel %vm3641, %v4112, %v4114
      %v4116 = vrot.slane %v4080, 2
      %v4117 = vsel %vm3641, %v4114, %v4116
      %v4119 = vsel %vm1983, %v4083, 0
      %v4122 = vsel %vm1983, %v4085, 0
      %v4125 = vsel %vm1983, %v4087, 0
      %v4128 = vsel %vm1983, %v4089, 0
      %v4131 = vsel %vm1983, %v4091, 0
      %v4134 = vsel %vm1983, %v4093, 0
      %v4137 = vsel %vm1983, %v4095, 0
      %v4140 = vsel %vm1983, %v4097, 0
      %v4143 = vsel %vm1983, %v4099, 0
      %v4146 = vsel %vm1983, %v4101, 0
      %v4149 = vsel %vm1983, %v4103, 0
      %v4152 = vsel %vm1983, %v4105, 0
      %v4155 = vsel %vm1983, %v4107, 0
      %v4158 = vsel %vm1983, %v4109, 0
      %v4161 = vsel %vm1983, %v4111, 0
      %v4164 = vsel %vm1983, %v4113, 0
      %v4167 = vsel %vm1983, %v4115, 0
      %v4170 = vsel %vm1983, %v4117, 0
      %v4173 = vsel %vm2038, %v3987, 0
      %4175 = vmatprep.subr.bf16.mxu0 0
      %4176 = vmatpush1.bf16.msra.mxu0 0
      %4177 = vmatprep.subr.bf16.mxu0 0
      %4178 = vmatpush1.bf16.msra.mxu0 0
      %4179 = vmatprep.subr.bf16.mxu0 0
      %4180 = vmatpush1.bf16.msra.mxu0 0
      %4181 = vmatprep.subr.bf16.mxu0 0
      %4182 = vmatpush1.bf16.msra.mxu0 0
      %4183 = vmatprep.subr.bf16.mxu0 0
      %4184 = vmatpush1.bf16.msra.mxu0 0
      %4185 = vmatprep.subr.bf16.mxu0 0
      %4186 = vmatpush1.bf16.msra.mxu0 0
      %4187 = vmatprep.subr.bf16.mxu0 0
      %4188 = vmatpush1.bf16.msra.mxu0 0
      %4189 = vmatprep.subr.bf16.mxu0 0
      %4190 = vmatpush1.bf16.msra.mxu0 %v4173
      %4191 = vmatprep.subr.bf16.mxu0 0
      %4192 = vmatpush2.bf16.msra.mxu0 0
      %4193 = vmatprep.subr.bf16.mxu0 0
      %4194 = vmatpush2.bf16.msra.mxu0 0
      %4195 = vmatprep.subr.bf16.mxu0 0
      %4196 = vmatpush2.bf16.msra.mxu0 0
      %4197 = vmatprep.subr.bf16.mxu0 0
      %4198 = vmatpush2.bf16.msra.mxu0 0
      %4199 = vmatprep.subr.bf16.mxu0 0
      %4200 = vmatpush2.bf16.msra.mxu0 0
      %4201 = vmatprep.subr.bf16.mxu0 0
      %4202 = vmatpush2.bf16.msra.mxu0 0
      %4203 = vmatprep.subr.bf16.mxu0 0
      %4204 = vmatpush2.bf16.msra.mxu0 0
      %4205 = vmatprep.subr.bf16.mxu0 0
      %4206 = vmatpush2.bf16.msra.mxu0 0
      %4207 = vmatprep.mubr.bf16.mxu0 0
      %4208 = vmatmul.mubr.bf16.gmra.mxu0 %v4119
      %v4209 = vpop.f32.mrf.mxu0
      %v4210 = vadd.f32 0.0, %v4209
      %v4211 = vpop.f32.mrf.mxu0
      %v4212 = vpop.f32.mrf.mxu0
      %v4213 = vadd.f32 0.0, %v4212
      %v4214 = vpop.f32.mrf.mxu0
      %4215 = vmatprep.mubr.bf16.mxu0 0
      %4216 = vmatmul.mubr.bf16.gmra.mxu0 %v4122
      %v4217 = vpop.f32.mrf.mxu0
      %v4218 = vadd.f32 0.0, %v4217
      %v4219 = vpop.f32.mrf.mxu0
      %v4220 = vpop.f32.mrf.mxu0
      %v4221 = vadd.f32 0.0, %v4220
      %v4222 = vpop.f32.mrf.mxu0
      %4223 = vmatprep.mubr.bf16.mxu0 0
      %4224 = vmatmul.mubr.bf16.gmra.mxu0 %v4125
      %v4225 = vpop.f32.mrf.mxu0
      %v4226 = vadd.f32 0.0, %v4225
      %v4227 = vpop.f32.mrf.mxu0
      %v4228 = vpop.f32.mrf.mxu0
      %v4229 = vadd.f32 0.0, %v4228
      %v4230 = vpop.f32.mrf.mxu0
      %4231 = vmatprep.mubr.bf16.mxu0 0
      %4232 = vmatmul.mubr.bf16.gmra.mxu0 %v4128
      %v4233 = vpop.f32.mrf.mxu0
      %v4234 = vadd.f32 0.0, %v4233
      %v4235 = vpop.f32.mrf.mxu0
      %v4236 = vpop.f32.mrf.mxu0
      %v4237 = vadd.f32 0.0, %v4236
      %v4238 = vpop.f32.mrf.mxu0
      %4239 = vmatprep.mubr.bf16.mxu0 0
      %4240 = vmatmul.mubr.bf16.gmra.mxu0 %v4131
      %v4241 = vpop.f32.mrf.mxu0
      %v4242 = vadd.f32 0.0, %v4241
      %v4243 = vpop.f32.mrf.mxu0
      %v4244 = vpop.f32.mrf.mxu0
      %v4245 = vadd.f32 0.0, %v4244
      %v4246 = vpop.f32.mrf.mxu0
      %4247 = vmatprep.mubr.bf16.mxu0 0
      %4248 = vmatmul.mubr.bf16.gmra.mxu0 %v4134
      %v4249 = vpop.f32.mrf.mxu0
      %v4250 = vadd.f32 0.0, %v4249
      %v4251 = vpop.f32.mrf.mxu0
      %v4252 = vpop.f32.mrf.mxu0
      %v4253 = vadd.f32 0.0, %v4252
      %v4254 = vpop.f32.mrf.mxu0
      %4255 = vmatprep.mubr.bf16.mxu0 0
      %4256 = vmatmul.mubr.bf16.gmra.mxu0 %v4137
      %v4257 = vpop.f32.mrf.mxu0
      %v4258 = vadd.f32 0.0, %v4257
      %v4259 = vpop.f32.mrf.mxu0
      %v4260 = vpop.f32.mrf.mxu0
      %v4261 = vadd.f32 0.0, %v4260
      %v4262 = vpop.f32.mrf.mxu0
      %4263 = vmatprep.mubr.bf16.mxu0 0
      %4264 = vmatmul.mubr.bf16.gmra.mxu0 %v4140
      %v4265 = vpop.f32.mrf.mxu0
      %v4266 = vadd.f32 0.0, %v4265
      %v4267 = vpop.f32.mrf.mxu0
      %v4268 = vpop.f32.mrf.mxu0
      %v4269 = vadd.f32 0.0, %v4268
      %v4270 = vpop.f32.mrf.mxu0
      %4271 = vmatprep.mubr.bf16.mxu0 0
      %4272 = vmatmul.mubr.bf16.gmra.mxu0 %v4143
      %v4273 = vpop.f32.mrf.mxu0
      %v4274 = vadd.f32 0.0, %v4273
      %v4275 = vpop.f32.mrf.mxu0
      %v4276 = vpop.f32.mrf.mxu0
      %v4277 = vadd.f32 0.0, %v4276
      %v4278 = vpop.f32.mrf.mxu0
      %4279 = vmatprep.mubr.bf16.mxu0 0
      %4280 = vmatmul.mubr.bf16.gmra.mxu0 %v4146
      %v4281 = vpop.f32.mrf.mxu0
      %v4282 = vadd.f32 0.0, %v4281
      %v4283 = vpop.f32.mrf.mxu0
      %v4284 = vpop.f32.mrf.mxu0
      %v4285 = vadd.f32 0.0, %v4284
      %v4286 = vpop.f32.mrf.mxu0
      %4287 = vmatprep.mubr.bf16.mxu0 0
      %4288 = vmatmul.mubr.bf16.gmra.mxu0 %v4149
      %v4289 = vpop.f32.mrf.mxu0
      %v4290 = vadd.f32 0.0, %v4289
      %v4291 = vpop.f32.mrf.mxu0
      %v4292 = vpop.f32.mrf.mxu0
      %v4293 = vadd.f32 0.0, %v4292
      %v4294 = vpop.f32.mrf.mxu0
      %4295 = vmatprep.mubr.bf16.mxu0 0
      %4296 = vmatmul.mubr.bf16.gmra.mxu0 %v4152
      %v4297 = vpop.f32.mrf.mxu0
      %v4298 = vadd.f32 0.0, %v4297
      %v4299 = vpop.f32.mrf.mxu0
      %v4300 = vpop.f32.mrf.mxu0
      %v4301 = vadd.f32 0.0, %v4300
      %v4302 = vpop.f32.mrf.mxu0
      %4303 = vmatprep.mubr.bf16.mxu0 0
      %4304 = vmatmul.mubr.bf16.gmra.mxu0 %v4155
      %v4305 = vpop.f32.mrf.mxu0
      %v4306 = vadd.f32 0.0, %v4305
      %v4307 = vpop.f32.mrf.mxu0
      %v4308 = vpop.f32.mrf.mxu0
      %v4309 = vadd.f32 0.0, %v4308
      %v4310 = vpop.f32.mrf.mxu0
      %4311 = vmatprep.mubr.bf16.mxu0 0
      %4312 = vmatmul.mubr.bf16.gmra.mxu0 %v4158
      %v4313 = vpop.f32.mrf.mxu0
      %v4314 = vadd.f32 0.0, %v4313
      %v4315 = vpop.f32.mrf.mxu0
      %v4316 = vpop.f32.mrf.mxu0
      %v4317 = vadd.f32 0.0, %v4316
      %v4318 = vpop.f32.mrf.mxu0
      %4319 = vmatprep.mubr.bf16.mxu0 0
      %4320 = vmatmul.mubr.bf16.gmra.mxu0 %v4161
      %v4321 = vpop.f32.mrf.mxu0
      %v4322 = vadd.f32 0.0, %v4321
      %v4323 = vpop.f32.mrf.mxu0
      %v4324 = vpop.f32.mrf.mxu0
      %v4325 = vadd.f32 0.0, %v4324
      %v4326 = vpop.f32.mrf.mxu0
      %4327 = vmatprep.mubr.bf16.mxu0 0
      %4328 = vmatmul.mubr.bf16.gmra.mxu0 %v4164
      %v4329 = vpop.f32.mrf.mxu0
      %v4330 = vadd.f32 0.0, %v4329
      %v4331 = vpop.f32.mrf.mxu0
      %v4332 = vpop.f32.mrf.mxu0
      %v4333 = vadd.f32 0.0, %v4332
      %v4334 = vpop.f32.mrf.mxu0
      %4335 = vmatprep.mubr.bf16.mxu0 0
      %4336 = vmatmul.mubr.bf16.gmra.mxu0 %v4167
      %v4337 = vpop.f32.mrf.mxu0
      %v4338 = vadd.f32 0.0, %v4337
      %v4339 = vpop.f32.mrf.mxu0
      %v4340 = vpop.f32.mrf.mxu0
      %v4341 = vadd.f32 0.0, %v4340
      %v4342 = vpop.f32.mrf.mxu0
      %4343 = vmatprep.mubr.bf16.mxu0 0
      %4344 = vmatmul.mubr.bf16.gmra.mxu0 %v4170
      %v4345 = vpop.f32.mrf.mxu0
      %v4346 = vadd.f32 0.0, %v4345
      %v4347 = vpop.f32.mrf.mxu0
      %v4348 = vpop.f32.mrf.mxu0
      %v4349 = vadd.f32 0.0, %v4348
      %v4350 = vpop.f32.mrf.mxu0
      %4351 = vdwg.mxu0
      %v4352 = vadd.f32 %v3913, %v4210
      %v4353 = vadd.f32 %v3914, %v4213
      %v4354 = vadd.f32 %v3915, %v4218
      %v4355 = vadd.f32 %v3916, %v4221
      %v4356 = vadd.f32 %v3917, %v4226
      %v4357 = vadd.f32 %v3918, %v4229
      %v4358 = vadd.f32 %v3919, %v4234
      %v4359 = vadd.f32 %v3920, %v4237
      %v4360 = vadd.f32 %v3921, %v4242
      %v4361 = vadd.f32 %v3922, %v4245
      %v4362 = vadd.f32 %v3923, %v4250
      %v4363 = vadd.f32 %v3924, %v4253
      %v4364 = vadd.f32 %v3925, %v4258
      %v4365 = vadd.f32 %v3926, %v4261
      %v4366 = vadd.f32 %v3927, %v4266
      %v4367 = vadd.f32 %v3928, %v4269
      %v4368 = vadd.f32 %v3929, %v4274
      %v4369 = vadd.f32 %v3930, %v4277
      %v4370 = vadd.f32 %v3931, %v4282
      %v4371 = vadd.f32 %v3932, %v4285
      %v4372 = vadd.f32 %v3933, %v4290
      %v4373 = vadd.f32 %v3934, %v4293
      %v4374 = vadd.f32 %v3935, %v4298
      %v4375 = vadd.f32 %v3936, %v4301
      %v4376 = vadd.f32 %v3937, %v4306
      %v4377 = vadd.f32 %v3938, %v4309
      %v4378 = vadd.f32 %v3939, %v4314
      %v4379 = vadd.f32 %v3940, %v4317
      %v4380 = vadd.f32 %v3941, %v4322
      %v4381 = vadd.f32 %v3942, %v4325
      %v4382 = vadd.f32 %v3943, %v4330
      %v4383 = vadd.f32 %v3944, %v4333
      %v4384 = vadd.f32 %v3945, %v4338
      %v4385 = vadd.f32 %v3946, %v4341
      %v4386 = vadd.f32 %v3947, %v4346
      %v4387 = vadd.f32 %v3948, %v4349
      %v4388 = vld [vmem:[#allocation2 + $0xa0] sm:$0x7]
      %s4389 = scalar_lea.vmem %s5, 28
      %v4390 = vld [vmem:[%s4389] sm:$0xf]
      %v4392 = vunpack.c.l.b16 %v4388
      %v4393 = vpack.c.b16 %v4392, %v4392
      %vm4394 = vsmask.f32 5376
      %v4396 = vshrl.u32 %v4062, 16
      %v4398 = vrot.slane %v4396, 2
      %v4399 = vshll.u32 %v4062, 16
      %v4401 = vrot.slane %v4399, 3
      %v4402 = vor.u32 %v4398, %v4401
      %v4404 = vshrl.u32 %v4063, 16
      %v4406 = vrot.slane %v4404, 2
      %v4407 = vshll.u32 %v4063, 16
      %v4409 = vrot.slane %v4407, 3
      %v4410 = vor.u32 %v4406, %v4409
      %v4411 = vsel %vm4394, %v4402, %v4410
      %v4413 = vshrl.u32 %v4064, 16
      %v4415 = vrot.slane %v4413, 2
      %v4416 = vshll.u32 %v4064, 16
      %v4418 = vrot.slane %v4416, 3
      %v4419 = vor.u32 %v4415, %v4418
      %v4420 = vsel %vm4394, %v4410, %v4419
      %v4422 = vshrl.u32 %v4065, 16
      %v4424 = vrot.slane %v4422, 2
      %v4425 = vshll.u32 %v4065, 16
      %v4427 = vrot.slane %v4425, 3
      %v4428 = vor.u32 %v4424, %v4427
      %v4429 = vsel %vm4394, %v4419, %v4428
      %v4431 = vshrl.u32 %v4066, 16
      %v4433 = vrot.slane %v4431, 2
      %v4434 = vshll.u32 %v4066, 16
      %v4436 = vrot.slane %v4434, 3
      %v4437 = vor.u32 %v4433, %v4436
      %v4438 = vsel %vm4394, %v4428, %v4437
      %v4440 = vshrl.u32 %v4067, 16
      %v4442 = vrot.slane %v4440, 2
      %v4443 = vshll.u32 %v4067, 16
      %v4445 = vrot.slane %v4443, 3
      %v4446 = vor.u32 %v4442, %v4445
      %v4447 = vsel %vm4394, %v4437, %v4446
      %v4449 = vshrl.u32 %v4068, 16
      %v4451 = vrot.slane %v4449, 2
      %v4452 = vshll.u32 %v4068, 16
      %v4454 = vrot.slane %v4452, 3
      %v4455 = vor.u32 %v4451, %v4454
      %v4456 = vsel %vm4394, %v4446, %v4455
      %v4458 = vshrl.u32 %v4069, 16
      %v4460 = vrot.slane %v4458, 2
      %v4461 = vshll.u32 %v4069, 16
      %v4463 = vrot.slane %v4461, 3
      %v4464 = vor.u32 %v4460, %v4463
      %v4465 = vsel %vm4394, %v4455, %v4464
      %v4467 = vshrl.u32 %v4070, 16
      %v4469 = vrot.slane %v4467, 2
      %v4470 = vshll.u32 %v4070, 16
      %v4472 = vrot.slane %v4470, 3
      %v4473 = vor.u32 %v4469, %v4472
      %v4474 = vsel %vm4394, %v4464, %v4473
      %v4476 = vshrl.u32 %v4071, 16
      %v4478 = vrot.slane %v4476, 2
      %v4479 = vshll.u32 %v4071, 16
      %v4481 = vrot.slane %v4479, 3
      %v4482 = vor.u32 %v4478, %v4481
      %v4483 = vsel %vm4394, %v4473, %v4482
      %v4485 = vshrl.u32 %v4072, 16
      %v4487 = vrot.slane %v4485, 2
      %v4488 = vshll.u32 %v4072, 16
      %v4490 = vrot.slane %v4488, 3
      %v4491 = vor.u32 %v4487, %v4490
      %v4492 = vsel %vm4394, %v4482, %v4491
      %v4494 = vshrl.u32 %v4073, 16
      %v4496 = vrot.slane %v4494, 2
      %v4497 = vshll.u32 %v4073, 16
      %v4499 = vrot.slane %v4497, 3
      %v4500 = vor.u32 %v4496, %v4499
      %v4501 = vsel %vm4394, %v4491, %v4500
      %v4503 = vshrl.u32 %v4074, 16
      %v4505 = vrot.slane %v4503, 2
      %v4506 = vshll.u32 %v4074, 16
      %v4508 = vrot.slane %v4506, 3
      %v4509 = vor.u32 %v4505, %v4508
      %v4510 = vsel %vm4394, %v4500, %v4509
      %v4512 = vshrl.u32 %v4075, 16
      %v4514 = vrot.slane %v4512, 2
      %v4515 = vshll.u32 %v4075, 16
      %v4517 = vrot.slane %v4515, 3
      %v4518 = vor.u32 %v4514, %v4517
      %v4519 = vsel %vm4394, %v4509, %v4518
      %v4521 = vshrl.u32 %v4076, 16
      %v4523 = vrot.slane %v4521, 2
      %v4524 = vshll.u32 %v4076, 16
      %v4526 = vrot.slane %v4524, 3
      %v4527 = vor.u32 %v4523, %v4526
      %v4528 = vsel %vm4394, %v4518, %v4527
      %v4530 = vshrl.u32 %v4077, 16
      %v4532 = vrot.slane %v4530, 2
      %v4533 = vshll.u32 %v4077, 16
      %v4535 = vrot.slane %v4533, 3
      %v4536 = vor.u32 %v4532, %v4535
      %v4537 = vsel %vm4394, %v4527, %v4536
      %v4539 = vshrl.u32 %v4078, 16
      %v4541 = vrot.slane %v4539, 2
      %v4542 = vshll.u32 %v4078, 16
      %v4544 = vrot.slane %v4542, 3
      %v4545 = vor.u32 %v4541, %v4544
      %v4546 = vsel %vm4394, %v4536, %v4545
      %v4548 = vshrl.u32 %v4079, 16
      %v4550 = vrot.slane %v4548, 2
      %v4551 = vshll.u32 %v4079, 16
      %v4553 = vrot.slane %v4551, 3
      %v4554 = vor.u32 %v4550, %v4553
      %v4555 = vsel %vm4394, %v4545, %v4554
      %v4557 = vshrl.u32 %v4393, 16
      %v4559 = vrot.slane %v4557, 2
      %v4560 = vshll.u32 %v4393, 16
      %v4562 = vrot.slane %v4560, 3
      %v4563 = vor.u32 %v4559, %v4562
      %v4564 = vsel %vm4394, %v4554, %v4563
      %v4566 = vsel %vm1983, %v4411, 0
      %v4569 = vsel %vm1983, %v4420, 0
      %v4572 = vsel %vm1983, %v4429, 0
      %v4575 = vsel %vm1983, %v4438, 0
      %v4578 = vsel %vm1983, %v4447, 0
      %v4581 = vsel %vm1983, %v4456, 0
      %v4584 = vsel %vm1983, %v4465, 0
      %v4587 = vsel %vm1983, %v4474, 0
      %v4590 = vsel %vm1983, %v4483, 0
      %v4593 = vsel %vm1983, %v4492, 0
      %v4596 = vsel %vm1983, %v4501, 0
      %v4599 = vsel %vm1983, %v4510, 0
      %v4602 = vsel %vm1983, %v4519, 0
      %v4605 = vsel %vm1983, %v4528, 0
      %v4608 = vsel %vm1983, %v4537, 0
      %v4611 = vsel %vm1983, %v4546, 0
      %v4614 = vsel %vm1983, %v4555, 0
      %v4617 = vsel %vm1983, %v4564, 0
      %v4620 = vsel %vm2038, %v4390, 0
      %4622 = vmatprep.subr.bf16.mxu0 0
      %4623 = vmatpush1.bf16.msra.mxu0 0
      %4624 = vmatprep.subr.bf16.mxu0 0
      %4625 = vmatpush1.bf16.msra.mxu0 0
      %4626 = vmatprep.subr.bf16.mxu0 0
      %4627 = vmatpush1.bf16.msra.mxu0 0
      %4628 = vmatprep.subr.bf16.mxu0 0
      %4629 = vmatpush1.bf16.msra.mxu0 0
      %4630 = vmatprep.subr.bf16.mxu0 0
      %4631 = vmatpush1.bf16.msra.mxu0 0
      %4632 = vmatprep.subr.bf16.mxu0 0
      %4633 = vmatpush1.bf16.msra.mxu0 0
      %4634 = vmatprep.subr.bf16.mxu0 0
      %4635 = vmatpush1.bf16.msra.mxu0 0
      %4636 = vmatprep.subr.bf16.mxu0 0
      %4637 = vmatpush1.bf16.msra.mxu0 %v4620
      %4638 = vmatprep.subr.bf16.mxu0 0
      %4639 = vmatpush2.bf16.msra.mxu0 0
      %4640 = vmatprep.subr.bf16.mxu0 0
      %4641 = vmatpush2.bf16.msra.mxu0 0
      %4642 = vmatprep.subr.bf16.mxu0 0
      %4643 = vmatpush2.bf16.msra.mxu0 0
      %4644 = vmatprep.subr.bf16.mxu0 0
      %4645 = vmatpush2.bf16.msra.mxu0 0
      %4646 = vmatprep.subr.bf16.mxu0 0
      %4647 = vmatpush2.bf16.msra.mxu0 0
      %4648 = vmatprep.subr.bf16.mxu0 0
      %4649 = vmatpush2.bf16.msra.mxu0 0
      %4650 = vmatprep.subr.bf16.mxu0 0
      %4651 = vmatpush2.bf16.msra.mxu0 0
      %4652 = vmatprep.subr.bf16.mxu0 0
      %4653 = vmatpush2.bf16.msra.mxu0 0
      %4654 = vmatprep.mubr.bf16.mxu0 0
      %4655 = vmatmul.mubr.bf16.gmra.mxu0 %v4566
      %v4656 = vpop.f32.mrf.mxu0
      %v4657 = vadd.f32 0.0, %v4656
      %v4658 = vpop.f32.mrf.mxu0
      %v4659 = vpop.f32.mrf.mxu0
      %v4660 = vadd.f32 0.0, %v4659
      %v4661 = vpop.f32.mrf.mxu0
      %4662 = vmatprep.mubr.bf16.mxu0 0
      %4663 = vmatmul.mubr.bf16.gmra.mxu0 %v4569
      %v4664 = vpop.f32.mrf.mxu0
      %v4665 = vadd.f32 0.0, %v4664
      %v4666 = vpop.f32.mrf.mxu0
      %v4667 = vpop.f32.mrf.mxu0
      %v4668 = vadd.f32 0.0, %v4667
      %v4669 = vpop.f32.mrf.mxu0
      %4670 = vmatprep.mubr.bf16.mxu0 0
      %4671 = vmatmul.mubr.bf16.gmra.mxu0 %v4572
      %v4672 = vpop.f32.mrf.mxu0
      %v4673 = vadd.f32 0.0, %v4672
      %v4674 = vpop.f32.mrf.mxu0
      %v4675 = vpop.f32.mrf.mxu0
      %v4676 = vadd.f32 0.0, %v4675
      %v4677 = vpop.f32.mrf.mxu0
      %4678 = vmatprep.mubr.bf16.mxu0 0
      %4679 = vmatmul.mubr.bf16.gmra.mxu0 %v4575
      %v4680 = vpop.f32.mrf.mxu0
      %v4681 = vadd.f32 0.0, %v4680
      %v4682 = vpop.f32.mrf.mxu0
      %v4683 = vpop.f32.mrf.mxu0
      %v4684 = vadd.f32 0.0, %v4683
      %v4685 = vpop.f32.mrf.mxu0
      %4686 = vmatprep.mubr.bf16.mxu0 0
      %4687 = vmatmul.mubr.bf16.gmra.mxu0 %v4578
      %v4688 = vpop.f32.mrf.mxu0
      %v4689 = vadd.f32 0.0, %v4688
      %v4690 = vpop.f32.mrf.mxu0
      %v4691 = vpop.f32.mrf.mxu0
      %v4692 = vadd.f32 0.0, %v4691
      %v4693 = vpop.f32.mrf.mxu0
      %4694 = vmatprep.mubr.bf16.mxu0 0
      %4695 = vmatmul.mubr.bf16.gmra.mxu0 %v4581
      %v4696 = vpop.f32.mrf.mxu0
      %v4697 = vadd.f32 0.0, %v4696
      %v4698 = vpop.f32.mrf.mxu0
      %v4699 = vpop.f32.mrf.mxu0
      %v4700 = vadd.f32 0.0, %v4699
      %v4701 = vpop.f32.mrf.mxu0
      %4702 = vmatprep.mubr.bf16.mxu0 0
      %4703 = vmatmul.mubr.bf16.gmra.mxu0 %v4584
      %v4704 = vpop.f32.mrf.mxu0
      %v4705 = vadd.f32 0.0, %v4704
      %v4706 = vpop.f32.mrf.mxu0
      %v4707 = vpop.f32.mrf.mxu0
      %v4708 = vadd.f32 0.0, %v4707
      %v4709 = vpop.f32.mrf.mxu0
      %4710 = vmatprep.mubr.bf16.mxu0 0
      %4711 = vmatmul.mubr.bf16.gmra.mxu0 %v4587
      %v4712 = vpop.f32.mrf.mxu0
      %v4713 = vadd.f32 0.0, %v4712
      %v4714 = vpop.f32.mrf.mxu0
      %v4715 = vpop.f32.mrf.mxu0
      %v4716 = vadd.f32 0.0, %v4715
      %v4717 = vpop.f32.mrf.mxu0
      %4718 = vmatprep.mubr.bf16.mxu0 0
      %4719 = vmatmul.mubr.bf16.gmra.mxu0 %v4590
      %v4720 = vpop.f32.mrf.mxu0
      %v4721 = vadd.f32 0.0, %v4720
      %v4722 = vpop.f32.mrf.mxu0
      %v4723 = vpop.f32.mrf.mxu0
      %v4724 = vadd.f32 0.0, %v4723
      %v4725 = vpop.f32.mrf.mxu0
      %4726 = vmatprep.mubr.bf16.mxu0 0
      %4727 = vmatmul.mubr.bf16.gmra.mxu0 %v4593
      %v4728 = vpop.f32.mrf.mxu0
      %v4729 = vadd.f32 0.0, %v4728
      %v4730 = vpop.f32.mrf.mxu0
      %v4731 = vpop.f32.mrf.mxu0
      %v4732 = vadd.f32 0.0, %v4731
      %v4733 = vpop.f32.mrf.mxu0
      %4734 = vmatprep.mubr.bf16.mxu0 0
      %4735 = vmatmul.mubr.bf16.gmra.mxu0 %v4596
      %v4736 = vpop.f32.mrf.mxu0
      %v4737 = vadd.f32 0.0, %v4736
      %v4738 = vpop.f32.mrf.mxu0
      %v4739 = vpop.f32.mrf.mxu0
      %v4740 = vadd.f32 0.0, %v4739
      %v4741 = vpop.f32.mrf.mxu0
      %4742 = vmatprep.mubr.bf16.mxu0 0
      %4743 = vmatmul.mubr.bf16.gmra.mxu0 %v4599
      %v4744 = vpop.f32.mrf.mxu0
      %v4745 = vadd.f32 0.0, %v4744
      %v4746 = vpop.f32.mrf.mxu0
      %v4747 = vpop.f32.mrf.mxu0
      %v4748 = vadd.f32 0.0, %v4747
      %v4749 = vpop.f32.mrf.mxu0
      %4750 = vmatprep.mubr.bf16.mxu0 0
      %4751 = vmatmul.mubr.bf16.gmra.mxu0 %v4602
      %v4752 = vpop.f32.mrf.mxu0
      %v4753 = vadd.f32 0.0, %v4752
      %v4754 = vpop.f32.mrf.mxu0
      %v4755 = vpop.f32.mrf.mxu0
      %v4756 = vadd.f32 0.0, %v4755
      %v4757 = vpop.f32.mrf.mxu0
      %4758 = vmatprep.mubr.bf16.mxu0 0
      %4759 = vmatmul.mubr.bf16.gmra.mxu0 %v4605
      %v4760 = vpop.f32.mrf.mxu0
      %v4761 = vadd.f32 0.0, %v4760
      %v4762 = vpop.f32.mrf.mxu0
      %v4763 = vpop.f32.mrf.mxu0
      %v4764 = vadd.f32 0.0, %v4763
      %v4765 = vpop.f32.mrf.mxu0
      %4766 = vmatprep.mubr.bf16.mxu0 0
      %4767 = vmatmul.mubr.bf16.gmra.mxu0 %v4608
      %v4768 = vpop.f32.mrf.mxu0
      %v4769 = vadd.f32 0.0, %v4768
      %v4770 = vpop.f32.mrf.mxu0
      %v4771 = vpop.f32.mrf.mxu0
      %v4772 = vadd.f32 0.0, %v4771
      %v4773 = vpop.f32.mrf.mxu0
      %4774 = vmatprep.mubr.bf16.mxu0 0
      %4775 = vmatmul.mubr.bf16.gmra.mxu0 %v4611
      %v4776 = vpop.f32.mrf.mxu0
      %v4777 = vadd.f32 0.0, %v4776
      %v4778 = vpop.f32.mrf.mxu0
      %v4779 = vpop.f32.mrf.mxu0
      %v4780 = vadd.f32 0.0, %v4779
      %v4781 = vpop.f32.mrf.mxu0
      %4782 = vmatprep.mubr.bf16.mxu0 0
      %4783 = vmatmul.mubr.bf16.gmra.mxu0 %v4614
      %v4784 = vpop.f32.mrf.mxu0
      %v4785 = vadd.f32 0.0, %v4784
      %v4786 = vpop.f32.mrf.mxu0
      %v4787 = vpop.f32.mrf.mxu0
      %v4788 = vadd.f32 0.0, %v4787
      %v4789 = vpop.f32.mrf.mxu0
      %4790 = vmatprep.mubr.bf16.mxu0 0
      %4791 = vmatmul.mubr.bf16.gmra.mxu0 %v4617
      %v4792 = vpop.f32.mrf.mxu0
      %v4793 = vadd.f32 0.0, %v4792
      %v4794 = vpop.f32.mrf.mxu0
      %v4795 = vpop.f32.mrf.mxu0
      %v4796 = vadd.f32 0.0, %v4795
      %v4797 = vpop.f32.mrf.mxu0
      %4798 = vdwg.mxu0
      %v4799 = vadd.f32 %v4352, %v4657
      %v4800 = vadd.f32 %v4353, %v4660
      %v4801 = vadd.f32 %v4354, %v4665
      %v4802 = vadd.f32 %v4355, %v4668
      %v4803 = vadd.f32 %v4356, %v4673
      %v4804 = vadd.f32 %v4357, %v4676
      %v4805 = vadd.f32 %v4358, %v4681
      %v4806 = vadd.f32 %v4359, %v4684
      %v4807 = vadd.f32 %v4360, %v4689
      %v4808 = vadd.f32 %v4361, %v4692
      %v4809 = vadd.f32 %v4362, %v4697
      %v4810 = vadd.f32 %v4363, %v4700
      %v4811 = vadd.f32 %v4364, %v4705
      %v4812 = vadd.f32 %v4365, %v4708
      %v4813 = vadd.f32 %v4366, %v4713
      %v4814 = vadd.f32 %v4367, %v4716
      %v4815 = vadd.f32 %v4368, %v4721
      %v4816 = vadd.f32 %v4369, %v4724
      %v4817 = vadd.f32 %v4370, %v4729
      %v4818 = vadd.f32 %v4371, %v4732
      %v4819 = vadd.f32 %v4372, %v4737
      %v4820 = vadd.f32 %v4373, %v4740
      %v4821 = vadd.f32 %v4374, %v4745
      %v4822 = vadd.f32 %v4375, %v4748
      %v4823 = vadd.f32 %v4376, %v4753
      %v4824 = vadd.f32 %v4377, %v4756
      %v4825 = vadd.f32 %v4378, %v4761
      %v4826 = vadd.f32 %v4379, %v4764
      %v4827 = vadd.f32 %v4380, %v4769
      %v4828 = vadd.f32 %v4381, %v4772
      %v4829 = vadd.f32 %v4382, %v4777
      %v4830 = vadd.f32 %v4383, %v4780
      %v4831 = vadd.f32 %v4384, %v4785
      %v4832 = vadd.f32 %v4385, %v4788
      %v4833 = vadd.f32 %v4386, %v4793
      %v4834 = vadd.f32 %v4387, %v4796
      %v4835 = vld [vmem:[#allocation2 + $0x10] sm:$0x8]
      %s4836 = scalar_lea.vmem %s5, 32
      %v4837 = vld [vmem:[%s4836] sm:$0xf]
      %v4839 = vunpack.c.l.b16 %v4835
      %v4840 = vpack.c.b16 %v4026, %v4839
      %vm4841 = vcmask 1044480
      %v4842 = vrot.slane %v4840, 3
      %v4843 = vrot.slane %v4063, 3
      %v4844 = vsel %vm4841, %v4842, %v4843
      %v4845 = vrot.slane %v4064, 3
      %v4846 = vsel %vm4841, %v4843, %v4845
      %v4847 = vrot.slane %v4065, 3
      %v4848 = vsel %vm4841, %v4845, %v4847
      %v4849 = vrot.slane %v4066, 3
      %v4850 = vsel %vm4841, %v4847, %v4849
      %v4851 = vrot.slane %v4067, 3
      %v4852 = vsel %vm4841, %v4849, %v4851
      %v4853 = vrot.slane %v4068, 3
      %v4854 = vsel %vm4841, %v4851, %v4853
      %v4855 = vrot.slane %v4069, 3
      %v4856 = vsel %vm4841, %v4853, %v4855
      %v4857 = vrot.slane %v4070, 3
      %v4858 = vsel %vm4841, %v4855, %v4857
      %v4859 = vrot.slane %v4071, 3
      %v4860 = vsel %vm4841, %v4857, %v4859
      %v4861 = vrot.slane %v4072, 3
      %v4862 = vsel %vm4841, %v4859, %v4861
      %v4863 = vrot.slane %v4073, 3
      %v4864 = vsel %vm4841, %v4861, %v4863
      %v4865 = vrot.slane %v4074, 3
      %v4866 = vsel %vm4841, %v4863, %v4865
      %v4867 = vrot.slane %v4075, 3
      %v4868 = vsel %vm4841, %v4865, %v4867
      %v4869 = vrot.slane %v4076, 3
      %v4870 = vsel %vm4841, %v4867, %v4869
      %v4871 = vrot.slane %v4077, 3
      %v4872 = vsel %vm4841, %v4869, %v4871
      %v4873 = vrot.slane %v4078, 3
      %v4874 = vsel %vm4841, %v4871, %v4873
      %v4875 = vrot.slane %v4079, 3
      %v4876 = vsel %vm4841, %v4873, %v4875
      %v4877 = vrot.slane %v4393, 3
      %v4878 = vsel %vm4841, %v4875, %v4877
      %v4880 = vsel %vm1983, %v4844, 0
      %v4883 = vsel %vm1983, %v4846, 0
      %v4886 = vsel %vm1983, %v4848, 0
      %v4889 = vsel %vm1983, %v4850, 0
      %v4892 = vsel %vm1983, %v4852, 0
      %v4895 = vsel %vm1983, %v4854, 0
      %v4898 = vsel %vm1983, %v4856, 0
      %v4901 = vsel %vm1983, %v4858, 0
      %v4904 = vsel %vm1983, %v4860, 0
      %v4907 = vsel %vm1983, %v4862, 0
      %v4910 = vsel %vm1983, %v4864, 0
      %v4913 = vsel %vm1983, %v4866, 0
      %v4916 = vsel %vm1983, %v4868, 0
      %v4919 = vsel %vm1983, %v4870, 0
      %v4922 = vsel %vm1983, %v4872, 0
      %v4925 = vsel %vm1983, %v4874, 0
      %v4928 = vsel %vm1983, %v4876, 0
      %v4931 = vsel %vm1983, %v4878, 0
      %v4934 = vsel %vm2038, %v4837, 0
      %4936 = vmatprep.subr.bf16.mxu0 0
      %4937 = vmatpush1.bf16.msra.mxu0 0
      %4938 = vmatprep.subr.bf16.mxu0 0
      %4939 = vmatpush1.bf16.msra.mxu0 0
      %4940 = vmatprep.subr.bf16.mxu0 0
      %4941 = vmatpush1.bf16.msra.mxu0 0
      %4942 = vmatprep.subr.bf16.mxu0 0
      %4943 = vmatpush1.bf16.msra.mxu0 0
      %4944 = vmatprep.subr.bf16.mxu0 0
      %4945 = vmatpush1.bf16.msra.mxu0 0
      %4946 = vmatprep.subr.bf16.mxu0 0
      %4947 = vmatpush1.bf16.msra.mxu0 0
      %4948 = vmatprep.subr.bf16.mxu0 0
      %4949 = vmatpush1.bf16.msra.mxu0 0
      %4950 = vmatprep.subr.bf16.mxu0 0
      %4951 = vmatpush1.bf16.msra.mxu0 %v4934
      %4952 = vmatprep.subr.bf16.mxu0 0
      %4953 = vmatpush2.bf16.msra.mxu0 0
      %4954 = vmatprep.subr.bf16.mxu0 0
      %4955 = vmatpush2.bf16.msra.mxu0 0
      %4956 = vmatprep.subr.bf16.mxu0 0
      %4957 = vmatpush2.bf16.msra.mxu0 0
      %4958 = vmatprep.subr.bf16.mxu0 0
      %4959 = vmatpush2.bf16.msra.mxu0 0
      %4960 = vmatprep.subr.bf16.mxu0 0
      %4961 = vmatpush2.bf16.msra.mxu0 0
      %4962 = vmatprep.subr.bf16.mxu0 0
      %4963 = vmatpush2.bf16.msra.mxu0 0
      %4964 = vmatprep.subr.bf16.mxu0 0
      %4965 = vmatpush2.bf16.msra.mxu0 0
      %4966 = vmatprep.subr.bf16.mxu0 0
      %4967 = vmatpush2.bf16.msra.mxu0 0
      %4968 = vmatprep.mubr.bf16.mxu0 0
      %4969 = vmatmul.mubr.bf16.gmra.mxu0 %v4880
      %v4970 = vpop.f32.mrf.mxu0
      %v4971 = vadd.f32 0.0, %v4970
      %v4972 = vpop.f32.mrf.mxu0
      %v4973 = vpop.f32.mrf.mxu0
      %v4974 = vadd.f32 0.0, %v4973
      %v4975 = vpop.f32.mrf.mxu0
      %4976 = vmatprep.mubr.bf16.mxu0 0
      %4977 = vmatmul.mubr.bf16.gmra.mxu0 %v4883
      %v4978 = vpop.f32.mrf.mxu0
      %v4979 = vadd.f32 0.0, %v4978
      %v4980 = vpop.f32.mrf.mxu0
      %v4981 = vpop.f32.mrf.mxu0
      %v4982 = vadd.f32 0.0, %v4981
      %v4983 = vpop.f32.mrf.mxu0
      %4984 = vmatprep.mubr.bf16.mxu0 0
      %4985 = vmatmul.mubr.bf16.gmra.mxu0 %v4886
      %v4986 = vpop.f32.mrf.mxu0
      %v4987 = vadd.f32 0.0, %v4986
      %v4988 = vpop.f32.mrf.mxu0
      %v4989 = vpop.f32.mrf.mxu0
      %v4990 = vadd.f32 0.0, %v4989
      %v4991 = vpop.f32.mrf.mxu0
      %4992 = vmatprep.mubr.bf16.mxu0 0
      %4993 = vmatmul.mubr.bf16.gmra.mxu0 %v4889
      %v4994 = vpop.f32.mrf.mxu0
      %v4995 = vadd.f32 0.0, %v4994
      %v4996 = vpop.f32.mrf.mxu0
      %v4997 = vpop.f32.mrf.mxu0
      %v4998 = vadd.f32 0.0, %v4997
      %v4999 = vpop.f32.mrf.mxu0
      %5000 = vmatprep.mubr.bf16.mxu0 0
      %5001 = vmatmul.mubr.bf16.gmra.mxu0 %v4892
      %v5002 = vpop.f32.mrf.mxu0
      %v5003 = vadd.f32 0.0, %v5002
      %v5004 = vpop.f32.mrf.mxu0
      %v5005 = vpop.f32.mrf.mxu0
      %v5006 = vadd.f32 0.0, %v5005
      %v5007 = vpop.f32.mrf.mxu0
      %5008 = vmatprep.mubr.bf16.mxu0 0
      %5009 = vmatmul.mubr.bf16.gmra.mxu0 %v4895
      %v5010 = vpop.f32.mrf.mxu0
      %v5011 = vadd.f32 0.0, %v5010
      %v5012 = vpop.f32.mrf.mxu0
      %v5013 = vpop.f32.mrf.mxu0
      %v5014 = vadd.f32 0.0, %v5013
      %v5015 = vpop.f32.mrf.mxu0
      %5016 = vmatprep.mubr.bf16.mxu0 0
      %5017 = vmatmul.mubr.bf16.gmra.mxu0 %v4898
      %v5018 = vpop.f32.mrf.mxu0
      %v5019 = vadd.f32 0.0, %v5018
      %v5020 = vpop.f32.mrf.mxu0
      %v5021 = vpop.f32.mrf.mxu0
      %v5022 = vadd.f32 0.0, %v5021
      %v5023 = vpop.f32.mrf.mxu0
      %5024 = vmatprep.mubr.bf16.mxu0 0
      %5025 = vmatmul.mubr.bf16.gmra.mxu0 %v4901
      %v5026 = vpop.f32.mrf.mxu0
      %v5027 = vadd.f32 0.0, %v5026
      %v5028 = vpop.f32.mrf.mxu0
      %v5029 = vpop.f32.mrf.mxu0
      %v5030 = vadd.f32 0.0, %v5029
      %v5031 = vpop.f32.mrf.mxu0
      %5032 = vmatprep.mubr.bf16.mxu0 0
      %5033 = vmatmul.mubr.bf16.gmra.mxu0 %v4904
      %v5034 = vpop.f32.mrf.mxu0
      %v5035 = vadd.f32 0.0, %v5034
      %v5036 = vpop.f32.mrf.mxu0
      %v5037 = vpop.f32.mrf.mxu0
      %v5038 = vadd.f32 0.0, %v5037
      %v5039 = vpop.f32.mrf.mxu0
      %5040 = vmatprep.mubr.bf16.mxu0 0
      %5041 = vmatmul.mubr.bf16.gmra.mxu0 %v4907
      %v5042 = vpop.f32.mrf.mxu0
      %v5043 = vadd.f32 0.0, %v5042
      %v5044 = vpop.f32.mrf.mxu0
      %v5045 = vpop.f32.mrf.mxu0
      %v5046 = vadd.f32 0.0, %v5045
      %v5047 = vpop.f32.mrf.mxu0
      %5048 = vmatprep.mubr.bf16.mxu0 0
      %5049 = vmatmul.mubr.bf16.gmra.mxu0 %v4910
      %v5050 = vpop.f32.mrf.mxu0
      %v5051 = vadd.f32 0.0, %v5050
      %v5052 = vpop.f32.mrf.mxu0
      %v5053 = vpop.f32.mrf.mxu0
      %v5054 = vadd.f32 0.0, %v5053
      %v5055 = vpop.f32.mrf.mxu0
      %5056 = vmatprep.mubr.bf16.mxu0 0
      %5057 = vmatmul.mubr.bf16.gmra.mxu0 %v4913
      %v5058 = vpop.f32.mrf.mxu0
      %v5059 = vadd.f32 0.0, %v5058
      %v5060 = vpop.f32.mrf.mxu0
      %v5061 = vpop.f32.mrf.mxu0
      %v5062 = vadd.f32 0.0, %v5061
      %v5063 = vpop.f32.mrf.mxu0
      %5064 = vmatprep.mubr.bf16.mxu0 0
      %5065 = vmatmul.mubr.bf16.gmra.mxu0 %v4916
      %v5066 = vpop.f32.mrf.mxu0
      %v5067 = vadd.f32 0.0, %v5066
      %v5068 = vpop.f32.mrf.mxu0
      %v5069 = vpop.f32.mrf.mxu0
      %v5070 = vadd.f32 0.0, %v5069
      %v5071 = vpop.f32.mrf.mxu0
      %5072 = vmatprep.mubr.bf16.mxu0 0
      %5073 = vmatmul.mubr.bf16.gmra.mxu0 %v4919
      %v5074 = vpop.f32.mrf.mxu0
      %v5075 = vadd.f32 0.0, %v5074
      %v5076 = vpop.f32.mrf.mxu0
      %v5077 = vpop.f32.mrf.mxu0
      %v5078 = vadd.f32 0.0, %v5077
      %v5079 = vpop.f32.mrf.mxu0
      %5080 = vmatprep.mubr.bf16.mxu0 0
      %5081 = vmatmul.mubr.bf16.gmra.mxu0 %v4922
      %v5082 = vpop.f32.mrf.mxu0
      %v5083 = vadd.f32 0.0, %v5082
      %v5084 = vpop.f32.mrf.mxu0
      %v5085 = vpop.f32.mrf.mxu0
      %v5086 = vadd.f32 0.0, %v5085
      %v5087 = vpop.f32.mrf.mxu0
      %5088 = vmatprep.mubr.bf16.mxu0 0
      %5089 = vmatmul.mubr.bf16.gmra.mxu0 %v4925
      %v5090 = vpop.f32.mrf.mxu0
      %v5091 = vadd.f32 0.0, %v5090
      %v5092 = vpop.f32.mrf.mxu0
      %v5093 = vpop.f32.mrf.mxu0
      %v5094 = vadd.f32 0.0, %v5093
      %v5095 = vpop.f32.mrf.mxu0
      %5096 = vmatprep.mubr.bf16.mxu0 0
      %5097 = vmatmul.mubr.bf16.gmra.mxu0 %v4928
      %v5098 = vpop.f32.mrf.mxu0
      %v5099 = vadd.f32 0.0, %v5098
      %v5100 = vpop.f32.mrf.mxu0
      %v5101 = vpop.f32.mrf.mxu0
      %v5102 = vadd.f32 0.0, %v5101
      %v5103 = vpop.f32.mrf.mxu0
      %5104 = vmatprep.mubr.bf16.mxu0 0
      %5105 = vmatmul.mubr.bf16.gmra.mxu0 %v4931
      %v5106 = vpop.f32.mrf.mxu0
      %v5107 = vadd.f32 0.0, %v5106
      %v5108 = vpop.f32.mrf.mxu0
      %v5109 = vpop.f32.mrf.mxu0
      %v5110 = vadd.f32 0.0, %v5109
      %v5111 = vpop.f32.mrf.mxu0
      %5112 = vdwg.mxu0
      %v5113 = vadd.f32 %v4799, %v4971
      %v5114 = vadd.f32 %v4800, %v4974
      %v5115 = vadd.f32 %v4801, %v4979
      %v5116 = vadd.f32 %v4802, %v4982
      %v5117 = vadd.f32 %v4803, %v4987
      %v5118 = vadd.f32 %v4804, %v4990
      %v5119 = vadd.f32 %v4805, %v4995
      %v5120 = vadd.f32 %v4806, %v4998
      %v5121 = vadd.f32 %v4807, %v5003
      %v5122 = vadd.f32 %v4808, %v5006
      %v5123 = vadd.f32 %v4809, %v5011
      %v5124 = vadd.f32 %v4810, %v5014
      %v5125 = vadd.f32 %v4811, %v5019
      %v5126 = vadd.f32 %v4812, %v5022
      %v5127 = vadd.f32 %v4813, %v5027
      %v5128 = vadd.f32 %v4814, %v5030
      %v5129 = vadd.f32 %v4815, %v5035
      %v5130 = vadd.f32 %v4816, %v5038
      %v5131 = vadd.f32 %v4817, %v5043
      %v5132 = vadd.f32 %v4818, %v5046
      %v5133 = vadd.f32 %v4819, %v5051
      %v5134 = vadd.f32 %v4820, %v5054
      %v5135 = vadd.f32 %v4821, %v5059
      %v5136 = vadd.f32 %v4822, %v5062
      %v5137 = vadd.f32 %v4823, %v5067
      %v5138 = vadd.f32 %v4824, %v5070
      %v5139 = vadd.f32 %v4825, %v5075
      %v5140 = vadd.f32 %v4826, %v5078
      %v5141 = vadd.f32 %v4827, %v5083
      %v5142 = vadd.f32 %v4828, %v5086
      %v5143 = vadd.f32 %v4829, %v5091
      %v5144 = vadd.f32 %v4830, %v5094
      %v5145 = vadd.f32 %v4831, %v5099
      %v5146 = vadd.f32 %v4832, %v5102
      %v5147 = vadd.f32 %v4833, %v5107
      %v5148 = vadd.f32 %v4834, %v5110
      %v5149 = vld [vmem:[%s6] sm:$0x1]
      %v5151 = vlaneseq
      %v5152 = vshrl.u32 %v5151, 7
      %v5153 = vsub.s32 0, %v5152
      %v5154 = vrot.slane %v5149, %v5153
      %v5156 = vmul.f32 %v5113, %v5154
      %v5157 = vmul.f32 %v5114, %v5154
      %v5158 = vmul.f32 %v5115, %v5154
      %v5159 = vmul.f32 %v5116, %v5154
      %v5160 = vmul.f32 %v5117, %v5154
      %v5161 = vmul.f32 %v5118, %v5154
      %v5162 = vmul.f32 %v5119, %v5154
      %v5163 = vmul.f32 %v5120, %v5154
      %v5164 = vmul.f32 %v5121, %v5154
      %v5165 = vmul.f32 %v5122, %v5154
      %v5166 = vmul.f32 %v5123, %v5154
      %v5167 = vmul.f32 %v5124, %v5154
      %v5168 = vmul.f32 %v5125, %v5154
      %v5169 = vmul.f32 %v5126, %v5154
      %v5170 = vmul.f32 %v5127, %v5154
      %v5171 = vmul.f32 %v5128, %v5154
      %v5172 = vmul.f32 %v5129, %v5154
      %v5173 = vmul.f32 %v5130, %v5154
      %v5174 = vmul.f32 %v5131, %v5154
      %v5175 = vmul.f32 %v5132, %v5154
      %v5176 = vmul.f32 %v5133, %v5154
      %v5177 = vmul.f32 %v5134, %v5154
      %v5178 = vmul.f32 %v5135, %v5154
      %v5179 = vmul.f32 %v5136, %v5154
      %v5180 = vmul.f32 %v5137, %v5154
      %v5181 = vmul.f32 %v5138, %v5154
      %v5182 = vmul.f32 %v5139, %v5154
      %v5183 = vmul.f32 %v5140, %v5154
      %v5184 = vmul.f32 %v5141, %v5154
      %v5185 = vmul.f32 %v5142, %v5154
      %v5186 = vmul.f32 %v5143, %v5154
      %v5187 = vmul.f32 %v5144, %v5154
      %v5188 = vmul.f32 %v5145, %v5154
      %v5189 = vmul.f32 %v5146, %v5154
      %v5190 = vmul.f32 %v5147, %v5154
      %v5191 = vmul.f32 %v5148, %v5154
      %v5192 = vld [vmem:[%s7] sm:$0x1]
      %v5194 = vlaneseq
      %v5195 = vshrl.u32 %v5194, 7
      %v5196 = vsub.s32 0, %v5195
      %v5197 = vrot.slane %v5192, %v5196
      %v5199 = vadd.f32 %v5156, %v5197
      %v5200 = vadd.f32 %v5157, %v5197
      %v5201 = vadd.f32 %v5158, %v5197
      %v5202 = vadd.f32 %v5159, %v5197
      %v5203 = vadd.f32 %v5160, %v5197
      %v5204 = vadd.f32 %v5161, %v5197
      %v5205 = vadd.f32 %v5162, %v5197
      %v5206 = vadd.f32 %v5163, %v5197
      %v5207 = vadd.f32 %v5164, %v5197
      %v5208 = vadd.f32 %v5165, %v5197
      %v5209 = vadd.f32 %v5166, %v5197
      %v5210 = vadd.f32 %v5167, %v5197
      %v5211 = vadd.f32 %v5168, %v5197
      %v5212 = vadd.f32 %v5169, %v5197
      %v5213 = vadd.f32 %v5170, %v5197
      %v5214 = vadd.f32 %v5171, %v5197
      %v5215 = vadd.f32 %v5172, %v5197
      %v5216 = vadd.f32 %v5173, %v5197
      %v5217 = vadd.f32 %v5174, %v5197
      %v5218 = vadd.f32 %v5175, %v5197
      %v5219 = vadd.f32 %v5176, %v5197
      %v5220 = vadd.f32 %v5177, %v5197
      %v5221 = vadd.f32 %v5178, %v5197
      %v5222 = vadd.f32 %v5179, %v5197
      %v5223 = vadd.f32 %v5180, %v5197
      %v5224 = vadd.f32 %v5181, %v5197
      %v5225 = vadd.f32 %v5182, %v5197
      %v5226 = vadd.f32 %v5183, %v5197
      %v5227 = vadd.f32 %v5184, %v5197
      %v5228 = vadd.f32 %v5185, %v5197
      %v5229 = vadd.f32 %v5186, %v5197
      %v5230 = vadd.f32 %v5187, %v5197
      %v5231 = vadd.f32 %v5188, %v5197
      %v5232 = vadd.f32 %v5189, %v5197
      %v5233 = vadd.f32 %v5190, %v5197
      %v5234 = vadd.f32 %v5191, %v5197
      %v5235 = vmax.f32 %v5199, 0.0
      %v5236 = vmax.f32 %v5200, 0.0
      %v5237 = vmax.f32 %v5201, 0.0
      %v5238 = vmax.f32 %v5202, 0.0
      %v5239 = vmax.f32 %v5203, 0.0
      %v5240 = vmax.f32 %v5204, 0.0
      %v5241 = vmax.f32 %v5205, 0.0
      %v5242 = vmax.f32 %v5206, 0.0
      %v5243 = vmax.f32 %v5207, 0.0
      %v5244 = vmax.f32 %v5208, 0.0
      %v5245 = vmax.f32 %v5209, 0.0
      %v5246 = vmax.f32 %v5210, 0.0
      %v5247 = vmax.f32 %v5211, 0.0
      %v5248 = vmax.f32 %v5212, 0.0
      %v5249 = vmax.f32 %v5213, 0.0
      %v5250 = vmax.f32 %v5214, 0.0
      %v5251 = vmax.f32 %v5215, 0.0
      %v5252 = vmax.f32 %v5216, 0.0
      %v5253 = vmax.f32 %v5217, 0.0
      %v5254 = vmax.f32 %v5218, 0.0
      %v5255 = vmax.f32 %v5219, 0.0
      %v5256 = vmax.f32 %v5220, 0.0
      %v5257 = vmax.f32 %v5221, 0.0
      %v5258 = vmax.f32 %v5222, 0.0
      %v5259 = vmax.f32 %v5223, 0.0
      %v5260 = vmax.f32 %v5224, 0.0
      %v5261 = vmax.f32 %v5225, 0.0
      %v5262 = vmax.f32 %v5226, 0.0
      %v5263 = vmax.f32 %v5227, 0.0
      %v5264 = vmax.f32 %v5228, 0.0
      %v5265 = vmax.f32 %v5229, 0.0
      %v5266 = vmax.f32 %v5230, 0.0
      %v5267 = vmax.f32 %v5231, 0.0
      %v5268 = vmax.f32 %v5232, 0.0
      %v5269 = vmax.f32 %v5233, 0.0
      %v5270 = vmax.f32 %v5234, 0.0
      %v5271 = vpack.c.bf16 %v5236, %v5235
      %v5272 = vpack.c.bf16 %v5238, %v5237
      %v5273 = vpack.c.bf16 %v5240, %v5239
      %v5274 = vpack.c.bf16 %v5242, %v5241
      %v5275 = vpack.c.bf16 %v5244, %v5243
      %v5276 = vpack.c.bf16 %v5246, %v5245
      %v5277 = vpack.c.bf16 %v5248, %v5247
      %v5278 = vpack.c.bf16 %v5250, %v5249
      %v5279 = vpack.c.bf16 %v5252, %v5251
      %v5280 = vpack.c.bf16 %v5254, %v5253
      %v5281 = vpack.c.bf16 %v5256, %v5255
      %v5282 = vpack.c.bf16 %v5258, %v5257
      %v5283 = vpack.c.bf16 %v5260, %v5259
      %v5284 = vpack.c.bf16 %v5262, %v5261
      %v5285 = vpack.c.bf16 %v5264, %v5263
      %v5286 = vpack.c.bf16 %v5266, %v5265
      %v5287 = vpack.c.bf16 %v5268, %v5267
      %v5288 = vpack.c.bf16 %v5270, %v5269
      %v5289 = vld [vmem:[%s8] sm:$0xf]
      %v5291 = vsel %vm1983, %v5271, 0
      %v5294 = vsel %vm1983, %v5272, 0
      %v5297 = vsel %vm1983, %v5273, 0
      %v5300 = vsel %vm1983, %v5274, 0
      %v5303 = vsel %vm1983, %v5275, 0
      %v5306 = vsel %vm1983, %v5276, 0
      %v5309 = vsel %vm1983, %v5277, 0
      %v5312 = vsel %vm1983, %v5278, 0
      %v5315 = vsel %vm1983, %v5279, 0
      %v5318 = vsel %vm1983, %v5280, 0
      %v5321 = vsel %vm1983, %v5281, 0
      %v5324 = vsel %vm1983, %v5282, 0
      %v5327 = vsel %vm1983, %v5283, 0
      %v5330 = vsel %vm1983, %v5284, 0
      %v5333 = vsel %vm1983, %v5285, 0
      %v5336 = vsel %vm1983, %v5286, 0
      %v5339 = vsel %vm1983, %v5287, 0
      %v5342 = vsel %vm1983, %v5288, 0
      %v5345 = vsel %vm2038, %v5289, 0
      %5347 = vmatprep.subr.bf16.mxu0 0
      %5348 = vmatpush1.bf16.msra.mxu0 0
      %5349 = vmatprep.subr.bf16.mxu0 0
      %5350 = vmatpush1.bf16.msra.mxu0 0
      %5351 = vmatprep.subr.bf16.mxu0 0
      %5352 = vmatpush1.bf16.msra.mxu0 0
      %5353 = vmatprep.subr.bf16.mxu0 0
      %5354 = vmatpush1.bf16.msra.mxu0 0
      %5355 = vmatprep.subr.bf16.mxu0 0
      %5356 = vmatpush1.bf16.msra.mxu0 0
      %5357 = vmatprep.subr.bf16.mxu0 0
      %5358 = vmatpush1.bf16.msra.mxu0 0
      %5359 = vmatprep.subr.bf16.mxu0 0
      %5360 = vmatpush1.bf16.msra.mxu0 0
      %5361 = vmatprep.subr.bf16.mxu0 0
      %5362 = vmatpush1.bf16.msra.mxu0 %v5345
      %5363 = vmatprep.subr.bf16.mxu0 0
      %5364 = vmatpush2.bf16.msra.mxu0 0
      %5365 = vmatprep.subr.bf16.mxu0 0
      %5366 = vmatpush2.bf16.msra.mxu0 0
      %5367 = vmatprep.subr.bf16.mxu0 0
      %5368 = vmatpush2.bf16.msra.mxu0 0
      %5369 = vmatprep.subr.bf16.mxu0 0
      %5370 = vmatpush2.bf16.msra.mxu0 0
      %5371 = vmatprep.subr.bf16.mxu0 0
      %5372 = vmatpush2.bf16.msra.mxu0 0
      %5373 = vmatprep.subr.bf16.mxu0 0
      %5374 = vmatpush2.bf16.msra.mxu0 0
      %5375 = vmatprep.subr.bf16.mxu0 0
      %5376 = vmatpush2.bf16.msra.mxu0 0
      %5377 = vmatprep.subr.bf16.mxu0 0
      %5378 = vmatpush2.bf16.msra.mxu0 0
      %5379 = vmatprep.mubr.bf16.mxu0 0
      %5380 = vmatmul.mubr.bf16.gmra.mxu0 %v5291
      %v5381 = vpop.f32.mrf.mxu0
      %v5382 = vadd.f32 0.0, %v5381
      %v5383 = vpop.f32.mrf.mxu0
      %v5384 = vpop.f32.mrf.mxu0
      %v5385 = vadd.f32 0.0, %v5384
      %v5386 = vpop.f32.mrf.mxu0
      %5387 = vmatprep.mubr.bf16.mxu0 0
      %5388 = vmatmul.mubr.bf16.gmra.mxu0 %v5294
      %v5389 = vpop.f32.mrf.mxu0
      %v5390 = vadd.f32 0.0, %v5389
      %v5391 = vpop.f32.mrf.mxu0
      %v5392 = vpop.f32.mrf.mxu0
      %v5393 = vadd.f32 0.0, %v5392
      %v5394 = vpop.f32.mrf.mxu0
      %5395 = vmatprep.mubr.bf16.mxu0 0
      %5396 = vmatmul.mubr.bf16.gmra.mxu0 %v5297
      %v5397 = vpop.f32.mrf.mxu0
      %v5398 = vadd.f32 0.0, %v5397
      %v5399 = vpop.f32.mrf.mxu0
      %v5400 = vpop.f32.mrf.mxu0
      %v5401 = vadd.f32 0.0, %v5400
      %v5402 = vpop.f32.mrf.mxu0
      %5403 = vmatprep.mubr.bf16.mxu0 0
      %5404 = vmatmul.mubr.bf16.gmra.mxu0 %v5300
      %v5405 = vpop.f32.mrf.mxu0
      %v5406 = vadd.f32 0.0, %v5405
      %v5407 = vpop.f32.mrf.mxu0
      %v5408 = vpop.f32.mrf.mxu0
      %v5409 = vadd.f32 0.0, %v5408
      %v5410 = vpop.f32.mrf.mxu0
      %5411 = vmatprep.mubr.bf16.mxu0 0
      %5412 = vmatmul.mubr.bf16.gmra.mxu0 %v5303
      %v5413 = vpop.f32.mrf.mxu0
      %v5414 = vadd.f32 0.0, %v5413
      %v5415 = vpop.f32.mrf.mxu0
      %v5416 = vpop.f32.mrf.mxu0
      %v5417 = vadd.f32 0.0, %v5416
      %v5418 = vpop.f32.mrf.mxu0
      %5419 = vmatprep.mubr.bf16.mxu0 0
      %5420 = vmatmul.mubr.bf16.gmra.mxu0 %v5306
      %v5421 = vpop.f32.mrf.mxu0
      %v5422 = vadd.f32 0.0, %v5421
      %v5423 = vpop.f32.mrf.mxu0
      %v5424 = vpop.f32.mrf.mxu0
      %v5425 = vadd.f32 0.0, %v5424
      %v5426 = vpop.f32.mrf.mxu0
      %5427 = vmatprep.mubr.bf16.mxu0 0
      %5428 = vmatmul.mubr.bf16.gmra.mxu0 %v5309
      %v5429 = vpop.f32.mrf.mxu0
      %v5430 = vadd.f32 0.0, %v5429
      %v5431 = vpop.f32.mrf.mxu0
      %v5432 = vpop.f32.mrf.mxu0
      %v5433 = vadd.f32 0.0, %v5432
      %v5434 = vpop.f32.mrf.mxu0
      %5435 = vmatprep.mubr.bf16.mxu0 0
      %5436 = vmatmul.mubr.bf16.gmra.mxu0 %v5312
      %v5437 = vpop.f32.mrf.mxu0
      %v5438 = vadd.f32 0.0, %v5437
      %v5439 = vpop.f32.mrf.mxu0
      %v5440 = vpop.f32.mrf.mxu0
      %v5441 = vadd.f32 0.0, %v5440
      %v5442 = vpop.f32.mrf.mxu0
      %5443 = vmatprep.mubr.bf16.mxu0 0
      %5444 = vmatmul.mubr.bf16.gmra.mxu0 %v5315
      %v5445 = vpop.f32.mrf.mxu0
      %v5446 = vadd.f32 0.0, %v5445
      %v5447 = vpop.f32.mrf.mxu0
      %v5448 = vpop.f32.mrf.mxu0
      %v5449 = vadd.f32 0.0, %v5448
      %v5450 = vpop.f32.mrf.mxu0
      %5451 = vmatprep.mubr.bf16.mxu0 0
      %5452 = vmatmul.mubr.bf16.gmra.mxu0 %v5318
      %v5453 = vpop.f32.mrf.mxu0
      %v5454 = vadd.f32 0.0, %v5453
      %v5455 = vpop.f32.mrf.mxu0
      %v5456 = vpop.f32.mrf.mxu0
      %v5457 = vadd.f32 0.0, %v5456
      %v5458 = vpop.f32.mrf.mxu0
      %5459 = vmatprep.mubr.bf16.mxu0 0
      %5460 = vmatmul.mubr.bf16.gmra.mxu0 %v5321
      %v5461 = vpop.f32.mrf.mxu0
      %v5462 = vadd.f32 0.0, %v5461
      %v5463 = vpop.f32.mrf.mxu0
      %v5464 = vpop.f32.mrf.mxu0
      %v5465 = vadd.f32 0.0, %v5464
      %v5466 = vpop.f32.mrf.mxu0
      %5467 = vmatprep.mubr.bf16.mxu0 0
      %5468 = vmatmul.mubr.bf16.gmra.mxu0 %v5324
      %v5469 = vpop.f32.mrf.mxu0
      %v5470 = vadd.f32 0.0, %v5469
      %v5471 = vpop.f32.mrf.mxu0
      %v5472 = vpop.f32.mrf.mxu0
      %v5473 = vadd.f32 0.0, %v5472
      %v5474 = vpop.f32.mrf.mxu0
      %5475 = vmatprep.mubr.bf16.mxu0 0
      %5476 = vmatmul.mubr.bf16.gmra.mxu0 %v5327
      %v5477 = vpop.f32.mrf.mxu0
      %v5478 = vadd.f32 0.0, %v5477
      %v5479 = vpop.f32.mrf.mxu0
      %v5480 = vpop.f32.mrf.mxu0
      %v5481 = vadd.f32 0.0, %v5480
      %v5482 = vpop.f32.mrf.mxu0
      %5483 = vmatprep.mubr.bf16.mxu0 0
      %5484 = vmatmul.mubr.bf16.gmra.mxu0 %v5330
      %v5485 = vpop.f32.mrf.mxu0
      %v5486 = vadd.f32 0.0, %v5485
      %v5487 = vpop.f32.mrf.mxu0
      %v5488 = vpop.f32.mrf.mxu0
      %v5489 = vadd.f32 0.0, %v5488
      %v5490 = vpop.f32.mrf.mxu0
      %5491 = vmatprep.mubr.bf16.mxu0 0
      %5492 = vmatmul.mubr.bf16.gmra.mxu0 %v5333
      %v5493 = vpop.f32.mrf.mxu0
      %v5494 = vadd.f32 0.0, %v5493
      %v5495 = vpop.f32.mrf.mxu0
      %v5496 = vpop.f32.mrf.mxu0
      %v5497 = vadd.f32 0.0, %v5496
      %v5498 = vpop.f32.mrf.mxu0
      %5499 = vmatprep.mubr.bf16.mxu0 0
      %5500 = vmatmul.mubr.bf16.gmra.mxu0 %v5336
      %v5501 = vpop.f32.mrf.mxu0
      %v5502 = vadd.f32 0.0, %v5501
      %v5503 = vpop.f32.mrf.mxu0
      %v5504 = vpop.f32.mrf.mxu0
      %v5505 = vadd.f32 0.0, %v5504
      %v5506 = vpop.f32.mrf.mxu0
      %5507 = vmatprep.mubr.bf16.mxu0 0
      %5508 = vmatmul.mubr.bf16.gmra.mxu0 %v5339
      %v5509 = vpop.f32.mrf.mxu0
      %v5510 = vadd.f32 0.0, %v5509
      %v5511 = vpop.f32.mrf.mxu0
      %v5512 = vpop.f32.mrf.mxu0
      %v5513 = vadd.f32 0.0, %v5512
      %v5514 = vpop.f32.mrf.mxu0
      %5515 = vmatprep.mubr.bf16.mxu0 0
      %5516 = vmatmul.mubr.bf16.gmra.mxu0 %v5342
      %v5517 = vpop.f32.mrf.mxu0
      %v5518 = vadd.f32 0.0, %v5517
      %v5519 = vpop.f32.mrf.mxu0
      %v5520 = vpop.f32.mrf.mxu0
      %v5521 = vadd.f32 0.0, %v5520
      %v5522 = vpop.f32.mrf.mxu0
      %5523 = vdwg.mxu0
      %v5524 = vld [vmem:[%s9] sm:$0x1]
      %v5526 = vlaneseq
      %v5527 = vshrl.u32 %v5526, 7
      %v5528 = vsub.s32 0, %v5527
      %v5529 = vrot.slane %v5524, %v5528
      %v5531 = vmul.f32 %v5382, %v5529
      %v5532 = vmul.f32 %v5385, %v5529
      %v5533 = vmul.f32 %v5390, %v5529
      %v5534 = vmul.f32 %v5393, %v5529
      %v5535 = vmul.f32 %v5398, %v5529
      %v5536 = vmul.f32 %v5401, %v5529
      %v5537 = vmul.f32 %v5406, %v5529
      %v5538 = vmul.f32 %v5409, %v5529
      %v5539 = vmul.f32 %v5414, %v5529
      %v5540 = vmul.f32 %v5417, %v5529
      %v5541 = vmul.f32 %v5422, %v5529
      %v5542 = vmul.f32 %v5425, %v5529
      %v5543 = vmul.f32 %v5430, %v5529
      %v5544 = vmul.f32 %v5433, %v5529
      %v5545 = vmul.f32 %v5438, %v5529
      %v5546 = vmul.f32 %v5441, %v5529
      %v5547 = vmul.f32 %v5446, %v5529
      %v5548 = vmul.f32 %v5449, %v5529
      %v5549 = vmul.f32 %v5454, %v5529
      %v5550 = vmul.f32 %v5457, %v5529
      %v5551 = vmul.f32 %v5462, %v5529
      %v5552 = vmul.f32 %v5465, %v5529
      %v5553 = vmul.f32 %v5470, %v5529
      %v5554 = vmul.f32 %v5473, %v5529
      %v5555 = vmul.f32 %v5478, %v5529
      %v5556 = vmul.f32 %v5481, %v5529
      %v5557 = vmul.f32 %v5486, %v5529
      %v5558 = vmul.f32 %v5489, %v5529
      %v5559 = vmul.f32 %v5494, %v5529
      %v5560 = vmul.f32 %v5497, %v5529
      %v5561 = vmul.f32 %v5502, %v5529
      %v5562 = vmul.f32 %v5505, %v5529
      %v5563 = vmul.f32 %v5510, %v5529
      %v5564 = vmul.f32 %v5513, %v5529
      %v5565 = vmul.f32 %v5518, %v5529
      %v5566 = vmul.f32 %v5521, %v5529
      %v5567 = vld [vmem:[%s10] sm:$0x1]
      %v5569 = vlaneseq
      %v5570 = vshrl.u32 %v5569, 7
      %v5571 = vsub.s32 0, %v5570
      %v5572 = vrot.slane %v5567, %v5571
      %v5574 = vadd.f32 %v5531, %v5572
      %v5575 = vadd.f32 %v5532, %v5572
      %v5576 = vadd.f32 %v5533, %v5572
      %v5577 = vadd.f32 %v5534, %v5572
      %v5578 = vadd.f32 %v5535, %v5572
      %v5579 = vadd.f32 %v5536, %v5572
      %v5580 = vadd.f32 %v5537, %v5572
      %v5581 = vadd.f32 %v5538, %v5572
      %v5582 = vadd.f32 %v5539, %v5572
      %v5583 = vadd.f32 %v5540, %v5572
      %v5584 = vadd.f32 %v5541, %v5572
      %v5585 = vadd.f32 %v5542, %v5572
      %v5586 = vadd.f32 %v5543, %v5572
      %v5587 = vadd.f32 %v5544, %v5572
      %v5588 = vadd.f32 %v5545, %v5572
      %v5589 = vadd.f32 %v5546, %v5572
      %v5590 = vadd.f32 %v5547, %v5572
      %v5591 = vadd.f32 %v5548, %v5572
      %v5592 = vadd.f32 %v5549, %v5572
      %v5593 = vadd.f32 %v5550, %v5572
      %v5594 = vadd.f32 %v5551, %v5572
      %v5595 = vadd.f32 %v5552, %v5572
      %v5596 = vadd.f32 %v5553, %v5572
      %v5597 = vadd.f32 %v5554, %v5572
      %v5598 = vadd.f32 %v5555, %v5572
      %v5599 = vadd.f32 %v5556, %v5572
      %v5600 = vadd.f32 %v5557, %v5572
      %v5601 = vadd.f32 %v5558, %v5572
      %v5602 = vadd.f32 %v5559, %v5572
      %v5603 = vadd.f32 %v5560, %v5572
      %v5604 = vadd.f32 %v5561, %v5572
      %v5605 = vadd.f32 %v5562, %v5572
      %v5606 = vadd.f32 %v5563, %v5572
      %v5607 = vadd.f32 %v5564, %v5572
      %v5608 = vadd.f32 %v5565, %v5572
      %v5609 = vadd.f32 %v5566, %v5572
      %v5610 = vld [vmem:[%s381] sm:$0xf]
      %v5611 = vld [vmem:[%s381 + $0x4] sm:$0xf]
      %v5612 = vld [vmem:[%s381 + $0x8] sm:$0xf]
      %v5613 = vld [vmem:[%s381 + $0xc] sm:$0xf]
      %v5614 = vld [vmem:[%s381 + $0x10] sm:$0xf]
      %v5615 = vld [vmem:[%s381 + $0x14] sm:$0xf]
      %v5616 = vld [vmem:[%s381 + $0x18] sm:$0xf]
      %v5617 = vld [vmem:[%s381 + $0x1c] sm:$0xf]
      %v5618 = vld [vmem:[%s381 + $0x20] sm:$0xf]
      %v5619 = vld [vmem:[%s381 + $0x24] sm:$0xf]
      %v5620 = vld [vmem:[%s381 + $0x28] sm:$0xf]
      %v5621 = vld [vmem:[%s381 + $0x2c] sm:$0xf]
      %v5622 = vld [vmem:[%s381 + $0x30] sm:$0xf]
      %v5623 = vld [vmem:[%s381 + $0x34] sm:$0xf]
      %v5624 = vld [vmem:[%s381 + $0x38] sm:$0xf]
      %v5625 = vld [vmem:[%s381 + $0x3c] sm:$0xf]
      %v5626 = vld [vmem:[%s381 + $0x40] sm:$0xf]
      %v5627 = vld [vmem:[%s381 + $0x44] sm:$0xf]
      %v5628 = vld [vmem:[%s381 + $0x48] sm:$0xf]
      %v5629 = vld [vmem:[%s381 + $0x4c] sm:$0xf]
      %v5630 = vld [vmem:[%s381 + $0x50] sm:$0xf]
      %v5631 = vld [vmem:[%s381 + $0x54] sm:$0xf]
      %v5632 = vld [vmem:[%s381 + $0x58] sm:$0xf]
      %v5633 = vld [vmem:[%s381 + $0x5c] sm:$0xf]
      %v5634 = vld [vmem:[%s381 + $0x60] sm:$0xf]
      %v5635 = vld [vmem:[%s381 + $0x64] sm:$0xf]
      %v5636 = vld [vmem:[%s381 + $0x68] sm:$0xf]
      %v5637 = vld [vmem:[%s381 + $0x6c] sm:$0xf]
      %v5638 = vld [vmem:[%s381 + $0x70] sm:$0xf]
      %v5639 = vld [vmem:[%s381 + $0x74] sm:$0xf]
      %v5640 = vld [vmem:[%s381 + $0x78] sm:$0xf]
      %v5641 = vld [vmem:[%s381 + $0x7c] sm:$0xf]
      %v5642 = vld [vmem:[%s381 + $0x80] sm:$0xf]
      %v5643 = vld [vmem:[%s381 + $0x84] sm:$0xf]
      %v5644 = vld [vmem:[%s381 + $0x88] sm:$0xf]
      %v5645 = vld [vmem:[%s381 + $0x8c] sm:$0xf]
      %v5646 = vunpack.c.l.bf16 %v5610
      %v5647 = vunpack.c.l.bf16 %v5611
      %v5648 = vunpack.c.l.bf16 %v5612
      %v5649 = vunpack.c.l.bf16 %v5613
      %v5650 = vunpack.c.l.bf16 %v5614
      %v5651 = vunpack.c.l.bf16 %v5615
      %v5652 = vunpack.c.l.bf16 %v5616
      %v5653 = vunpack.c.l.bf16 %v5617
      %v5654 = vunpack.c.l.bf16 %v5618
      %v5655 = vunpack.c.l.bf16 %v5619
      %v5656 = vunpack.c.l.bf16 %v5620
      %v5657 = vunpack.c.l.bf16 %v5621
      %v5658 = vunpack.c.l.bf16 %v5622
      %v5659 = vunpack.c.l.bf16 %v5623
      %v5660 = vunpack.c.l.bf16 %v5624
      %v5661 = vunpack.c.l.bf16 %v5625
      %v5662 = vunpack.c.l.bf16 %v5626
      %v5663 = vunpack.c.l.bf16 %v5627
      %v5664 = vunpack.c.l.bf16 %v5628
      %v5665 = vunpack.c.l.bf16 %v5629
      %v5666 = vunpack.c.l.bf16 %v5630
      %v5667 = vunpack.c.l.bf16 %v5631
      %v5668 = vunpack.c.l.bf16 %v5632
      %v5669 = vunpack.c.l.bf16 %v5633
      %v5670 = vunpack.c.l.bf16 %v5634
      %v5671 = vunpack.c.l.bf16 %v5635
      %v5672 = vunpack.c.l.bf16 %v5636
      %v5673 = vunpack.c.l.bf16 %v5637
      %v5674 = vunpack.c.l.bf16 %v5638
      %v5675 = vunpack.c.l.bf16 %v5639
      %v5676 = vunpack.c.l.bf16 %v5640
      %v5677 = vunpack.c.l.bf16 %v5641
      %v5678 = vunpack.c.l.bf16 %v5642
      %v5679 = vunpack.c.l.bf16 %v5643
      %v5680 = vunpack.c.l.bf16 %v5644
      %v5681 = vunpack.c.l.bf16 %v5645
      %v5682 = vadd.f32 %v5574, %v5646
      %v5683 = vadd.f32 %v5575, %v5647
      %v5684 = vadd.f32 %v5576, %v5648
      %v5685 = vadd.f32 %v5577, %v5649
      %v5686 = vadd.f32 %v5578, %v5650
      %v5687 = vadd.f32 %v5579, %v5651
      %v5688 = vadd.f32 %v5580, %v5652
      %v5689 = vadd.f32 %v5581, %v5653
      %v5690 = vadd.f32 %v5582, %v5654
      %v5691 = vadd.f32 %v5583, %v5655
      %v5692 = vadd.f32 %v5584, %v5656
      %v5693 = vadd.f32 %v5585, %v5657
      %v5694 = vadd.f32 %v5586, %v5658
      %v5695 = vadd.f32 %v5587, %v5659
      %v5696 = vadd.f32 %v5588, %v5660
      %v5697 = vadd.f32 %v5589, %v5661
      %v5698 = vadd.f32 %v5590, %v5662
      %v5699 = vadd.f32 %v5591, %v5663
      %v5700 = vadd.f32 %v5592, %v5664
      %v5701 = vadd.f32 %v5593, %v5665
      %v5702 = vadd.f32 %v5594, %v5666
      %v5703 = vadd.f32 %v5595, %v5667
      %v5704 = vadd.f32 %v5596, %v5668
      %v5705 = vadd.f32 %v5597, %v5669
      %v5706 = vadd.f32 %v5598, %v5670
      %v5707 = vadd.f32 %v5599, %v5671
      %v5708 = vadd.f32 %v5600, %v5672
      %v5709 = vadd.f32 %v5601, %v5673
      %v5710 = vadd.f32 %v5602, %v5674
      %v5711 = vadd.f32 %v5603, %v5675
      %v5712 = vadd.f32 %v5604, %v5676
      %v5713 = vadd.f32 %v5605, %v5677
      %v5714 = vadd.f32 %v5606, %v5678
      %v5715 = vadd.f32 %v5607, %v5679
      %v5716 = vadd.f32 %v5608, %v5680
      %v5717 = vadd.f32 %v5609, %v5681
      %v5718 = vmax.f32 %v5682, 0.0
      %v5719 = vmax.f32 %v5683, 0.0
      %v5720 = vmax.f32 %v5684, 0.0
      %v5721 = vmax.f32 %v5685, 0.0
      %v5722 = vmax.f32 %v5686, 0.0
      %v5723 = vmax.f32 %v5687, 0.0
      %v5724 = vmax.f32 %v5688, 0.0
      %v5725 = vmax.f32 %v5689, 0.0
      %v5726 = vmax.f32 %v5690, 0.0
      %v5727 = vmax.f32 %v5691, 0.0
      %v5728 = vmax.f32 %v5692, 0.0
      %v5729 = vmax.f32 %v5693, 0.0
      %v5730 = vmax.f32 %v5694, 0.0
      %v5731 = vmax.f32 %v5695, 0.0
      %v5732 = vmax.f32 %v5696, 0.0
      %v5733 = vmax.f32 %v5697, 0.0
      %v5734 = vmax.f32 %v5698, 0.0
      %v5735 = vmax.f32 %v5699, 0.0
      %v5736 = vmax.f32 %v5700, 0.0
      %v5737 = vmax.f32 %v5701, 0.0
      %v5738 = vmax.f32 %v5702, 0.0
      %v5739 = vmax.f32 %v5703, 0.0
      %v5740 = vmax.f32 %v5704, 0.0
      %v5741 = vmax.f32 %v5705, 0.0
      %v5742 = vmax.f32 %v5706, 0.0
      %v5743 = vmax.f32 %v5707, 0.0
      %v5744 = vmax.f32 %v5708, 0.0
      %v5745 = vmax.f32 %v5709, 0.0
      %v5746 = vmax.f32 %v5710, 0.0
      %v5747 = vmax.f32 %v5711, 0.0
      %v5748 = vmax.f32 %v5712, 0.0
      %v5749 = vmax.f32 %v5713, 0.0
      %v5750 = vmax.f32 %v5714, 0.0
      %v5751 = vmax.f32 %v5715, 0.0
      %v5752 = vmax.f32 %v5716, 0.0
      %v5753 = vmax.f32 %v5717, 0.0
      %v5754 = vpack.c.bf16 %v5719, %v5718
      %v5755 = vpack.c.bf16 %v5721, %v5720
      %v5756 = vpack.c.bf16 %v5723, %v5722
      %v5757 = vpack.c.bf16 %v5725, %v5724
      %v5758 = vpack.c.bf16 %v5727, %v5726
      %v5759 = vpack.c.bf16 %v5729, %v5728
      %v5760 = vpack.c.bf16 %v5731, %v5730
      %v5761 = vpack.c.bf16 %v5733, %v5732
      %v5762 = vpack.c.bf16 %v5735, %v5734
      %v5763 = vpack.c.bf16 %v5737, %v5736
      %v5764 = vpack.c.bf16 %v5739, %v5738
      %v5765 = vpack.c.bf16 %v5741, %v5740
      %v5766 = vpack.c.bf16 %v5743, %v5742
      %v5767 = vpack.c.bf16 %v5745, %v5744
      %v5768 = vpack.c.bf16 %v5747, %v5746
      %v5769 = vpack.c.bf16 %v5749, %v5748
      %v5770 = vpack.c.bf16 %v5751, %v5750
      %v5771 = vpack.c.bf16 %v5753, %v5752
      %v5790 = vunpack.c.l.b16 %v5754
      %v5791 = vunpack.c.h.b16 %v5754
      %v5792 = vunpack.c.l.b16 %v5755
      %v5793 = vunpack.c.h.b16 %v5755
      %v5794 = vunpack.c.l.b16 %v5756
      %v5795 = vunpack.c.h.b16 %v5756
      %v5796 = vunpack.c.l.b16 %v5757
      %v5797 = vunpack.c.h.b16 %v5757
      %v5798 = vunpack.c.l.b16 %v5758
      %v5799 = vunpack.c.h.b16 %v5758
      %v5800 = vunpack.c.l.b16 %v5759
      %v5801 = vunpack.c.h.b16 %v5759
      %v5802 = vunpack.c.l.b16 %v5760
      %v5803 = vunpack.c.h.b16 %v5760
      %v5804 = vunpack.c.l.b16 %v5761
      %v5805 = vunpack.c.h.b16 %v5761
      %v5806 = vunpack.c.l.b16 %v5762
      %v5807 = vunpack.c.h.b16 %v5762
      %v5808 = vunpack.c.l.b16 %v5763
      %v5809 = vunpack.c.h.b16 %v5763
      %v5810 = vunpack.c.l.b16 %v5764
      %v5811 = vunpack.c.h.b16 %v5764
      %v5812 = vunpack.c.l.b16 %v5765
      %v5813 = vunpack.c.h.b16 %v5765
      %v5814 = vunpack.c.l.b16 %v5766
      %v5815 = vunpack.c.h.b16 %v5766
      %v5816 = vunpack.c.l.b16 %v5767
      %v5817 = vunpack.c.h.b16 %v5767
      %v5818 = vunpack.c.l.b16 %v5768
      %v5819 = vunpack.c.h.b16 %v5768
      %v5820 = vunpack.c.l.b16 %v5769
      %v5821 = vunpack.c.h.b16 %v5769
      %v5822 = vunpack.c.l.b16 %v5770
      %v5823 = vunpack.c.h.b16 %v5770
      %v5824 = vunpack.c.l.b16 %v5771
      %v5825 = vunpack.c.h.b16 %v5771
      %v5826 = vpack.c.b16 %v5790, %v5790
      %v5827 = vpack.c.b16 %v5791, %v5791
      %v5828 = vpack.c.b16 %v5792, %v5792
      %v5829 = vpack.c.b16 %v5793, %v5793
      %v5830 = vpack.c.b16 %v5794, %v5794
      %v5831 = vpack.c.b16 %v5795, %v5795
      %v5832 = vpack.c.b16 %v5796, %v5796
      %v5833 = vpack.c.b16 %v5797, %v5797
      %v5834 = vpack.c.b16 %v5798, %v5798
      %v5835 = vpack.c.b16 %v5799, %v5799
      %v5836 = vpack.c.b16 %v5800, %v5800
      %v5837 = vpack.c.b16 %v5801, %v5801
      %v5838 = vpack.c.b16 %v5802, %v5802
      %v5839 = vpack.c.b16 %v5803, %v5803
      %v5840 = vpack.c.b16 %v5804, %v5804
      %v5841 = vpack.c.b16 %v5805, %v5805
      %v5842 = vpack.c.b16 %v5806, %v5806
      %v5843 = vpack.c.b16 %v5807, %v5807
      %v5844 = vpack.c.b16 %v5808, %v5808
      %v5845 = vpack.c.b16 %v5809, %v5809
      %v5846 = vpack.c.b16 %v5810, %v5810
      %v5847 = vpack.c.b16 %v5811, %v5811
      %v5848 = vpack.c.b16 %v5812, %v5812
      %v5849 = vpack.c.b16 %v5813, %v5813
      %v5850 = vpack.c.b16 %v5814, %v5814
      %v5851 = vpack.c.b16 %v5815, %v5815
      %v5852 = vpack.c.b16 %v5816, %v5816
      %v5853 = vpack.c.b16 %v5817, %v5817
      %v5854 = vpack.c.b16 %v5818, %v5818
      %v5855 = vpack.c.b16 %v5819, %v5819
      %v5856 = vpack.c.b16 %v5820, %v5820
      %v5857 = vpack.c.b16 %v5821, %v5821
      %v5858 = vpack.c.b16 %v5822, %v5822
      %v5859 = vpack.c.b16 %v5823, %v5823
      %v5860 = vpack.c.b16 %v5824, %v5824
      %v5861 = vpack.c.b16 %v5825, %v5825
      %vm5898 = vcmask 257024
      %5899 = vst.msk [vmem:[%s386] sm:$0xf] %vm5898, %v5826
      %5900 = vst.msk [vmem:[%s386 + $0x4] sm:$0xf] %vm5898, %v5827
      %5901 = vst.msk [vmem:[%s386 + $0x8] sm:$0xf] %vm5898, %v5828
      %5902 = vst.msk [vmem:[%s386 + $0xc] sm:$0xf] %vm5898, %v5829
      %5903 = vst.msk [vmem:[%s386 + $0x10] sm:$0xf] %vm5898, %v5830
      %5904 = vst.msk [vmem:[%s386 + $0x14] sm:$0xf] %vm5898, %v5831
      %5905 = vst.msk [vmem:[%s386 + $0x18] sm:$0xf] %vm5898, %v5832
      %5906 = vst.msk [vmem:[%s386 + $0x1c] sm:$0xf] %vm5898, %v5833
      %5907 = vst.msk [vmem:[%s386 + $0x20] sm:$0xf] %vm5898, %v5834
      %5908 = vst.msk [vmem:[%s386 + $0x24] sm:$0xf] %vm5898, %v5835
      %5909 = vst.msk [vmem:[%s386 + $0x28] sm:$0xf] %vm5898, %v5836
      %5910 = vst.msk [vmem:[%s386 + $0x2c] sm:$0xf] %vm5898, %v5837
      %5911 = vst.msk [vmem:[%s386 + $0x30] sm:$0xf] %vm5898, %v5838
      %5912 = vst.msk [vmem:[%s386 + $0x34] sm:$0xf] %vm5898, %v5839
      %5913 = vst.msk [vmem:[%s386 + $0x38] sm:$0xf] %vm5898, %v5840
      %5914 = vst.msk [vmem:[%s386 + $0x3c] sm:$0xf] %vm5898, %v5841
      %5915 = vst.msk [vmem:[%s386 + $0x40] sm:$0xf] %vm5898, %v5842
      %5916 = vst.msk [vmem:[%s386 + $0x44] sm:$0xf] %vm5898, %v5843
      %5917 = vst.msk [vmem:[%s386 + $0x48] sm:$0xf] %vm5898, %v5844
      %5918 = vst.msk [vmem:[%s386 + $0x4c] sm:$0xf] %vm5898, %v5845
      %5919 = vst.msk [vmem:[%s386 + $0x50] sm:$0xf] %vm5898, %v5846
      %5920 = vst.msk [vmem:[%s386 + $0x54] sm:$0xf] %vm5898, %v5847
      %5921 = vst.msk [vmem:[%s386 + $0x58] sm:$0xf] %vm5898, %v5848
      %5922 = vst.msk [vmem:[%s386 + $0x5c] sm:$0xf] %vm5898, %v5849
      %5923 = vst.msk [vmem:[%s386 + $0x60] sm:$0xf] %vm5898, %v5850
      %5924 = vst.msk [vmem:[%s386 + $0x64] sm:$0xf] %vm5898, %v5851
      %5925 = vst.msk [vmem:[%s386 + $0x68] sm:$0xf] %vm5898, %v5852
      %5926 = vst.msk [vmem:[%s386 + $0x6c] sm:$0xf] %vm5898, %v5853
      %5927 = vst.msk [vmem:[%s386 + $0x70] sm:$0xf] %vm5898, %v5854
      %5928 = vst.msk [vmem:[%s386 + $0x74] sm:$0xf] %vm5898, %v5855
      %5929 = vst.msk [vmem:[%s386 + $0x78] sm:$0xf] %vm5898, %v5856
      %5930 = vst.msk [vmem:[%s386 + $0x7c] sm:$0xf] %vm5898, %v5857
      %5931 = vst.msk [vmem:[%s386 + $0x80] sm:$0xf] %vm5898, %v5858
      %5932 = vst.msk [vmem:[%s386 + $0x84] sm:$0xf] %vm5898, %v5859
      %5933 = vst.msk [vmem:[%s386 + $0x88] sm:$0xf] %vm5898, %v5860
      %5934 = vst.msk [vmem:[%s386 + $0x8c] sm:$0xf] %vm5898, %v5861
      %p5935 = scmp.lt.s32.totalorder %s22, 1
      %s5936 = scalar_select %p5935, %s22, 1
      %s5937 = smul.addr %s5936, 36
      %s5938 = smul.addr %s5937, 4
      %s5939 = scalar_lea.vmem %s11, %s5938
      // Predicated region
      $region65: #{tpu_custom_call.1} parent=63 // pred_check
        %p5940 = pneg %p276
      $region66: #{tpu_custom_call.1} parent=63 // pred_check_branch
        %5942 = sbr.rel (%p5940) target = $region68
      $region67: #{tpu_custom_call.1} parent=63 // pred_region
        _
      $region68: #{tpu_custom_call.1} parent=63 // pred_fallthru
        _
    $region64: #{tpu_custom_call.1} parent=5 // pred_fallthru
      _
    %p5943 = scmp.le.s32.totalorder 2, %s17
    // Predicated region
    $region69: #{tpu_custom_call.1} parent=5 // pred_check
      %p5944 = pneg %p5943
    $region70: #{tpu_custom_call.1} parent=5 // pred_check_branch
      %5946 = sbr.rel (%p5944) target = $region72
    $region71: #{tpu_custom_call.1} parent=5 // pred_region
      %s5947 = ssub.s32 %s17, 2
      // Predicated region
      $region73: #{tpu_custom_call.1} parent=71 // pred_check
        %p5948 = pneg %p282
      $region74: #{tpu_custom_call.1} parent=71 // pred_check_branch
        %5950 = sbr.rel (%p5948) target = $region76
      $region75: #{tpu_custom_call.1} parent=71 // pred_region
        %p5951 = scmp.lt.s32.totalorder %s23, 1
        %s5952 = scalar_select %p5951, %s23, 1
        %s5953 = smul.addr %s5952, 36
        %s5954 = smul.addr %s5953, 4
        %s5955 = scalar_lea.vmem %s11, %s5954
      $region76: #{tpu_custom_call.1} parent=71 // pred_fallthru
        _
    $region72: #{tpu_custom_call.1} parent=5 // pred_fallthru
      _
  $region6: #{tpu_custom_call.1} parent=0 // loop_footer
    %s21 = sadd.s32 1, %s17
  $region7: #{tpu_custom_call.1} parent=0 // loop_footer_branch
    %16 = sbr.rel target = $region3
  $region8: #{tpu_custom_call.1} parent=0 // loop_exit
    _

</llo_original>
